<compile_context>
chip_gen: v5e
topology: v5e:2x2
jax: 0.10.0
libtpu: 0.0.40
codegen_flags: <defaults>
</compile_context>

<pallas_src>
import functools

import jax
import jax.numpy as jnp
from jax.experimental import pallas as pl
from jax.experimental.pallas import tpu as pltpu

# ----- model dims (from the PyTorch script) -----
X_DIM = 2
Y_DIM = 2
H_DIM = [8, 16, 8, 4]
DIMS = [X_DIM, *H_DIM, Y_DIM]

MIN_TILE_B = 1024       # 8 sublanes x 128 lanes -> smallest legal row tile
TILE_B_TARGET = 4096    # rows per grid step (sweepable; ~0.35 us fixed cost per step)


def _round_up(n, m):
    return ((n + m - 1) // m) * m


def _cdiv(a, b):
    return -(-a // b)


def _choose_tiling(B):
    """Rows per tile (multiple of 1024), number of grid steps, padded batch."""
    if B <= TILE_B_TARGET:
        tile_b = _round_up(B, MIN_TILE_B)
        n = 1
    else:
        n = _cdiv(B, TILE_B_TARGET)
        if n % 2:           # even step count -> balanced across v7x's 2 TensorCores
            n += 1
        tile_b = _round_up(_cdiv(B, n), MIN_TILE_B)
    return tile_b, n, tile_b * n


def _mlp_kernel(x_ref, *refs):
    """One batch tile.

    x_ref : (X_DIM, R_tile, 128) f32 VMEM  -- batch lane-dense activations
    refs  : w1,b1,...,w5,b5 (flattened 1-D f32 in SMEM), then o_ref
    o_ref : (Y_DIM, R_tile, 128) f32 VMEM  -- log-probs, batch lane-dense
    """
    o_ref = refs[-1]
    param_refs = refs[:-1]
    n_layers = len(DIMS) - 1

    # list of per-feature (R_tile, 128) activation slabs
    h = [x_ref[i] for i in range(DIMS[0])]

    for li in range(n_layers):
        f_in, f_out = DIMS[li], DIMS[li + 1]
        w_ref = param_refs[2 * li]       # (f_in * f_out,) row-major (in, out)
        b_ref = param_refs[2 * li + 1]   # (f_out,)
        is_hidden = li < n_layers - 1
        nh = []
        for j in range(f_out):
            # scalar (SMEM) x vector (VPU) multiply-adds; no MXU involved
            acc = h[0] * w_ref[0 * f_out + j] + b_ref[j]
            for i in range(1, f_in):
                acc = acc + h[i] * w_ref[i * f_out + j]
            nh.append(jnp.maximum(acc, 0.0) if is_hidden else acc)
        h = nh

    # exact 2-class log_softmax via pairwise logsumexp (2 exps + 1 log per sample)
    l0, l1 = h
    m = jnp.maximum(l0, l1)
    lse = m + jnp.log(jnp.exp(l0 - m) + jnp.exp(l1 - m))
    o_ref[0] = l0 - lse
    o_ref[1] = l1 - lse


def init_params(key):
    """PyTorch nn.Linear-style init: U(-1/sqrt(fan_in), +1/sqrt(fan_in)); stored as (in, out)."""
    params = []
    for i in range(len(DIMS) - 1):
        fan_in, fan_out = DIMS[i], DIMS[i + 1]
        key, kw, kb = jax.random.split(key, 3)
        bound = 1.0 / (fan_in ** 0.5)
        w = jax.random.uniform(kw, (fan_in, fan_out), jnp.float32, -bound, bound)
        b = jax.random.uniform(kb, (fan_out,), jnp.float32, -bound, bound)
        params.append((w, b))
    return params


def prepare_params(params):
    """Flatten weights/biases to 1-D f32 (minimal SMEM padding); done once."""
    flat = []
    for (w, b) in params:
        flat.append(jnp.asarray(w, jnp.float32).reshape(-1))   # row-major (in, out)
        flat.append(jnp.asarray(b, jnp.float32).reshape(-1))
    return tuple(jax.device_put(a) for a in flat)


@jax.jit
def halfmoon_forward(x, flat_params):
    """x: (B, X_DIM) float32 -> logprobs (B, Y_DIM) float32."""
    B = x.shape[0]
    tile_b, n_tiles, B_pad = _choose_tiling(B)
    r_tile = tile_b // 128
    r_total = B_pad // 128

    x32 = x.astype(jnp.float32)
    if B_pad != B:
        x32 = jnp.pad(x32, ((0, B_pad - B), (0, 0)))
    # lane-dense layout: (features, row-groups, 128 lanes)
    xt = x32.T.reshape(X_DIM, r_total, 128)

    x_spec = pl.BlockSpec((X_DIM, r_tile, 128), lambda i: (0, i, 0))
    out_spec = pl.BlockSpec((Y_DIM, r_tile, 128), lambda i: (0, i, 0))
    smem_spec = pl.BlockSpec(memory_space=pltpu.MemorySpace.SMEM)
    in_specs = [x_spec] + [smem_spec] * len(flat_params)

    macs = sum(DIMS[i] * DIMS[i + 1] for i in range(len(DIMS) - 1))   # 312
    n_param = sum(int(p.size) for p in flat_params)
    cost = pl.CostEstimate(
        flops=2 * B_pad * macs,
        transcendentals=3 * B_pad,
        bytes_accessed=4 * (B_pad * (X_DIM + Y_DIM) + n_param),
    )

    out = pl.pallas_call(
        _mlp_kernel,
        out_shape=jax.ShapeDtypeStruct((Y_DIM, r_total, 128), jnp.float32),
        grid=(n_tiles,),
        in_specs=in_specs,
        out_specs=out_spec,
        compiler_params=pltpu.CompilerParams(
            dimension_semantics=("parallel",)),
        cost_estimate=cost,
    )(xt, *flat_params)

    out2 = out.reshape(Y_DIM, B_pad).T
    return out2[:B]


def reference_forward(x, params):
    h = x.astype(jnp.float32)
    for (w, b) in params[:-1]:
        h = jnp.maximum(h @ w + b, 0.0)
    w, b = params[-1]
    lg = h @ w + b
    return jax.nn.log_softmax(lg, axis=-1)


if __name__ == "__main__":
    key = jax.random.PRNGKey(0)
    kx, kx2, kp = jax.random.split(key, 3)

    params = init_params(kp)
    flat_params = prepare_params(params)

    # small check (single grid step)
    batch = 8
    x = jax.random.normal(kx, (batch, X_DIM), jnp.float32)
    out = jax.block_until_ready(halfmoon_forward(x, flat_params))
    ref = reference_forward(x, params)
    assert out.shape == (batch, Y_DIM)
    assert jnp.allclose(out, ref, atol=1e-4, rtol=1e-4), \
        "Pallas output mismatch vs reference (small)"

    # larger check (multi-step grid, even step count, ragged batch padding)
    batch2 = 6000
    x2 = jax.random.normal(kx2, (batch2, X_DIM), jnp.float32)
    out2 = jax.block_until_ready(halfmoon_forward(x2, flat_params))
    ref2 = reference_forward(x2, params)
    assert out2.shape == (batch2, Y_DIM)
    assert jnp.allclose(out2, ref2, atol=1e-4, rtol=1e-4), \
        "Pallas output mismatch vs reference (large)"

    print("KERNEL_OK")
</pallas_src>

<mosaic_0001>
module attributes {stable_mosaic.version = 11 : i64} {
  func.func @_mlp_kernel(%arg0: i32, %arg1: memref<2x8x128xf32, #tpu.memory_space<vmem>>, %arg2: memref<16xf32, #tpu.memory_space<smem>>, %arg3: memref<8xf32, #tpu.memory_space<smem>>, %arg4: memref<128xf32, #tpu.memory_space<smem>>, %arg5: memref<16xf32, #tpu.memory_space<smem>>, %arg6: memref<128xf32, #tpu.memory_space<smem>>, %arg7: memref<8xf32, #tpu.memory_space<smem>>, %arg8: memref<32xf32, #tpu.memory_space<smem>>, %arg9: memref<4xf32, #tpu.memory_space<smem>>, %arg10: memref<8xf32, #tpu.memory_space<smem>>, %arg11: memref<2xf32, #tpu.memory_space<smem>>, %arg12: memref<2x8x128xf32, #tpu.memory_space<vmem>>) attributes {dimension_semantics = [#tpu.dimension_semantics<parallel>], iteration_bounds = array<i64: 1>, scalar_prefetch = 0 : i64, scratch_operands = 0 : i64, tpu.core_type = #tpu.core_type<tc>, window_params = [{transform_indices = @transform_0, window_bounds = array<i64: 2, 8, 128>}, {transform_indices = @transform_1, window_bounds = array<i64: 16>}, {transform_indices = @transform_2, window_bounds = array<i64: 8>}, {transform_indices = @transform_3, window_bounds = array<i64: 128>}, {transform_indices = @transform_4, window_bounds = array<i64: 16>}, {transform_indices = @transform_5, window_bounds = array<i64: 128>}, {transform_indices = @transform_6, window_bounds = array<i64: 8>}, {transform_indices = @transform_7, window_bounds = array<i64: 32>}, {transform_indices = @transform_8, window_bounds = array<i64: 4>}, {transform_indices = @transform_9, window_bounds = array<i64: 8>}, {transform_indices = @transform_10, window_bounds = array<i64: 2>}, {transform_indices = @transform_11, window_bounds = array<i64: 2, 8, 128>}]} {
    %c0 = arith.constant 0 : index
    %c0_0 = arith.constant 0 : index
    %c0_1 = arith.constant 0 : index
    %0 = vector.load %arg1[%c0, %c0_0, %c0_1] : memref<2x8x128xf32, #tpu.memory_space<vmem>>, vector<1x8x128xf32>
    %1 = vector.shape_cast %0 : vector<1x8x128xf32> to vector<8x128xf32>
    %c1 = arith.constant 1 : index
    %c0_2 = arith.constant 0 : index
    %c0_3 = arith.constant 0 : index
    %2 = vector.load %arg1[%c1, %c0_2, %c0_3] : memref<2x8x128xf32, #tpu.memory_space<vmem>>, vector<1x8x128xf32>
    %3 = vector.shape_cast %2 : vector<1x8x128xf32> to vector<8x128xf32>
    %c0_4 = arith.constant 0 : index
    %4 = memref.load %arg2[%c0_4] : memref<16xf32, #tpu.memory_space<smem>>
    %5 = vector.broadcast %4 : f32 to vector<8x128xf32>
    %6 = arith.mulf %1, %5 : vector<8x128xf32>
    %c0_5 = arith.constant 0 : index
    %7 = memref.load %arg3[%c0_5] : memref<8xf32, #tpu.memory_space<smem>>
    %8 = vector.broadcast %7 : f32 to vector<8x128xf32>
    %9 = arith.addf %6, %8 : vector<8x128xf32>
    %c8 = arith.constant 8 : index
    %10 = memref.load %arg2[%c8] : memref<16xf32, #tpu.memory_space<smem>>
    %11 = vector.broadcast %10 : f32 to vector<8x128xf32>
    %12 = arith.mulf %3, %11 : vector<8x128xf32>
    %13 = arith.addf %9, %12 : vector<8x128xf32>
    %cst = arith.constant 0.000000e+00 : f32
    %14 = vector.broadcast %cst : f32 to vector<8x128xf32>
    %15 = arith.maximumf %13, %14 : vector<8x128xf32>
    %c1_6 = arith.constant 1 : index
    %16 = memref.load %arg2[%c1_6] : memref<16xf32, #tpu.memory_space<smem>>
    %17 = vector.broadcast %16 : f32 to vector<8x128xf32>
    %18 = arith.mulf %1, %17 : vector<8x128xf32>
    %c1_7 = arith.constant 1 : index
    %19 = memref.load %arg3[%c1_7] : memref<8xf32, #tpu.memory_space<smem>>
    %20 = vector.broadcast %19 : f32 to vector<8x128xf32>
    %21 = arith.addf %18, %20 : vector<8x128xf32>
    %c9 = arith.constant 9 : index
    %22 = memref.load %arg2[%c9] : memref<16xf32, #tpu.memory_space<smem>>
    %23 = vector.broadcast %22 : f32 to vector<8x128xf32>
    %24 = arith.mulf %3, %23 : vector<8x128xf32>
    %25 = arith.addf %21, %24 : vector<8x128xf32>
    %cst_8 = arith.constant 0.000000e+00 : f32
    %26 = vector.broadcast %cst_8 : f32 to vector<8x128xf32>
    %27 = arith.maximumf %25, %26 : vector<8x128xf32>
    %c2 = arith.constant 2 : index
    %28 = memref.load %arg2[%c2] : memref<16xf32, #tpu.memory_space<smem>>
    %29 = vector.broadcast %28 : f32 to vector<8x128xf32>
    %30 = arith.mulf %1, %29 : vector<8x128xf32>
    %c2_9 = arith.constant 2 : index
    %31 = memref.load %arg3[%c2_9] : memref<8xf32, #tpu.memory_space<smem>>
    %32 = vector.broadcast %31 : f32 to vector<8x128xf32>
    %33 = arith.addf %30, %32 : vector<8x128xf32>
    %c10 = arith.constant 10 : index
    %34 = memref.load %arg2[%c10] : memref<16xf32, #tpu.memory_space<smem>>
    %35 = vector.broadcast %34 : f32 to vector<8x128xf32>
    %36 = arith.mulf %3, %35 : vector<8x128xf32>
    %37 = arith.addf %33, %36 : vector<8x128xf32>
    %cst_10 = arith.constant 0.000000e+00 : f32
    %38 = vector.broadcast %cst_10 : f32 to vector<8x128xf32>
    %39 = arith.maximumf %37, %38 : vector<8x128xf32>
    %c3 = arith.constant 3 : index
    %40 = memref.load %arg2[%c3] : memref<16xf32, #tpu.memory_space<smem>>
    %41 = vector.broadcast %40 : f32 to vector<8x128xf32>
    %42 = arith.mulf %1, %41 : vector<8x128xf32>
    %c3_11 = arith.constant 3 : index
    %43 = memref.load %arg3[%c3_11] : memref<8xf32, #tpu.memory_space<smem>>
    %44 = vector.broadcast %43 : f32 to vector<8x128xf32>
    %45 = arith.addf %42, %44 : vector<8x128xf32>
    %c11 = arith.constant 11 : index
    %46 = memref.load %arg2[%c11] : memref<16xf32, #tpu.memory_space<smem>>
    %47 = vector.broadcast %46 : f32 to vector<8x128xf32>
    %48 = arith.mulf %3, %47 : vector<8x128xf32>
    %49 = arith.addf %45, %48 : vector<8x128xf32>
    %cst_12 = arith.constant 0.000000e+00 : f32
    %50 = vector.broadcast %cst_12 : f32 to vector<8x128xf32>
    %51 = arith.maximumf %49, %50 : vector<8x128xf32>
    %c4 = arith.constant 4 : index
    %52 = memref.load %arg2[%c4] : memref<16xf32, #tpu.memory_space<smem>>
    %53 = vector.broadcast %52 : f32 to vector<8x128xf32>
    %54 = arith.mulf %1, %53 : vector<8x128xf32>
    %c4_13 = arith.constant 4 : index
    %55 = memref.load %arg3[%c4_13] : memref<8xf32, #tpu.memory_space<smem>>
    %56 = vector.broadcast %55 : f32 to vector<8x128xf32>
    %57 = arith.addf %54, %56 : vector<8x128xf32>
    %c12 = arith.constant 12 : index
    %58 = memref.load %arg2[%c12] : memref<16xf32, #tpu.memory_space<smem>>
    %59 = vector.broadcast %58 : f32 to vector<8x128xf32>
    %60 = arith.mulf %3, %59 : vector<8x128xf32>
    %61 = arith.addf %57, %60 : vector<8x128xf32>
    %cst_14 = arith.constant 0.000000e+00 : f32
    %62 = vector.broadcast %cst_14 : f32 to vector<8x128xf32>
    %63 = arith.maximumf %61, %62 : vector<8x128xf32>
    %c5 = arith.constant 5 : index
    %64 = memref.load %arg2[%c5] : memref<16xf32, #tpu.memory_space<smem>>
    %65 = vector.broadcast %64 : f32 to vector<8x128xf32>
    %66 = arith.mulf %1, %65 : vector<8x128xf32>
    %c5_15 = arith.constant 5 : index
    %67 = memref.load %arg3[%c5_15] : memref<8xf32, #tpu.memory_space<smem>>
    %68 = vector.broadcast %67 : f32 to vector<8x128xf32>
    %69 = arith.addf %66, %68 : vector<8x128xf32>
    %c13 = arith.constant 13 : index
    %70 = memref.load %arg2[%c13] : memref<16xf32, #tpu.memory_space<smem>>
    %71 = vector.broadcast %70 : f32 to vector<8x128xf32>
    %72 = arith.mulf %3, %71 : vector<8x128xf32>
    %73 = arith.addf %69, %72 : vector<8x128xf32>
    %cst_16 = arith.constant 0.000000e+00 : f32
    %74 = vector.broadcast %cst_16 : f32 to vector<8x128xf32>
    %75 = arith.maximumf %73, %74 : vector<8x128xf32>
    %c6 = arith.constant 6 : index
    %76 = memref.load %arg2[%c6] : memref<16xf32, #tpu.memory_space<smem>>
    %77 = vector.broadcast %76 : f32 to vector<8x128xf32>
    %78 = arith.mulf %1, %77 : vector<8x128xf32>
    %c6_17 = arith.constant 6 : index
    %79 = memref.load %arg3[%c6_17] : memref<8xf32, #tpu.memory_space<smem>>
    %80 = vector.broadcast %79 : f32 to vector<8x128xf32>
    %81 = arith.addf %78, %80 : vector<8x128xf32>
    %c14 = arith.constant 14 : index
    %82 = memref.load %arg2[%c14] : memref<16xf32, #tpu.memory_space<smem>>
    %83 = vector.broadcast %82 : f32 to vector<8x128xf32>
    %84 = arith.mulf %3, %83 : vector<8x128xf32>
    %85 = arith.addf %81, %84 : vector<8x128xf32>
    %cst_18 = arith.constant 0.000000e+00 : f32
    %86 = vector.broadcast %cst_18 : f32 to vector<8x128xf32>
    %87 = arith.maximumf %85, %86 : vector<8x128xf32>
    %c7 = arith.constant 7 : index
    %88 = memref.load %arg2[%c7] : memref<16xf32, #tpu.memory_space<smem>>
    %89 = vector.broadcast %88 : f32 to vector<8x128xf32>
    %90 = arith.mulf %1, %89 : vector<8x128xf32>
    %c7_19 = arith.constant 7 : index
    %91 = memref.load %arg3[%c7_19] : memref<8xf32, #tpu.memory_space<smem>>
    %92 = vector.broadcast %91 : f32 to vector<8x128xf32>
    %93 = arith.addf %90, %92 : vector<8x128xf32>
    %c15 = arith.constant 15 : index
    %94 = memref.load %arg2[%c15] : memref<16xf32, #tpu.memory_space<smem>>
    %95 = vector.broadcast %94 : f32 to vector<8x128xf32>
    %96 = arith.mulf %3, %95 : vector<8x128xf32>
    %97 = arith.addf %93, %96 : vector<8x128xf32>
    %cst_20 = arith.constant 0.000000e+00 : f32
    %98 = vector.broadcast %cst_20 : f32 to vector<8x128xf32>
    %99 = arith.maximumf %97, %98 : vector<8x128xf32>
    %c0_21 = arith.constant 0 : index
    %100 = memref.load %arg4[%c0_21] : memref<128xf32, #tpu.memory_space<smem>>
    %101 = vector.broadcast %100 : f32 to vector<8x128xf32>
    %102 = arith.mulf %15, %101 : vector<8x128xf32>
    %c0_22 = arith.constant 0 : index
    %103 = memref.load %arg5[%c0_22] : memref<16xf32, #tpu.memory_space<smem>>
    %104 = vector.broadcast %103 : f32 to vector<8x128xf32>
    %105 = arith.addf %102, %104 : vector<8x128xf32>
    %c16 = arith.constant 16 : index
    %106 = memref.load %arg4[%c16] : memref<128xf32, #tpu.memory_space<smem>>
    %107 = vector.broadcast %106 : f32 to vector<8x128xf32>
    %108 = arith.mulf %27, %107 : vector<8x128xf32>
    %109 = arith.addf %105, %108 : vector<8x128xf32>
    %c32 = arith.constant 32 : index
    %110 = memref.load %arg4[%c32] : memref<128xf32, #tpu.memory_space<smem>>
    %111 = vector.broadcast %110 : f32 to vector<8x128xf32>
    %112 = arith.mulf %39, %111 : vector<8x128xf32>
    %113 = arith.addf %109, %112 : vector<8x128xf32>
    %c48 = arith.constant 48 : index
    %114 = memref.load %arg4[%c48] : memref<128xf32, #tpu.memory_space<smem>>
    %115 = vector.broadcast %114 : f32 to vector<8x128xf32>
    %116 = arith.mulf %51, %115 : vector<8x128xf32>
    %117 = arith.addf %113, %116 : vector<8x128xf32>
    %c64 = arith.constant 64 : index
    %118 = memref.load %arg4[%c64] : memref<128xf32, #tpu.memory_space<smem>>
    %119 = vector.broadcast %118 : f32 to vector<8x128xf32>
    %120 = arith.mulf %63, %119 : vector<8x128xf32>
    %121 = arith.addf %117, %120 : vector<8x128xf32>
    %c80 = arith.constant 80 : index
    %122 = memref.load %arg4[%c80] : memref<128xf32, #tpu.memory_space<smem>>
    %123 = vector.broadcast %122 : f32 to vector<8x128xf32>
    %124 = arith.mulf %75, %123 : vector<8x128xf32>
    %125 = arith.addf %121, %124 : vector<8x128xf32>
    %c96 = arith.constant 96 : index
    %126 = memref.load %arg4[%c96] : memref<128xf32, #tpu.memory_space<smem>>
    %127 = vector.broadcast %126 : f32 to vector<8x128xf32>
    %128 = arith.mulf %87, %127 : vector<8x128xf32>
    %129 = arith.addf %125, %128 : vector<8x128xf32>
    %c112 = arith.constant 112 : index
    %130 = memref.load %arg4[%c112] : memref<128xf32, #tpu.memory_space<smem>>
    %131 = vector.broadcast %130 : f32 to vector<8x128xf32>
    %132 = arith.mulf %99, %131 : vector<8x128xf32>
    %133 = arith.addf %129, %132 : vector<8x128xf32>
    %cst_23 = arith.constant 0.000000e+00 : f32
    %134 = vector.broadcast %cst_23 : f32 to vector<8x128xf32>
    %135 = arith.maximumf %133, %134 : vector<8x128xf32>
    %c1_24 = arith.constant 1 : index
    %136 = memref.load %arg4[%c1_24] : memref<128xf32, #tpu.memory_space<smem>>
    %137 = vector.broadcast %136 : f32 to vector<8x128xf32>
    %138 = arith.mulf %15, %137 : vector<8x128xf32>
    %c1_25 = arith.constant 1 : index
    %139 = memref.load %arg5[%c1_25] : memref<16xf32, #tpu.memory_space<smem>>
    %140 = vector.broadcast %139 : f32 to vector<8x128xf32>
    %141 = arith.addf %138, %140 : vector<8x128xf32>
    %c17 = arith.constant 17 : index
    %142 = memref.load %arg4[%c17] : memref<128xf32, #tpu.memory_space<smem>>
    %143 = vector.broadcast %142 : f32 to vector<8x128xf32>
    %144 = arith.mulf %27, %143 : vector<8x128xf32>
    %145 = arith.addf %141, %144 : vector<8x128xf32>
    %c33 = arith.constant 33 : index
    %146 = memref.load %arg4[%c33] : memref<128xf32, #tpu.memory_space<smem>>
    %147 = vector.broadcast %146 : f32 to vector<8x128xf32>
    %148 = arith.mulf %39, %147 : vector<8x128xf32>
    %149 = arith.addf %145, %148 : vector<8x128xf32>
    %c49 = arith.constant 49 : index
    %150 = memref.load %arg4[%c49] : memref<128xf32, #tpu.memory_space<smem>>
    %151 = vector.broadcast %150 : f32 to vector<8x128xf32>
    %152 = arith.mulf %51, %151 : vector<8x128xf32>
    %153 = arith.addf %149, %152 : vector<8x128xf32>
    %c65 = arith.constant 65 : index
    %154 = memref.load %arg4[%c65] : memref<128xf32, #tpu.memory_space<smem>>
    %155 = vector.broadcast %154 : f32 to vector<8x128xf32>
    %156 = arith.mulf %63, %155 : vector<8x128xf32>
    %157 = arith.addf %153, %156 : vector<8x128xf32>
    %c81 = arith.constant 81 : index
    %158 = memref.load %arg4[%c81] : memref<128xf32, #tpu.memory_space<smem>>
    %159 = vector.broadcast %158 : f32 to vector<8x128xf32>
    %160 = arith.mulf %75, %159 : vector<8x128xf32>
    %161 = arith.addf %157, %160 : vector<8x128xf32>
    %c97 = arith.constant 97 : index
    %162 = memref.load %arg4[%c97] : memref<128xf32, #tpu.memory_space<smem>>
    %163 = vector.broadcast %162 : f32 to vector<8x128xf32>
    %164 = arith.mulf %87, %163 : vector<8x128xf32>
    %165 = arith.addf %161, %164 : vector<8x128xf32>
    %c113 = arith.constant 113 : index
    %166 = memref.load %arg4[%c113] : memref<128xf32, #tpu.memory_space<smem>>
    %167 = vector.broadcast %166 : f32 to vector<8x128xf32>
    %168 = arith.mulf %99, %167 : vector<8x128xf32>
    %169 = arith.addf %165, %168 : vector<8x128xf32>
    %cst_26 = arith.constant 0.000000e+00 : f32
    %170 = vector.broadcast %cst_26 : f32 to vector<8x128xf32>
    %171 = arith.maximumf %169, %170 : vector<8x128xf32>
    %c2_27 = arith.constant 2 : index
    %172 = memref.load %arg4[%c2_27] : memref<128xf32, #tpu.memory_space<smem>>
    %173 = vector.broadcast %172 : f32 to vector<8x128xf32>
    %174 = arith.mulf %15, %173 : vector<8x128xf32>
    %c2_28 = arith.constant 2 : index
    %175 = memref.load %arg5[%c2_28] : memref<16xf32, #tpu.memory_space<smem>>
    %176 = vector.broadcast %175 : f32 to vector<8x128xf32>
    %177 = arith.addf %174, %176 : vector<8x128xf32>
    %c18 = arith.constant 18 : index
    %178 = memref.load %arg4[%c18] : memref<128xf32, #tpu.memory_space<smem>>
    %179 = vector.broadcast %178 : f32 to vector<8x128xf32>
    %180 = arith.mulf %27, %179 : vector<8x128xf32>
    %181 = arith.addf %177, %180 : vector<8x128xf32>
    %c34 = arith.constant 34 : index
    %182 = memref.load %arg4[%c34] : memref<128xf32, #tpu.memory_space<smem>>
    %183 = vector.broadcast %182 : f32 to vector<8x128xf32>
    %184 = arith.mulf %39, %183 : vector<8x128xf32>
    %185 = arith.addf %181, %184 : vector<8x128xf32>
    %c50 = arith.constant 50 : index
    %186 = memref.load %arg4[%c50] : memref<128xf32, #tpu.memory_space<smem>>
    %187 = vector.broadcast %186 : f32 to vector<8x128xf32>
    %188 = arith.mulf %51, %187 : vector<8x128xf32>
    %189 = arith.addf %185, %188 : vector<8x128xf32>
    %c66 = arith.constant 66 : index
    %190 = memref.load %arg4[%c66] : memref<128xf32, #tpu.memory_space<smem>>
    %191 = vector.broadcast %190 : f32 to vector<8x128xf32>
    %192 = arith.mulf %63, %191 : vector<8x128xf32>
    %193 = arith.addf %189, %192 : vector<8x128xf32>
    %c82 = arith.constant 82 : index
    %194 = memref.load %arg4[%c82] : memref<128xf32, #tpu.memory_space<smem>>
    %195 = vector.broadcast %194 : f32 to vector<8x128xf32>
    %196 = arith.mulf %75, %195 : vector<8x128xf32>
    %197 = arith.addf %193, %196 : vector<8x128xf32>
    %c98 = arith.constant 98 : index
    %198 = memref.load %arg4[%c98] : memref<128xf32, #tpu.memory_space<smem>>
    %199 = vector.broadcast %198 : f32 to vector<8x128xf32>
    %200 = arith.mulf %87, %199 : vector<8x128xf32>
    %201 = arith.addf %197, %200 : vector<8x128xf32>
    %c114 = arith.constant 114 : index
    %202 = memref.load %arg4[%c114] : memref<128xf32, #tpu.memory_space<smem>>
    %203 = vector.broadcast %202 : f32 to vector<8x128xf32>
    %204 = arith.mulf %99, %203 : vector<8x128xf32>
    %205 = arith.addf %201, %204 : vector<8x128xf32>
    %cst_29 = arith.constant 0.000000e+00 : f32
    %206 = vector.broadcast %cst_29 : f32 to vector<8x128xf32>
    %207 = arith.maximumf %205, %206 : vector<8x128xf32>
    %c3_30 = arith.constant 3 : index
    %208 = memref.load %arg4[%c3_30] : memref<128xf32, #tpu.memory_space<smem>>
    %209 = vector.broadcast %208 : f32 to vector<8x128xf32>
    %210 = arith.mulf %15, %209 : vector<8x128xf32>
    %c3_31 = arith.constant 3 : index
    %211 = memref.load %arg5[%c3_31] : memref<16xf32, #tpu.memory_space<smem>>
    %212 = vector.broadcast %211 : f32 to vector<8x128xf32>
    %213 = arith.addf %210, %212 : vector<8x128xf32>
    %c19 = arith.constant 19 : index
    %214 = memref.load %arg4[%c19] : memref<128xf32, #tpu.memory_space<smem>>
    %215 = vector.broadcast %214 : f32 to vector<8x128xf32>
    %216 = arith.mulf %27, %215 : vector<8x128xf32>
    %217 = arith.addf %213, %216 : vector<8x128xf32>
    %c35 = arith.constant 35 : index
    %218 = memref.load %arg4[%c35] : memref<128xf32, #tpu.memory_space<smem>>
    %219 = vector.broadcast %218 : f32 to vector<8x128xf32>
    %220 = arith.mulf %39, %219 : vector<8x128xf32>
    %221 = arith.addf %217, %220 : vector<8x128xf32>
    %c51 = arith.constant 51 : index
    %222 = memref.load %arg4[%c51] : memref<128xf32, #tpu.memory_space<smem>>
    %223 = vector.broadcast %222 : f32 to vector<8x128xf32>
    %224 = arith.mulf %51, %223 : vector<8x128xf32>
    %225 = arith.addf %221, %224 : vector<8x128xf32>
    %c67 = arith.constant 67 : index
    %226 = memref.load %arg4[%c67] : memref<128xf32, #tpu.memory_space<smem>>
    %227 = vector.broadcast %226 : f32 to vector<8x128xf32>
    %228 = arith.mulf %63, %227 : vector<8x128xf32>
    %229 = arith.addf %225, %228 : vector<8x128xf32>
    %c83 = arith.constant 83 : index
    %230 = memref.load %arg4[%c83] : memref<128xf32, #tpu.memory_space<smem>>
    %231 = vector.broadcast %230 : f32 to vector<8x128xf32>
    %232 = arith.mulf %75, %231 : vector<8x128xf32>
    %233 = arith.addf %229, %232 : vector<8x128xf32>
    %c99 = arith.constant 99 : index
    %234 = memref.load %arg4[%c99] : memref<128xf32, #tpu.memory_space<smem>>
    %235 = vector.broadcast %234 : f32 to vector<8x128xf32>
    %236 = arith.mulf %87, %235 : vector<8x128xf32>
    %237 = arith.addf %233, %236 : vector<8x128xf32>
    %c115 = arith.constant 115 : index
    %238 = memref.load %arg4[%c115] : memref<128xf32, #tpu.memory_space<smem>>
    %239 = vector.broadcast %238 : f32 to vector<8x128xf32>
    %240 = arith.mulf %99, %239 : vector<8x128xf32>
    %241 = arith.addf %237, %240 : vector<8x128xf32>
    %cst_32 = arith.constant 0.000000e+00 : f32
    %242 = vector.broadcast %cst_32 : f32 to vector<8x128xf32>
    %243 = arith.maximumf %241, %242 : vector<8x128xf32>
    %c4_33 = arith.constant 4 : index
    %244 = memref.load %arg4[%c4_33] : memref<128xf32, #tpu.memory_space<smem>>
    %245 = vector.broadcast %244 : f32 to vector<8x128xf32>
    %246 = arith.mulf %15, %245 : vector<8x128xf32>
    %c4_34 = arith.constant 4 : index
    %247 = memref.load %arg5[%c4_34] : memref<16xf32, #tpu.memory_space<smem>>
    %248 = vector.broadcast %247 : f32 to vector<8x128xf32>
    %249 = arith.addf %246, %248 : vector<8x128xf32>
    %c20 = arith.constant 20 : index
    %250 = memref.load %arg4[%c20] : memref<128xf32, #tpu.memory_space<smem>>
    %251 = vector.broadcast %250 : f32 to vector<8x128xf32>
    %252 = arith.mulf %27, %251 : vector<8x128xf32>
    %253 = arith.addf %249, %252 : vector<8x128xf32>
    %c36 = arith.constant 36 : index
    %254 = memref.load %arg4[%c36] : memref<128xf32, #tpu.memory_space<smem>>
    %255 = vector.broadcast %254 : f32 to vector<8x128xf32>
    %256 = arith.mulf %39, %255 : vector<8x128xf32>
    %257 = arith.addf %253, %256 : vector<8x128xf32>
    %c52 = arith.constant 52 : index
    %258 = memref.load %arg4[%c52] : memref<128xf32, #tpu.memory_space<smem>>
    %259 = vector.broadcast %258 : f32 to vector<8x128xf32>
    %260 = arith.mulf %51, %259 : vector<8x128xf32>
    %261 = arith.addf %257, %260 : vector<8x128xf32>
    %c68 = arith.constant 68 : index
    %262 = memref.load %arg4[%c68] : memref<128xf32, #tpu.memory_space<smem>>
    %263 = vector.broadcast %262 : f32 to vector<8x128xf32>
    %264 = arith.mulf %63, %263 : vector<8x128xf32>
    %265 = arith.addf %261, %264 : vector<8x128xf32>
    %c84 = arith.constant 84 : index
    %266 = memref.load %arg4[%c84] : memref<128xf32, #tpu.memory_space<smem>>
    %267 = vector.broadcast %266 : f32 to vector<8x128xf32>
    %268 = arith.mulf %75, %267 : vector<8x128xf32>
    %269 = arith.addf %265, %268 : vector<8x128xf32>
    %c100 = arith.constant 100 : index
    %270 = memref.load %arg4[%c100] : memref<128xf32, #tpu.memory_space<smem>>
    %271 = vector.broadcast %270 : f32 to vector<8x128xf32>
    %272 = arith.mulf %87, %271 : vector<8x128xf32>
    %273 = arith.addf %269, %272 : vector<8x128xf32>
    %c116 = arith.constant 116 : index
    %274 = memref.load %arg4[%c116] : memref<128xf32, #tpu.memory_space<smem>>
    %275 = vector.broadcast %274 : f32 to vector<8x128xf32>
    %276 = arith.mulf %99, %275 : vector<8x128xf32>
    %277 = arith.addf %273, %276 : vector<8x128xf32>
    %cst_35 = arith.constant 0.000000e+00 : f32
    %278 = vector.broadcast %cst_35 : f32 to vector<8x128xf32>
    %279 = arith.maximumf %277, %278 : vector<8x128xf32>
    %c5_36 = arith.constant 5 : index
    %280 = memref.load %arg4[%c5_36] : memref<128xf32, #tpu.memory_space<smem>>
    %281 = vector.broadcast %280 : f32 to vector<8x128xf32>
    %282 = arith.mulf %15, %281 : vector<8x128xf32>
    %c5_37 = arith.constant 5 : index
    %283 = memref.load %arg5[%c5_37] : memref<16xf32, #tpu.memory_space<smem>>
    %284 = vector.broadcast %283 : f32 to vector<8x128xf32>
    %285 = arith.addf %282, %284 : vector<8x128xf32>
    %c21 = arith.constant 21 : index
    %286 = memref.load %arg4[%c21] : memref<128xf32, #tpu.memory_space<smem>>
    %287 = vector.broadcast %286 : f32 to vector<8x128xf32>
    %288 = arith.mulf %27, %287 : vector<8x128xf32>
    %289 = arith.addf %285, %288 : vector<8x128xf32>
    %c37 = arith.constant 37 : index
    %290 = memref.load %arg4[%c37] : memref<128xf32, #tpu.memory_space<smem>>
    %291 = vector.broadcast %290 : f32 to vector<8x128xf32>
    %292 = arith.mulf %39, %291 : vector<8x128xf32>
    %293 = arith.addf %289, %292 : vector<8x128xf32>
    %c53 = arith.constant 53 : index
    %294 = memref.load %arg4[%c53] : memref<128xf32, #tpu.memory_space<smem>>
    %295 = vector.broadcast %294 : f32 to vector<8x128xf32>
    %296 = arith.mulf %51, %295 : vector<8x128xf32>
    %297 = arith.addf %293, %296 : vector<8x128xf32>
    %c69 = arith.constant 69 : index
    %298 = memref.load %arg4[%c69] : memref<128xf32, #tpu.memory_space<smem>>
    %299 = vector.broadcast %298 : f32 to vector<8x128xf32>
    %300 = arith.mulf %63, %299 : vector<8x128xf32>
    %301 = arith.addf %297, %300 : vector<8x128xf32>
    %c85 = arith.constant 85 : index
    %302 = memref.load %arg4[%c85] : memref<128xf32, #tpu.memory_space<smem>>
    %303 = vector.broadcast %302 : f32 to vector<8x128xf32>
    %304 = arith.mulf %75, %303 : vector<8x128xf32>
    %305 = arith.addf %301, %304 : vector<8x128xf32>
    %c101 = arith.constant 101 : index
    %306 = memref.load %arg4[%c101] : memref<128xf32, #tpu.memory_space<smem>>
    %307 = vector.broadcast %306 : f32 to vector<8x128xf32>
    %308 = arith.mulf %87, %307 : vector<8x128xf32>
    %309 = arith.addf %305, %308 : vector<8x128xf32>
    %c117 = arith.constant 117 : index
    %310 = memref.load %arg4[%c117] : memref<128xf32, #tpu.memory_space<smem>>
    %311 = vector.broadcast %310 : f32 to vector<8x128xf32>
    %312 = arith.mulf %99, %311 : vector<8x128xf32>
    %313 = arith.addf %309, %312 : vector<8x128xf32>
    %cst_38 = arith.constant 0.000000e+00 : f32
    %314 = vector.broadcast %cst_38 : f32 to vector<8x128xf32>
    %315 = arith.maximumf %313, %314 : vector<8x128xf32>
    %c6_39 = arith.constant 6 : index
    %316 = memref.load %arg4[%c6_39] : memref<128xf32, #tpu.memory_space<smem>>
    %317 = vector.broadcast %316 : f32 to vector<8x128xf32>
    %318 = arith.mulf %15, %317 : vector<8x128xf32>
    %c6_40 = arith.constant 6 : index
    %319 = memref.load %arg5[%c6_40] : memref<16xf32, #tpu.memory_space<smem>>
    %320 = vector.broadcast %319 : f32 to vector<8x128xf32>
    %321 = arith.addf %318, %320 : vector<8x128xf32>
    %c22 = arith.constant 22 : index
    %322 = memref.load %arg4[%c22] : memref<128xf32, #tpu.memory_space<smem>>
    %323 = vector.broadcast %322 : f32 to vector<8x128xf32>
    %324 = arith.mulf %27, %323 : vector<8x128xf32>
    %325 = arith.addf %321, %324 : vector<8x128xf32>
    %c38 = arith.constant 38 : index
    %326 = memref.load %arg4[%c38] : memref<128xf32, #tpu.memory_space<smem>>
    %327 = vector.broadcast %326 : f32 to vector<8x128xf32>
    %328 = arith.mulf %39, %327 : vector<8x128xf32>
    %329 = arith.addf %325, %328 : vector<8x128xf32>
    %c54 = arith.constant 54 : index
    %330 = memref.load %arg4[%c54] : memref<128xf32, #tpu.memory_space<smem>>
    %331 = vector.broadcast %330 : f32 to vector<8x128xf32>
    %332 = arith.mulf %51, %331 : vector<8x128xf32>
    %333 = arith.addf %329, %332 : vector<8x128xf32>
    %c70 = arith.constant 70 : index
    %334 = memref.load %arg4[%c70] : memref<128xf32, #tpu.memory_space<smem>>
    %335 = vector.broadcast %334 : f32 to vector<8x128xf32>
    %336 = arith.mulf %63, %335 : vector<8x128xf32>
    %337 = arith.addf %333, %336 : vector<8x128xf32>
    %c86 = arith.constant 86 : index
    %338 = memref.load %arg4[%c86] : memref<128xf32, #tpu.memory_space<smem>>
    %339 = vector.broadcast %338 : f32 to vector<8x128xf32>
    %340 = arith.mulf %75, %339 : vector<8x128xf32>
    %341 = arith.addf %337, %340 : vector<8x128xf32>
    %c102 = arith.constant 102 : index
    %342 = memref.load %arg4[%c102] : memref<128xf32, #tpu.memory_space<smem>>
    %343 = vector.broadcast %342 : f32 to vector<8x128xf32>
    %344 = arith.mulf %87, %343 : vector<8x128xf32>
    %345 = arith.addf %341, %344 : vector<8x128xf32>
    %c118 = arith.constant 118 : index
    %346 = memref.load %arg4[%c118] : memref<128xf32, #tpu.memory_space<smem>>
    %347 = vector.broadcast %346 : f32 to vector<8x128xf32>
    %348 = arith.mulf %99, %347 : vector<8x128xf32>
    %349 = arith.addf %345, %348 : vector<8x128xf32>
    %cst_41 = arith.constant 0.000000e+00 : f32
    %350 = vector.broadcast %cst_41 : f32 to vector<8x128xf32>
    %351 = arith.maximumf %349, %350 : vector<8x128xf32>
    %c7_42 = arith.constant 7 : index
    %352 = memref.load %arg4[%c7_42] : memref<128xf32, #tpu.memory_space<smem>>
    %353 = vector.broadcast %352 : f32 to vector<8x128xf32>
    %354 = arith.mulf %15, %353 : vector<8x128xf32>
    %c7_43 = arith.constant 7 : index
    %355 = memref.load %arg5[%c7_43] : memref<16xf32, #tpu.memory_space<smem>>
    %356 = vector.broadcast %355 : f32 to vector<8x128xf32>
    %357 = arith.addf %354, %356 : vector<8x128xf32>
    %c23 = arith.constant 23 : index
    %358 = memref.load %arg4[%c23] : memref<128xf32, #tpu.memory_space<smem>>
    %359 = vector.broadcast %358 : f32 to vector<8x128xf32>
    %360 = arith.mulf %27, %359 : vector<8x128xf32>
    %361 = arith.addf %357, %360 : vector<8x128xf32>
    %c39 = arith.constant 39 : index
    %362 = memref.load %arg4[%c39] : memref<128xf32, #tpu.memory_space<smem>>
    %363 = vector.broadcast %362 : f32 to vector<8x128xf32>
    %364 = arith.mulf %39, %363 : vector<8x128xf32>
    %365 = arith.addf %361, %364 : vector<8x128xf32>
    %c55 = arith.constant 55 : index
    %366 = memref.load %arg4[%c55] : memref<128xf32, #tpu.memory_space<smem>>
    %367 = vector.broadcast %366 : f32 to vector<8x128xf32>
    %368 = arith.mulf %51, %367 : vector<8x128xf32>
    %369 = arith.addf %365, %368 : vector<8x128xf32>
    %c71 = arith.constant 71 : index
    %370 = memref.load %arg4[%c71] : memref<128xf32, #tpu.memory_space<smem>>
    %371 = vector.broadcast %370 : f32 to vector<8x128xf32>
    %372 = arith.mulf %63, %371 : vector<8x128xf32>
    %373 = arith.addf %369, %372 : vector<8x128xf32>
    %c87 = arith.constant 87 : index
    %374 = memref.load %arg4[%c87] : memref<128xf32, #tpu.memory_space<smem>>
    %375 = vector.broadcast %374 : f32 to vector<8x128xf32>
    %376 = arith.mulf %75, %375 : vector<8x128xf32>
    %377 = arith.addf %373, %376 : vector<8x128xf32>
    %c103 = arith.constant 103 : index
    %378 = memref.load %arg4[%c103] : memref<128xf32, #tpu.memory_space<smem>>
    %379 = vector.broadcast %378 : f32 to vector<8x128xf32>
    %380 = arith.mulf %87, %379 : vector<8x128xf32>
    %381 = arith.addf %377, %380 : vector<8x128xf32>
    %c119 = arith.constant 119 : index
    %382 = memref.load %arg4[%c119] : memref<128xf32, #tpu.memory_space<smem>>
    %383 = vector.broadcast %382 : f32 to vector<8x128xf32>
    %384 = arith.mulf %99, %383 : vector<8x128xf32>
    %385 = arith.addf %381, %384 : vector<8x128xf32>
    %cst_44 = arith.constant 0.000000e+00 : f32
    %386 = vector.broadcast %cst_44 : f32 to vector<8x128xf32>
    %387 = arith.maximumf %385, %386 : vector<8x128xf32>
    %c8_45 = arith.constant 8 : index
    %388 = memref.load %arg4[%c8_45] : memref<128xf32, #tpu.memory_space<smem>>
    %389 = vector.broadcast %388 : f32 to vector<8x128xf32>
    %390 = arith.mulf %15, %389 : vector<8x128xf32>
    %c8_46 = arith.constant 8 : index
    %391 = memref.load %arg5[%c8_46] : memref<16xf32, #tpu.memory_space<smem>>
    %392 = vector.broadcast %391 : f32 to vector<8x128xf32>
    %393 = arith.addf %390, %392 : vector<8x128xf32>
    %c24 = arith.constant 24 : index
    %394 = memref.load %arg4[%c24] : memref<128xf32, #tpu.memory_space<smem>>
    %395 = vector.broadcast %394 : f32 to vector<8x128xf32>
    %396 = arith.mulf %27, %395 : vector<8x128xf32>
    %397 = arith.addf %393, %396 : vector<8x128xf32>
    %c40 = arith.constant 40 : index
    %398 = memref.load %arg4[%c40] : memref<128xf32, #tpu.memory_space<smem>>
    %399 = vector.broadcast %398 : f32 to vector<8x128xf32>
    %400 = arith.mulf %39, %399 : vector<8x128xf32>
    %401 = arith.addf %397, %400 : vector<8x128xf32>
    %c56 = arith.constant 56 : index
    %402 = memref.load %arg4[%c56] : memref<128xf32, #tpu.memory_space<smem>>
    %403 = vector.broadcast %402 : f32 to vector<8x128xf32>
    %404 = arith.mulf %51, %403 : vector<8x128xf32>
    %405 = arith.addf %401, %404 : vector<8x128xf32>
    %c72 = arith.constant 72 : index
    %406 = memref.load %arg4[%c72] : memref<128xf32, #tpu.memory_space<smem>>
    %407 = vector.broadcast %406 : f32 to vector<8x128xf32>
    %408 = arith.mulf %63, %407 : vector<8x128xf32>
    %409 = arith.addf %405, %408 : vector<8x128xf32>
    %c88 = arith.constant 88 : index
    %410 = memref.load %arg4[%c88] : memref<128xf32, #tpu.memory_space<smem>>
    %411 = vector.broadcast %410 : f32 to vector<8x128xf32>
    %412 = arith.mulf %75, %411 : vector<8x128xf32>
    %413 = arith.addf %409, %412 : vector<8x128xf32>
    %c104 = arith.constant 104 : index
    %414 = memref.load %arg4[%c104] : memref<128xf32, #tpu.memory_space<smem>>
    %415 = vector.broadcast %414 : f32 to vector<8x128xf32>
    %416 = arith.mulf %87, %415 : vector<8x128xf32>
    %417 = arith.addf %413, %416 : vector<8x128xf32>
    %c120 = arith.constant 120 : index
    %418 = memref.load %arg4[%c120] : memref<128xf32, #tpu.memory_space<smem>>
    %419 = vector.broadcast %418 : f32 to vector<8x128xf32>
    %420 = arith.mulf %99, %419 : vector<8x128xf32>
    %421 = arith.addf %417, %420 : vector<8x128xf32>
    %cst_47 = arith.constant 0.000000e+00 : f32
    %422 = vector.broadcast %cst_47 : f32 to vector<8x128xf32>
    %423 = arith.maximumf %421, %422 : vector<8x128xf32>
    %c9_48 = arith.constant 9 : index
    %424 = memref.load %arg4[%c9_48] : memref<128xf32, #tpu.memory_space<smem>>
    %425 = vector.broadcast %424 : f32 to vector<8x128xf32>
    %426 = arith.mulf %15, %425 : vector<8x128xf32>
    %c9_49 = arith.constant 9 : index
    %427 = memref.load %arg5[%c9_49] : memref<16xf32, #tpu.memory_space<smem>>
    %428 = vector.broadcast %427 : f32 to vector<8x128xf32>
    %429 = arith.addf %426, %428 : vector<8x128xf32>
    %c25 = arith.constant 25 : index
    %430 = memref.load %arg4[%c25] : memref<128xf32, #tpu.memory_space<smem>>
    %431 = vector.broadcast %430 : f32 to vector<8x128xf32>
    %432 = arith.mulf %27, %431 : vector<8x128xf32>
    %433 = arith.addf %429, %432 : vector<8x128xf32>
    %c41 = arith.constant 41 : index
    %434 = memref.load %arg4[%c41] : memref<128xf32, #tpu.memory_space<smem>>
    %435 = vector.broadcast %434 : f32 to vector<8x128xf32>
    %436 = arith.mulf %39, %435 : vector<8x128xf32>
    %437 = arith.addf %433, %436 : vector<8x128xf32>
    %c57 = arith.constant 57 : index
    %438 = memref.load %arg4[%c57] : memref<128xf32, #tpu.memory_space<smem>>
    %439 = vector.broadcast %438 : f32 to vector<8x128xf32>
    %440 = arith.mulf %51, %439 : vector<8x128xf32>
    %441 = arith.addf %437, %440 : vector<8x128xf32>
    %c73 = arith.constant 73 : index
    %442 = memref.load %arg4[%c73] : memref<128xf32, #tpu.memory_space<smem>>
    %443 = vector.broadcast %442 : f32 to vector<8x128xf32>
    %444 = arith.mulf %63, %443 : vector<8x128xf32>
    %445 = arith.addf %441, %444 : vector<8x128xf32>
    %c89 = arith.constant 89 : index
    %446 = memref.load %arg4[%c89] : memref<128xf32, #tpu.memory_space<smem>>
    %447 = vector.broadcast %446 : f32 to vector<8x128xf32>
    %448 = arith.mulf %75, %447 : vector<8x128xf32>
    %449 = arith.addf %445, %448 : vector<8x128xf32>
    %c105 = arith.constant 105 : index
    %450 = memref.load %arg4[%c105] : memref<128xf32, #tpu.memory_space<smem>>
    %451 = vector.broadcast %450 : f32 to vector<8x128xf32>
    %452 = arith.mulf %87, %451 : vector<8x128xf32>
    %453 = arith.addf %449, %452 : vector<8x128xf32>
    %c121 = arith.constant 121 : index
    %454 = memref.load %arg4[%c121] : memref<128xf32, #tpu.memory_space<smem>>
    %455 = vector.broadcast %454 : f32 to vector<8x128xf32>
    %456 = arith.mulf %99, %455 : vector<8x128xf32>
    %457 = arith.addf %453, %456 : vector<8x128xf32>
    %cst_50 = arith.constant 0.000000e+00 : f32
    %458 = vector.broadcast %cst_50 : f32 to vector<8x128xf32>
    %459 = arith.maximumf %457, %458 : vector<8x128xf32>
    %c10_51 = arith.constant 10 : index
    %460 = memref.load %arg4[%c10_51] : memref<128xf32, #tpu.memory_space<smem>>
    %461 = vector.broadcast %460 : f32 to vector<8x128xf32>
    %462 = arith.mulf %15, %461 : vector<8x128xf32>
    %c10_52 = arith.constant 10 : index
    %463 = memref.load %arg5[%c10_52] : memref<16xf32, #tpu.memory_space<smem>>
    %464 = vector.broadcast %463 : f32 to vector<8x128xf32>
    %465 = arith.addf %462, %464 : vector<8x128xf32>
    %c26 = arith.constant 26 : index
    %466 = memref.load %arg4[%c26] : memref<128xf32, #tpu.memory_space<smem>>
    %467 = vector.broadcast %466 : f32 to vector<8x128xf32>
    %468 = arith.mulf %27, %467 : vector<8x128xf32>
    %469 = arith.addf %465, %468 : vector<8x128xf32>
    %c42 = arith.constant 42 : index
    %470 = memref.load %arg4[%c42] : memref<128xf32, #tpu.memory_space<smem>>
    %471 = vector.broadcast %470 : f32 to vector<8x128xf32>
    %472 = arith.mulf %39, %471 : vector<8x128xf32>
    %473 = arith.addf %469, %472 : vector<8x128xf32>
    %c58 = arith.constant 58 : index
    %474 = memref.load %arg4[%c58] : memref<128xf32, #tpu.memory_space<smem>>
    %475 = vector.broadcast %474 : f32 to vector<8x128xf32>
    %476 = arith.mulf %51, %475 : vector<8x128xf32>
    %477 = arith.addf %473, %476 : vector<8x128xf32>
    %c74 = arith.constant 74 : index
    %478 = memref.load %arg4[%c74] : memref<128xf32, #tpu.memory_space<smem>>
    %479 = vector.broadcast %478 : f32 to vector<8x128xf32>
    %480 = arith.mulf %63, %479 : vector<8x128xf32>
    %481 = arith.addf %477, %480 : vector<8x128xf32>
    %c90 = arith.constant 90 : index
    %482 = memref.load %arg4[%c90] : memref<128xf32, #tpu.memory_space<smem>>
    %483 = vector.broadcast %482 : f32 to vector<8x128xf32>
    %484 = arith.mulf %75, %483 : vector<8x128xf32>
    %485 = arith.addf %481, %484 : vector<8x128xf32>
    %c106 = arith.constant 106 : index
    %486 = memref.load %arg4[%c106] : memref<128xf32, #tpu.memory_space<smem>>
    %487 = vector.broadcast %486 : f32 to vector<8x128xf32>
    %488 = arith.mulf %87, %487 : vector<8x128xf32>
    %489 = arith.addf %485, %488 : vector<8x128xf32>
    %c122 = arith.constant 122 : index
    %490 = memref.load %arg4[%c122] : memref<128xf32, #tpu.memory_space<smem>>
    %491 = vector.broadcast %490 : f32 to vector<8x128xf32>
    %492 = arith.mulf %99, %491 : vector<8x128xf32>
    %493 = arith.addf %489, %492 : vector<8x128xf32>
    %cst_53 = arith.constant 0.000000e+00 : f32
    %494 = vector.broadcast %cst_53 : f32 to vector<8x128xf32>
    %495 = arith.maximumf %493, %494 : vector<8x128xf32>
    %c11_54 = arith.constant 11 : index
    %496 = memref.load %arg4[%c11_54] : memref<128xf32, #tpu.memory_space<smem>>
    %497 = vector.broadcast %496 : f32 to vector<8x128xf32>
    %498 = arith.mulf %15, %497 : vector<8x128xf32>
    %c11_55 = arith.constant 11 : index
    %499 = memref.load %arg5[%c11_55] : memref<16xf32, #tpu.memory_space<smem>>
    %500 = vector.broadcast %499 : f32 to vector<8x128xf32>
    %501 = arith.addf %498, %500 : vector<8x128xf32>
    %c27 = arith.constant 27 : index
    %502 = memref.load %arg4[%c27] : memref<128xf32, #tpu.memory_space<smem>>
    %503 = vector.broadcast %502 : f32 to vector<8x128xf32>
    %504 = arith.mulf %27, %503 : vector<8x128xf32>
    %505 = arith.addf %501, %504 : vector<8x128xf32>
    %c43 = arith.constant 43 : index
    %506 = memref.load %arg4[%c43] : memref<128xf32, #tpu.memory_space<smem>>
    %507 = vector.broadcast %506 : f32 to vector<8x128xf32>
    %508 = arith.mulf %39, %507 : vector<8x128xf32>
    %509 = arith.addf %505, %508 : vector<8x128xf32>
    %c59 = arith.constant 59 : index
    %510 = memref.load %arg4[%c59] : memref<128xf32, #tpu.memory_space<smem>>
    %511 = vector.broadcast %510 : f32 to vector<8x128xf32>
    %512 = arith.mulf %51, %511 : vector<8x128xf32>
    %513 = arith.addf %509, %512 : vector<8x128xf32>
    %c75 = arith.constant 75 : index
    %514 = memref.load %arg4[%c75] : memref<128xf32, #tpu.memory_space<smem>>
    %515 = vector.broadcast %514 : f32 to vector<8x128xf32>
    %516 = arith.mulf %63, %515 : vector<8x128xf32>
    %517 = arith.addf %513, %516 : vector<8x128xf32>
    %c91 = arith.constant 91 : index
    %518 = memref.load %arg4[%c91] : memref<128xf32, #tpu.memory_space<smem>>
    %519 = vector.broadcast %518 : f32 to vector<8x128xf32>
    %520 = arith.mulf %75, %519 : vector<8x128xf32>
    %521 = arith.addf %517, %520 : vector<8x128xf32>
    %c107 = arith.constant 107 : index
    %522 = memref.load %arg4[%c107] : memref<128xf32, #tpu.memory_space<smem>>
    %523 = vector.broadcast %522 : f32 to vector<8x128xf32>
    %524 = arith.mulf %87, %523 : vector<8x128xf32>
    %525 = arith.addf %521, %524 : vector<8x128xf32>
    %c123 = arith.constant 123 : index
    %526 = memref.load %arg4[%c123] : memref<128xf32, #tpu.memory_space<smem>>
    %527 = vector.broadcast %526 : f32 to vector<8x128xf32>
    %528 = arith.mulf %99, %527 : vector<8x128xf32>
    %529 = arith.addf %525, %528 : vector<8x128xf32>
    %cst_56 = arith.constant 0.000000e+00 : f32
    %530 = vector.broadcast %cst_56 : f32 to vector<8x128xf32>
    %531 = arith.maximumf %529, %530 : vector<8x128xf32>
    %c12_57 = arith.constant 12 : index
    %532 = memref.load %arg4[%c12_57] : memref<128xf32, #tpu.memory_space<smem>>
    %533 = vector.broadcast %532 : f32 to vector<8x128xf32>
    %534 = arith.mulf %15, %533 : vector<8x128xf32>
    %c12_58 = arith.constant 12 : index
    %535 = memref.load %arg5[%c12_58] : memref<16xf32, #tpu.memory_space<smem>>
    %536 = vector.broadcast %535 : f32 to vector<8x128xf32>
    %537 = arith.addf %534, %536 : vector<8x128xf32>
    %c28 = arith.constant 28 : index
    %538 = memref.load %arg4[%c28] : memref<128xf32, #tpu.memory_space<smem>>
    %539 = vector.broadcast %538 : f32 to vector<8x128xf32>
    %540 = arith.mulf %27, %539 : vector<8x128xf32>
    %541 = arith.addf %537, %540 : vector<8x128xf32>
    %c44 = arith.constant 44 : index
    %542 = memref.load %arg4[%c44] : memref<128xf32, #tpu.memory_space<smem>>
    %543 = vector.broadcast %542 : f32 to vector<8x128xf32>
    %544 = arith.mulf %39, %543 : vector<8x128xf32>
    %545 = arith.addf %541, %544 : vector<8x128xf32>
    %c60 = arith.constant 60 : index
    %546 = memref.load %arg4[%c60] : memref<128xf32, #tpu.memory_space<smem>>
    %547 = vector.broadcast %546 : f32 to vector<8x128xf32>
    %548 = arith.mulf %51, %547 : vector<8x128xf32>
    %549 = arith.addf %545, %548 : vector<8x128xf32>
    %c76 = arith.constant 76 : index
    %550 = memref.load %arg4[%c76] : memref<128xf32, #tpu.memory_space<smem>>
    %551 = vector.broadcast %550 : f32 to vector<8x128xf32>
    %552 = arith.mulf %63, %551 : vector<8x128xf32>
    %553 = arith.addf %549, %552 : vector<8x128xf32>
    %c92 = arith.constant 92 : index
    %554 = memref.load %arg4[%c92] : memref<128xf32, #tpu.memory_space<smem>>
    %555 = vector.broadcast %554 : f32 to vector<8x128xf32>
    %556 = arith.mulf %75, %555 : vector<8x128xf32>
    %557 = arith.addf %553, %556 : vector<8x128xf32>
    %c108 = arith.constant 108 : index
    %558 = memref.load %arg4[%c108] : memref<128xf32, #tpu.memory_space<smem>>
    %559 = vector.broadcast %558 : f32 to vector<8x128xf32>
    %560 = arith.mulf %87, %559 : vector<8x128xf32>
    %561 = arith.addf %557, %560 : vector<8x128xf32>
    %c124 = arith.constant 124 : index
    %562 = memref.load %arg4[%c124] : memref<128xf32, #tpu.memory_space<smem>>
    %563 = vector.broadcast %562 : f32 to vector<8x128xf32>
    %564 = arith.mulf %99, %563 : vector<8x128xf32>
    %565 = arith.addf %561, %564 : vector<8x128xf32>
    %cst_59 = arith.constant 0.000000e+00 : f32
    %566 = vector.broadcast %cst_59 : f32 to vector<8x128xf32>
    %567 = arith.maximumf %565, %566 : vector<8x128xf32>
    %c13_60 = arith.constant 13 : index
    %568 = memref.load %arg4[%c13_60] : memref<128xf32, #tpu.memory_space<smem>>
    %569 = vector.broadcast %568 : f32 to vector<8x128xf32>
    %570 = arith.mulf %15, %569 : vector<8x128xf32>
    %c13_61 = arith.constant 13 : index
    %571 = memref.load %arg5[%c13_61] : memref<16xf32, #tpu.memory_space<smem>>
    %572 = vector.broadcast %571 : f32 to vector<8x128xf32>
    %573 = arith.addf %570, %572 : vector<8x128xf32>
    %c29 = arith.constant 29 : index
    %574 = memref.load %arg4[%c29] : memref<128xf32, #tpu.memory_space<smem>>
    %575 = vector.broadcast %574 : f32 to vector<8x128xf32>
    %576 = arith.mulf %27, %575 : vector<8x128xf32>
    %577 = arith.addf %573, %576 : vector<8x128xf32>
    %c45 = arith.constant 45 : index
    %578 = memref.load %arg4[%c45] : memref<128xf32, #tpu.memory_space<smem>>
    %579 = vector.broadcast %578 : f32 to vector<8x128xf32>
    %580 = arith.mulf %39, %579 : vector<8x128xf32>
    %581 = arith.addf %577, %580 : vector<8x128xf32>
    %c61 = arith.constant 61 : index
    %582 = memref.load %arg4[%c61] : memref<128xf32, #tpu.memory_space<smem>>
    %583 = vector.broadcast %582 : f32 to vector<8x128xf32>
    %584 = arith.mulf %51, %583 : vector<8x128xf32>
    %585 = arith.addf %581, %584 : vector<8x128xf32>
    %c77 = arith.constant 77 : index
    %586 = memref.load %arg4[%c77] : memref<128xf32, #tpu.memory_space<smem>>
    %587 = vector.broadcast %586 : f32 to vector<8x128xf32>
    %588 = arith.mulf %63, %587 : vector<8x128xf32>
    %589 = arith.addf %585, %588 : vector<8x128xf32>
    %c93 = arith.constant 93 : index
    %590 = memref.load %arg4[%c93] : memref<128xf32, #tpu.memory_space<smem>>
    %591 = vector.broadcast %590 : f32 to vector<8x128xf32>
    %592 = arith.mulf %75, %591 : vector<8x128xf32>
    %593 = arith.addf %589, %592 : vector<8x128xf32>
    %c109 = arith.constant 109 : index
    %594 = memref.load %arg4[%c109] : memref<128xf32, #tpu.memory_space<smem>>
    %595 = vector.broadcast %594 : f32 to vector<8x128xf32>
    %596 = arith.mulf %87, %595 : vector<8x128xf32>
    %597 = arith.addf %593, %596 : vector<8x128xf32>
    %c125 = arith.constant 125 : index
    %598 = memref.load %arg4[%c125] : memref<128xf32, #tpu.memory_space<smem>>
    %599 = vector.broadcast %598 : f32 to vector<8x128xf32>
    %600 = arith.mulf %99, %599 : vector<8x128xf32>
    %601 = arith.addf %597, %600 : vector<8x128xf32>
    %cst_62 = arith.constant 0.000000e+00 : f32
    %602 = vector.broadcast %cst_62 : f32 to vector<8x128xf32>
    %603 = arith.maximumf %601, %602 : vector<8x128xf32>
    %c14_63 = arith.constant 14 : index
    %604 = memref.load %arg4[%c14_63] : memref<128xf32, #tpu.memory_space<smem>>
    %605 = vector.broadcast %604 : f32 to vector<8x128xf32>
    %606 = arith.mulf %15, %605 : vector<8x128xf32>
    %c14_64 = arith.constant 14 : index
    %607 = memref.load %arg5[%c14_64] : memref<16xf32, #tpu.memory_space<smem>>
    %608 = vector.broadcast %607 : f32 to vector<8x128xf32>
    %609 = arith.addf %606, %608 : vector<8x128xf32>
    %c30 = arith.constant 30 : index
    %610 = memref.load %arg4[%c30] : memref<128xf32, #tpu.memory_space<smem>>
    %611 = vector.broadcast %610 : f32 to vector<8x128xf32>
    %612 = arith.mulf %27, %611 : vector<8x128xf32>
    %613 = arith.addf %609, %612 : vector<8x128xf32>
    %c46 = arith.constant 46 : index
    %614 = memref.load %arg4[%c46] : memref<128xf32, #tpu.memory_space<smem>>
    %615 = vector.broadcast %614 : f32 to vector<8x128xf32>
    %616 = arith.mulf %39, %615 : vector<8x128xf32>
    %617 = arith.addf %613, %616 : vector<8x128xf32>
    %c62 = arith.constant 62 : index
    %618 = memref.load %arg4[%c62] : memref<128xf32, #tpu.memory_space<smem>>
    %619 = vector.broadcast %618 : f32 to vector<8x128xf32>
    %620 = arith.mulf %51, %619 : vector<8x128xf32>
    %621 = arith.addf %617, %620 : vector<8x128xf32>
    %c78 = arith.constant 78 : index
    %622 = memref.load %arg4[%c78] : memref<128xf32, #tpu.memory_space<smem>>
    %623 = vector.broadcast %622 : f32 to vector<8x128xf32>
    %624 = arith.mulf %63, %623 : vector<8x128xf32>
    %625 = arith.addf %621, %624 : vector<8x128xf32>
    %c94 = arith.constant 94 : index
    %626 = memref.load %arg4[%c94] : memref<128xf32, #tpu.memory_space<smem>>
    %627 = vector.broadcast %626 : f32 to vector<8x128xf32>
    %628 = arith.mulf %75, %627 : vector<8x128xf32>
    %629 = arith.addf %625, %628 : vector<8x128xf32>
    %c110 = arith.constant 110 : index
    %630 = memref.load %arg4[%c110] : memref<128xf32, #tpu.memory_space<smem>>
    %631 = vector.broadcast %630 : f32 to vector<8x128xf32>
    %632 = arith.mulf %87, %631 : vector<8x128xf32>
    %633 = arith.addf %629, %632 : vector<8x128xf32>
    %c126 = arith.constant 126 : index
    %634 = memref.load %arg4[%c126] : memref<128xf32, #tpu.memory_space<smem>>
    %635 = vector.broadcast %634 : f32 to vector<8x128xf32>
    %636 = arith.mulf %99, %635 : vector<8x128xf32>
    %637 = arith.addf %633, %636 : vector<8x128xf32>
    %cst_65 = arith.constant 0.000000e+00 : f32
    %638 = vector.broadcast %cst_65 : f32 to vector<8x128xf32>
    %639 = arith.maximumf %637, %638 : vector<8x128xf32>
    %c15_66 = arith.constant 15 : index
    %640 = memref.load %arg4[%c15_66] : memref<128xf32, #tpu.memory_space<smem>>
    %641 = vector.broadcast %640 : f32 to vector<8x128xf32>
    %642 = arith.mulf %15, %641 : vector<8x128xf32>
    %c15_67 = arith.constant 15 : index
    %643 = memref.load %arg5[%c15_67] : memref<16xf32, #tpu.memory_space<smem>>
    %644 = vector.broadcast %643 : f32 to vector<8x128xf32>
    %645 = arith.addf %642, %644 : vector<8x128xf32>
    %c31 = arith.constant 31 : index
    %646 = memref.load %arg4[%c31] : memref<128xf32, #tpu.memory_space<smem>>
    %647 = vector.broadcast %646 : f32 to vector<8x128xf32>
    %648 = arith.mulf %27, %647 : vector<8x128xf32>
    %649 = arith.addf %645, %648 : vector<8x128xf32>
    %c47 = arith.constant 47 : index
    %650 = memref.load %arg4[%c47] : memref<128xf32, #tpu.memory_space<smem>>
    %651 = vector.broadcast %650 : f32 to vector<8x128xf32>
    %652 = arith.mulf %39, %651 : vector<8x128xf32>
    %653 = arith.addf %649, %652 : vector<8x128xf32>
    %c63 = arith.constant 63 : index
    %654 = memref.load %arg4[%c63] : memref<128xf32, #tpu.memory_space<smem>>
    %655 = vector.broadcast %654 : f32 to vector<8x128xf32>
    %656 = arith.mulf %51, %655 : vector<8x128xf32>
    %657 = arith.addf %653, %656 : vector<8x128xf32>
    %c79 = arith.constant 79 : index
    %658 = memref.load %arg4[%c79] : memref<128xf32, #tpu.memory_space<smem>>
    %659 = vector.broadcast %658 : f32 to vector<8x128xf32>
    %660 = arith.mulf %63, %659 : vector<8x128xf32>
    %661 = arith.addf %657, %660 : vector<8x128xf32>
    %c95 = arith.constant 95 : index
    %662 = memref.load %arg4[%c95] : memref<128xf32, #tpu.memory_space<smem>>
    %663 = vector.broadcast %662 : f32 to vector<8x128xf32>
    %664 = arith.mulf %75, %663 : vector<8x128xf32>
    %665 = arith.addf %661, %664 : vector<8x128xf32>
    %c111 = arith.constant 111 : index
    %666 = memref.load %arg4[%c111] : memref<128xf32, #tpu.memory_space<smem>>
    %667 = vector.broadcast %666 : f32 to vector<8x128xf32>
    %668 = arith.mulf %87, %667 : vector<8x128xf32>
    %669 = arith.addf %665, %668 : vector<8x128xf32>
    %c127 = arith.constant 127 : index
    %670 = memref.load %arg4[%c127] : memref<128xf32, #tpu.memory_space<smem>>
    %671 = vector.broadcast %670 : f32 to vector<8x128xf32>
    %672 = arith.mulf %99, %671 : vector<8x128xf32>
    %673 = arith.addf %669, %672 : vector<8x128xf32>
    %cst_68 = arith.constant 0.000000e+00 : f32
    %674 = vector.broadcast %cst_68 : f32 to vector<8x128xf32>
    %675 = arith.maximumf %673, %674 : vector<8x128xf32>
    %c0_69 = arith.constant 0 : index
    %676 = memref.load %arg6[%c0_69] : memref<128xf32, #tpu.memory_space<smem>>
    %677 = vector.broadcast %676 : f32 to vector<8x128xf32>
    %678 = arith.mulf %135, %677 : vector<8x128xf32>
    %c0_70 = arith.constant 0 : index
    %679 = memref.load %arg7[%c0_70] : memref<8xf32, #tpu.memory_space<smem>>
    %680 = vector.broadcast %679 : f32 to vector<8x128xf32>
    %681 = arith.addf %678, %680 : vector<8x128xf32>
    %c8_71 = arith.constant 8 : index
    %682 = memref.load %arg6[%c8_71] : memref<128xf32, #tpu.memory_space<smem>>
    %683 = vector.broadcast %682 : f32 to vector<8x128xf32>
    %684 = arith.mulf %171, %683 : vector<8x128xf32>
    %685 = arith.addf %681, %684 : vector<8x128xf32>
    %c16_72 = arith.constant 16 : index
    %686 = memref.load %arg6[%c16_72] : memref<128xf32, #tpu.memory_space<smem>>
    %687 = vector.broadcast %686 : f32 to vector<8x128xf32>
    %688 = arith.mulf %207, %687 : vector<8x128xf32>
    %689 = arith.addf %685, %688 : vector<8x128xf32>
    %c24_73 = arith.constant 24 : index
    %690 = memref.load %arg6[%c24_73] : memref<128xf32, #tpu.memory_space<smem>>
    %691 = vector.broadcast %690 : f32 to vector<8x128xf32>
    %692 = arith.mulf %243, %691 : vector<8x128xf32>
    %693 = arith.addf %689, %692 : vector<8x128xf32>
    %c32_74 = arith.constant 32 : index
    %694 = memref.load %arg6[%c32_74] : memref<128xf32, #tpu.memory_space<smem>>
    %695 = vector.broadcast %694 : f32 to vector<8x128xf32>
    %696 = arith.mulf %279, %695 : vector<8x128xf32>
    %697 = arith.addf %693, %696 : vector<8x128xf32>
    %c40_75 = arith.constant 40 : index
    %698 = memref.load %arg6[%c40_75] : memref<128xf32, #tpu.memory_space<smem>>
    %699 = vector.broadcast %698 : f32 to vector<8x128xf32>
    %700 = arith.mulf %315, %699 : vector<8x128xf32>
    %701 = arith.addf %697, %700 : vector<8x128xf32>
    %c48_76 = arith.constant 48 : index
    %702 = memref.load %arg6[%c48_76] : memref<128xf32, #tpu.memory_space<smem>>
    %703 = vector.broadcast %702 : f32 to vector<8x128xf32>
    %704 = arith.mulf %351, %703 : vector<8x128xf32>
    %705 = arith.addf %701, %704 : vector<8x128xf32>
    %c56_77 = arith.constant 56 : index
    %706 = memref.load %arg6[%c56_77] : memref<128xf32, #tpu.memory_space<smem>>
    %707 = vector.broadcast %706 : f32 to vector<8x128xf32>
    %708 = arith.mulf %387, %707 : vector<8x128xf32>
    %709 = arith.addf %705, %708 : vector<8x128xf32>
    %c64_78 = arith.constant 64 : index
    %710 = memref.load %arg6[%c64_78] : memref<128xf32, #tpu.memory_space<smem>>
    %711 = vector.broadcast %710 : f32 to vector<8x128xf32>
    %712 = arith.mulf %423, %711 : vector<8x128xf32>
    %713 = arith.addf %709, %712 : vector<8x128xf32>
    %c72_79 = arith.constant 72 : index
    %714 = memref.load %arg6[%c72_79] : memref<128xf32, #tpu.memory_space<smem>>
    %715 = vector.broadcast %714 : f32 to vector<8x128xf32>
    %716 = arith.mulf %459, %715 : vector<8x128xf32>
    %717 = arith.addf %713, %716 : vector<8x128xf32>
    %c80_80 = arith.constant 80 : index
    %718 = memref.load %arg6[%c80_80] : memref<128xf32, #tpu.memory_space<smem>>
    %719 = vector.broadcast %718 : f32 to vector<8x128xf32>
    %720 = arith.mulf %495, %719 : vector<8x128xf32>
    %721 = arith.addf %717, %720 : vector<8x128xf32>
    %c88_81 = arith.constant 88 : index
    %722 = memref.load %arg6[%c88_81] : memref<128xf32, #tpu.memory_space<smem>>
    %723 = vector.broadcast %722 : f32 to vector<8x128xf32>
    %724 = arith.mulf %531, %723 : vector<8x128xf32>
    %725 = arith.addf %721, %724 : vector<8x128xf32>
    %c96_82 = arith.constant 96 : index
    %726 = memref.load %arg6[%c96_82] : memref<128xf32, #tpu.memory_space<smem>>
    %727 = vector.broadcast %726 : f32 to vector<8x128xf32>
    %728 = arith.mulf %567, %727 : vector<8x128xf32>
    %729 = arith.addf %725, %728 : vector<8x128xf32>
    %c104_83 = arith.constant 104 : index
    %730 = memref.load %arg6[%c104_83] : memref<128xf32, #tpu.memory_space<smem>>
    %731 = vector.broadcast %730 : f32 to vector<8x128xf32>
    %732 = arith.mulf %603, %731 : vector<8x128xf32>
    %733 = arith.addf %729, %732 : vector<8x128xf32>
    %c112_84 = arith.constant 112 : index
    %734 = memref.load %arg6[%c112_84] : memref<128xf32, #tpu.memory_space<smem>>
    %735 = vector.broadcast %734 : f32 to vector<8x128xf32>
    %736 = arith.mulf %639, %735 : vector<8x128xf32>
    %737 = arith.addf %733, %736 : vector<8x128xf32>
    %c120_85 = arith.constant 120 : index
    %738 = memref.load %arg6[%c120_85] : memref<128xf32, #tpu.memory_space<smem>>
    %739 = vector.broadcast %738 : f32 to vector<8x128xf32>
    %740 = arith.mulf %675, %739 : vector<8x128xf32>
    %741 = arith.addf %737, %740 : vector<8x128xf32>
    %cst_86 = arith.constant 0.000000e+00 : f32
    %742 = vector.broadcast %cst_86 : f32 to vector<8x128xf32>
    %743 = arith.maximumf %741, %742 : vector<8x128xf32>
    %c1_87 = arith.constant 1 : index
    %744 = memref.load %arg6[%c1_87] : memref<128xf32, #tpu.memory_space<smem>>
    %745 = vector.broadcast %744 : f32 to vector<8x128xf32>
    %746 = arith.mulf %135, %745 : vector<8x128xf32>
    %c1_88 = arith.constant 1 : index
    %747 = memref.load %arg7[%c1_88] : memref<8xf32, #tpu.memory_space<smem>>
    %748 = vector.broadcast %747 : f32 to vector<8x128xf32>
    %749 = arith.addf %746, %748 : vector<8x128xf32>
    %c9_89 = arith.constant 9 : index
    %750 = memref.load %arg6[%c9_89] : memref<128xf32, #tpu.memory_space<smem>>
    %751 = vector.broadcast %750 : f32 to vector<8x128xf32>
    %752 = arith.mulf %171, %751 : vector<8x128xf32>
    %753 = arith.addf %749, %752 : vector<8x128xf32>
    %c17_90 = arith.constant 17 : index
    %754 = memref.load %arg6[%c17_90] : memref<128xf32, #tpu.memory_space<smem>>
    %755 = vector.broadcast %754 : f32 to vector<8x128xf32>
    %756 = arith.mulf %207, %755 : vector<8x128xf32>
    %757 = arith.addf %753, %756 : vector<8x128xf32>
    %c25_91 = arith.constant 25 : index
    %758 = memref.load %arg6[%c25_91] : memref<128xf32, #tpu.memory_space<smem>>
    %759 = vector.broadcast %758 : f32 to vector<8x128xf32>
    %760 = arith.mulf %243, %759 : vector<8x128xf32>
    %761 = arith.addf %757, %760 : vector<8x128xf32>
    %c33_92 = arith.constant 33 : index
    %762 = memref.load %arg6[%c33_92] : memref<128xf32, #tpu.memory_space<smem>>
    %763 = vector.broadcast %762 : f32 to vector<8x128xf32>
    %764 = arith.mulf %279, %763 : vector<8x128xf32>
    %765 = arith.addf %761, %764 : vector<8x128xf32>
    %c41_93 = arith.constant 41 : index
    %766 = memref.load %arg6[%c41_93] : memref<128xf32, #tpu.memory_space<smem>>
    %767 = vector.broadcast %766 : f32 to vector<8x128xf32>
    %768 = arith.mulf %315, %767 : vector<8x128xf32>
    %769 = arith.addf %765, %768 : vector<8x128xf32>
    %c49_94 = arith.constant 49 : index
    %770 = memref.load %arg6[%c49_94] : memref<128xf32, #tpu.memory_space<smem>>
    %771 = vector.broadcast %770 : f32 to vector<8x128xf32>
    %772 = arith.mulf %351, %771 : vector<8x128xf32>
    %773 = arith.addf %769, %772 : vector<8x128xf32>
    %c57_95 = arith.constant 57 : index
    %774 = memref.load %arg6[%c57_95] : memref<128xf32, #tpu.memory_space<smem>>
    %775 = vector.broadcast %774 : f32 to vector<8x128xf32>
    %776 = arith.mulf %387, %775 : vector<8x128xf32>
    %777 = arith.addf %773, %776 : vector<8x128xf32>
    %c65_96 = arith.constant 65 : index
    %778 = memref.load %arg6[%c65_96] : memref<128xf32, #tpu.memory_space<smem>>
    %779 = vector.broadcast %778 : f32 to vector<8x128xf32>
    %780 = arith.mulf %423, %779 : vector<8x128xf32>
    %781 = arith.addf %777, %780 : vector<8x128xf32>
    %c73_97 = arith.constant 73 : index
    %782 = memref.load %arg6[%c73_97] : memref<128xf32, #tpu.memory_space<smem>>
    %783 = vector.broadcast %782 : f32 to vector<8x128xf32>
    %784 = arith.mulf %459, %783 : vector<8x128xf32>
    %785 = arith.addf %781, %784 : vector<8x128xf32>
    %c81_98 = arith.constant 81 : index
    %786 = memref.load %arg6[%c81_98] : memref<128xf32, #tpu.memory_space<smem>>
    %787 = vector.broadcast %786 : f32 to vector<8x128xf32>
    %788 = arith.mulf %495, %787 : vector<8x128xf32>
    %789 = arith.addf %785, %788 : vector<8x128xf32>
    %c89_99 = arith.constant 89 : index
    %790 = memref.load %arg6[%c89_99] : memref<128xf32, #tpu.memory_space<smem>>
    %791 = vector.broadcast %790 : f32 to vector<8x128xf32>
    %792 = arith.mulf %531, %791 : vector<8x128xf32>
    %793 = arith.addf %789, %792 : vector<8x128xf32>
    %c97_100 = arith.constant 97 : index
    %794 = memref.load %arg6[%c97_100] : memref<128xf32, #tpu.memory_space<smem>>
    %795 = vector.broadcast %794 : f32 to vector<8x128xf32>
    %796 = arith.mulf %567, %795 : vector<8x128xf32>
    %797 = arith.addf %793, %796 : vector<8x128xf32>
    %c105_101 = arith.constant 105 : index
    %798 = memref.load %arg6[%c105_101] : memref<128xf32, #tpu.memory_space<smem>>
    %799 = vector.broadcast %798 : f32 to vector<8x128xf32>
    %800 = arith.mulf %603, %799 : vector<8x128xf32>
    %801 = arith.addf %797, %800 : vector<8x128xf32>
    %c113_102 = arith.constant 113 : index
    %802 = memref.load %arg6[%c113_102] : memref<128xf32, #tpu.memory_space<smem>>
    %803 = vector.broadcast %802 : f32 to vector<8x128xf32>
    %804 = arith.mulf %639, %803 : vector<8x128xf32>
    %805 = arith.addf %801, %804 : vector<8x128xf32>
    %c121_103 = arith.constant 121 : index
    %806 = memref.load %arg6[%c121_103] : memref<128xf32, #tpu.memory_space<smem>>
    %807 = vector.broadcast %806 : f32 to vector<8x128xf32>
    %808 = arith.mulf %675, %807 : vector<8x128xf32>
    %809 = arith.addf %805, %808 : vector<8x128xf32>
    %cst_104 = arith.constant 0.000000e+00 : f32
    %810 = vector.broadcast %cst_104 : f32 to vector<8x128xf32>
    %811 = arith.maximumf %809, %810 : vector<8x128xf32>
    %c2_105 = arith.constant 2 : index
    %812 = memref.load %arg6[%c2_105] : memref<128xf32, #tpu.memory_space<smem>>
    %813 = vector.broadcast %812 : f32 to vector<8x128xf32>
    %814 = arith.mulf %135, %813 : vector<8x128xf32>
    %c2_106 = arith.constant 2 : index
    %815 = memref.load %arg7[%c2_106] : memref<8xf32, #tpu.memory_space<smem>>
    %816 = vector.broadcast %815 : f32 to vector<8x128xf32>
    %817 = arith.addf %814, %816 : vector<8x128xf32>
    %c10_107 = arith.constant 10 : index
    %818 = memref.load %arg6[%c10_107] : memref<128xf32, #tpu.memory_space<smem>>
    %819 = vector.broadcast %818 : f32 to vector<8x128xf32>
    %820 = arith.mulf %171, %819 : vector<8x128xf32>
    %821 = arith.addf %817, %820 : vector<8x128xf32>
    %c18_108 = arith.constant 18 : index
    %822 = memref.load %arg6[%c18_108] : memref<128xf32, #tpu.memory_space<smem>>
    %823 = vector.broadcast %822 : f32 to vector<8x128xf32>
    %824 = arith.mulf %207, %823 : vector<8x128xf32>
    %825 = arith.addf %821, %824 : vector<8x128xf32>
    %c26_109 = arith.constant 26 : index
    %826 = memref.load %arg6[%c26_109] : memref<128xf32, #tpu.memory_space<smem>>
    %827 = vector.broadcast %826 : f32 to vector<8x128xf32>
    %828 = arith.mulf %243, %827 : vector<8x128xf32>
    %829 = arith.addf %825, %828 : vector<8x128xf32>
    %c34_110 = arith.constant 34 : index
    %830 = memref.load %arg6[%c34_110] : memref<128xf32, #tpu.memory_space<smem>>
    %831 = vector.broadcast %830 : f32 to vector<8x128xf32>
    %832 = arith.mulf %279, %831 : vector<8x128xf32>
    %833 = arith.addf %829, %832 : vector<8x128xf32>
    %c42_111 = arith.constant 42 : index
    %834 = memref.load %arg6[%c42_111] : memref<128xf32, #tpu.memory_space<smem>>
    %835 = vector.broadcast %834 : f32 to vector<8x128xf32>
    %836 = arith.mulf %315, %835 : vector<8x128xf32>
    %837 = arith.addf %833, %836 : vector<8x128xf32>
    %c50_112 = arith.constant 50 : index
    %838 = memref.load %arg6[%c50_112] : memref<128xf32, #tpu.memory_space<smem>>
    %839 = vector.broadcast %838 : f32 to vector<8x128xf32>
    %840 = arith.mulf %351, %839 : vector<8x128xf32>
    %841 = arith.addf %837, %840 : vector<8x128xf32>
    %c58_113 = arith.constant 58 : index
    %842 = memref.load %arg6[%c58_113] : memref<128xf32, #tpu.memory_space<smem>>
    %843 = vector.broadcast %842 : f32 to vector<8x128xf32>
    %844 = arith.mulf %387, %843 : vector<8x128xf32>
    %845 = arith.addf %841, %844 : vector<8x128xf32>
    %c66_114 = arith.constant 66 : index
    %846 = memref.load %arg6[%c66_114] : memref<128xf32, #tpu.memory_space<smem>>
    %847 = vector.broadcast %846 : f32 to vector<8x128xf32>
    %848 = arith.mulf %423, %847 : vector<8x128xf32>
    %849 = arith.addf %845, %848 : vector<8x128xf32>
    %c74_115 = arith.constant 74 : index
    %850 = memref.load %arg6[%c74_115] : memref<128xf32, #tpu.memory_space<smem>>
    %851 = vector.broadcast %850 : f32 to vector<8x128xf32>
    %852 = arith.mulf %459, %851 : vector<8x128xf32>
    %853 = arith.addf %849, %852 : vector<8x128xf32>
    %c82_116 = arith.constant 82 : index
    %854 = memref.load %arg6[%c82_116] : memref<128xf32, #tpu.memory_space<smem>>
    %855 = vector.broadcast %854 : f32 to vector<8x128xf32>
    %856 = arith.mulf %495, %855 : vector<8x128xf32>
    %857 = arith.addf %853, %856 : vector<8x128xf32>
    %c90_117 = arith.constant 90 : index
    %858 = memref.load %arg6[%c90_117] : memref<128xf32, #tpu.memory_space<smem>>
    %859 = vector.broadcast %858 : f32 to vector<8x128xf32>
    %860 = arith.mulf %531, %859 : vector<8x128xf32>
    %861 = arith.addf %857, %860 : vector<8x128xf32>
    %c98_118 = arith.constant 98 : index
    %862 = memref.load %arg6[%c98_118] : memref<128xf32, #tpu.memory_space<smem>>
    %863 = vector.broadcast %862 : f32 to vector<8x128xf32>
    %864 = arith.mulf %567, %863 : vector<8x128xf32>
    %865 = arith.addf %861, %864 : vector<8x128xf32>
    %c106_119 = arith.constant 106 : index
    %866 = memref.load %arg6[%c106_119] : memref<128xf32, #tpu.memory_space<smem>>
    %867 = vector.broadcast %866 : f32 to vector<8x128xf32>
    %868 = arith.mulf %603, %867 : vector<8x128xf32>
    %869 = arith.addf %865, %868 : vector<8x128xf32>
    %c114_120 = arith.constant 114 : index
    %870 = memref.load %arg6[%c114_120] : memref<128xf32, #tpu.memory_space<smem>>
    %871 = vector.broadcast %870 : f32 to vector<8x128xf32>
    %872 = arith.mulf %639, %871 : vector<8x128xf32>
    %873 = arith.addf %869, %872 : vector<8x128xf32>
    %c122_121 = arith.constant 122 : index
    %874 = memref.load %arg6[%c122_121] : memref<128xf32, #tpu.memory_space<smem>>
    %875 = vector.broadcast %874 : f32 to vector<8x128xf32>
    %876 = arith.mulf %675, %875 : vector<8x128xf32>
    %877 = arith.addf %873, %876 : vector<8x128xf32>
    %cst_122 = arith.constant 0.000000e+00 : f32
    %878 = vector.broadcast %cst_122 : f32 to vector<8x128xf32>
    %879 = arith.maximumf %877, %878 : vector<8x128xf32>
    %c3_123 = arith.constant 3 : index
    %880 = memref.load %arg6[%c3_123] : memref<128xf32, #tpu.memory_space<smem>>
    %881 = vector.broadcast %880 : f32 to vector<8x128xf32>
    %882 = arith.mulf %135, %881 : vector<8x128xf32>
    %c3_124 = arith.constant 3 : index
    %883 = memref.load %arg7[%c3_124] : memref<8xf32, #tpu.memory_space<smem>>
    %884 = vector.broadcast %883 : f32 to vector<8x128xf32>
    %885 = arith.addf %882, %884 : vector<8x128xf32>
    %c11_125 = arith.constant 11 : index
    %886 = memref.load %arg6[%c11_125] : memref<128xf32, #tpu.memory_space<smem>>
    %887 = vector.broadcast %886 : f32 to vector<8x128xf32>
    %888 = arith.mulf %171, %887 : vector<8x128xf32>
    %889 = arith.addf %885, %888 : vector<8x128xf32>
    %c19_126 = arith.constant 19 : index
    %890 = memref.load %arg6[%c19_126] : memref<128xf32, #tpu.memory_space<smem>>
    %891 = vector.broadcast %890 : f32 to vector<8x128xf32>
    %892 = arith.mulf %207, %891 : vector<8x128xf32>
    %893 = arith.addf %889, %892 : vector<8x128xf32>
    %c27_127 = arith.constant 27 : index
    %894 = memref.load %arg6[%c27_127] : memref<128xf32, #tpu.memory_space<smem>>
    %895 = vector.broadcast %894 : f32 to vector<8x128xf32>
    %896 = arith.mulf %243, %895 : vector<8x128xf32>
    %897 = arith.addf %893, %896 : vector<8x128xf32>
    %c35_128 = arith.constant 35 : index
    %898 = memref.load %arg6[%c35_128] : memref<128xf32, #tpu.memory_space<smem>>
    %899 = vector.broadcast %898 : f32 to vector<8x128xf32>
    %900 = arith.mulf %279, %899 : vector<8x128xf32>
    %901 = arith.addf %897, %900 : vector<8x128xf32>
    %c43_129 = arith.constant 43 : index
    %902 = memref.load %arg6[%c43_129] : memref<128xf32, #tpu.memory_space<smem>>
    %903 = vector.broadcast %902 : f32 to vector<8x128xf32>
    %904 = arith.mulf %315, %903 : vector<8x128xf32>
    %905 = arith.addf %901, %904 : vector<8x128xf32>
    %c51_130 = arith.constant 51 : index
    %906 = memref.load %arg6[%c51_130] : memref<128xf32, #tpu.memory_space<smem>>
    %907 = vector.broadcast %906 : f32 to vector<8x128xf32>
    %908 = arith.mulf %351, %907 : vector<8x128xf32>
    %909 = arith.addf %905, %908 : vector<8x128xf32>
    %c59_131 = arith.constant 59 : index
    %910 = memref.load %arg6[%c59_131] : memref<128xf32, #tpu.memory_space<smem>>
    %911 = vector.broadcast %910 : f32 to vector<8x128xf32>
    %912 = arith.mulf %387, %911 : vector<8x128xf32>
    %913 = arith.addf %909, %912 : vector<8x128xf32>
    %c67_132 = arith.constant 67 : index
    %914 = memref.load %arg6[%c67_132] : memref<128xf32, #tpu.memory_space<smem>>
    %915 = vector.broadcast %914 : f32 to vector<8x128xf32>
    %916 = arith.mulf %423, %915 : vector<8x128xf32>
    %917 = arith.addf %913, %916 : vector<8x128xf32>
    %c75_133 = arith.constant 75 : index
    %918 = memref.load %arg6[%c75_133] : memref<128xf32, #tpu.memory_space<smem>>
    %919 = vector.broadcast %918 : f32 to vector<8x128xf32>
    %920 = arith.mulf %459, %919 : vector<8x128xf32>
    %921 = arith.addf %917, %920 : vector<8x128xf32>
    %c83_134 = arith.constant 83 : index
    %922 = memref.load %arg6[%c83_134] : memref<128xf32, #tpu.memory_space<smem>>
    %923 = vector.broadcast %922 : f32 to vector<8x128xf32>
    %924 = arith.mulf %495, %923 : vector<8x128xf32>
    %925 = arith.addf %921, %924 : vector<8x128xf32>
    %c91_135 = arith.constant 91 : index
    %926 = memref.load %arg6[%c91_135] : memref<128xf32, #tpu.memory_space<smem>>
    %927 = vector.broadcast %926 : f32 to vector<8x128xf32>
    %928 = arith.mulf %531, %927 : vector<8x128xf32>
    %929 = arith.addf %925, %928 : vector<8x128xf32>
    %c99_136 = arith.constant 99 : index
    %930 = memref.load %arg6[%c99_136] : memref<128xf32, #tpu.memory_space<smem>>
    %931 = vector.broadcast %930 : f32 to vector<8x128xf32>
    %932 = arith.mulf %567, %931 : vector<8x128xf32>
    %933 = arith.addf %929, %932 : vector<8x128xf32>
    %c107_137 = arith.constant 107 : index
    %934 = memref.load %arg6[%c107_137] : memref<128xf32, #tpu.memory_space<smem>>
    %935 = vector.broadcast %934 : f32 to vector<8x128xf32>
    %936 = arith.mulf %603, %935 : vector<8x128xf32>
    %937 = arith.addf %933, %936 : vector<8x128xf32>
    %c115_138 = arith.constant 115 : index
    %938 = memref.load %arg6[%c115_138] : memref<128xf32, #tpu.memory_space<smem>>
    %939 = vector.broadcast %938 : f32 to vector<8x128xf32>
    %940 = arith.mulf %639, %939 : vector<8x128xf32>
    %941 = arith.addf %937, %940 : vector<8x128xf32>
    %c123_139 = arith.constant 123 : index
    %942 = memref.load %arg6[%c123_139] : memref<128xf32, #tpu.memory_space<smem>>
    %943 = vector.broadcast %942 : f32 to vector<8x128xf32>
    %944 = arith.mulf %675, %943 : vector<8x128xf32>
    %945 = arith.addf %941, %944 : vector<8x128xf32>
    %cst_140 = arith.constant 0.000000e+00 : f32
    %946 = vector.broadcast %cst_140 : f32 to vector<8x128xf32>
    %947 = arith.maximumf %945, %946 : vector<8x128xf32>
    %c4_141 = arith.constant 4 : index
    %948 = memref.load %arg6[%c4_141] : memref<128xf32, #tpu.memory_space<smem>>
    %949 = vector.broadcast %948 : f32 to vector<8x128xf32>
    %950 = arith.mulf %135, %949 : vector<8x128xf32>
    %c4_142 = arith.constant 4 : index
    %951 = memref.load %arg7[%c4_142] : memref<8xf32, #tpu.memory_space<smem>>
    %952 = vector.broadcast %951 : f32 to vector<8x128xf32>
    %953 = arith.addf %950, %952 : vector<8x128xf32>
    %c12_143 = arith.constant 12 : index
    %954 = memref.load %arg6[%c12_143] : memref<128xf32, #tpu.memory_space<smem>>
    %955 = vector.broadcast %954 : f32 to vector<8x128xf32>
    %956 = arith.mulf %171, %955 : vector<8x128xf32>
    %957 = arith.addf %953, %956 : vector<8x128xf32>
    %c20_144 = arith.constant 20 : index
    %958 = memref.load %arg6[%c20_144] : memref<128xf32, #tpu.memory_space<smem>>
    %959 = vector.broadcast %958 : f32 to vector<8x128xf32>
    %960 = arith.mulf %207, %959 : vector<8x128xf32>
    %961 = arith.addf %957, %960 : vector<8x128xf32>
    %c28_145 = arith.constant 28 : index
    %962 = memref.load %arg6[%c28_145] : memref<128xf32, #tpu.memory_space<smem>>
    %963 = vector.broadcast %962 : f32 to vector<8x128xf32>
    %964 = arith.mulf %243, %963 : vector<8x128xf32>
    %965 = arith.addf %961, %964 : vector<8x128xf32>
    %c36_146 = arith.constant 36 : index
    %966 = memref.load %arg6[%c36_146] : memref<128xf32, #tpu.memory_space<smem>>
    %967 = vector.broadcast %966 : f32 to vector<8x128xf32>
    %968 = arith.mulf %279, %967 : vector<8x128xf32>
    %969 = arith.addf %965, %968 : vector<8x128xf32>
    %c44_147 = arith.constant 44 : index
    %970 = memref.load %arg6[%c44_147] : memref<128xf32, #tpu.memory_space<smem>>
    %971 = vector.broadcast %970 : f32 to vector<8x128xf32>
    %972 = arith.mulf %315, %971 : vector<8x128xf32>
    %973 = arith.addf %969, %972 : vector<8x128xf32>
    %c52_148 = arith.constant 52 : index
    %974 = memref.load %arg6[%c52_148] : memref<128xf32, #tpu.memory_space<smem>>
    %975 = vector.broadcast %974 : f32 to vector<8x128xf32>
    %976 = arith.mulf %351, %975 : vector<8x128xf32>
    %977 = arith.addf %973, %976 : vector<8x128xf32>
    %c60_149 = arith.constant 60 : index
    %978 = memref.load %arg6[%c60_149] : memref<128xf32, #tpu.memory_space<smem>>
    %979 = vector.broadcast %978 : f32 to vector<8x128xf32>
    %980 = arith.mulf %387, %979 : vector<8x128xf32>
    %981 = arith.addf %977, %980 : vector<8x128xf32>
    %c68_150 = arith.constant 68 : index
    %982 = memref.load %arg6[%c68_150] : memref<128xf32, #tpu.memory_space<smem>>
    %983 = vector.broadcast %982 : f32 to vector<8x128xf32>
    %984 = arith.mulf %423, %983 : vector<8x128xf32>
    %985 = arith.addf %981, %984 : vector<8x128xf32>
    %c76_151 = arith.constant 76 : index
    %986 = memref.load %arg6[%c76_151] : memref<128xf32, #tpu.memory_space<smem>>
    %987 = vector.broadcast %986 : f32 to vector<8x128xf32>
    %988 = arith.mulf %459, %987 : vector<8x128xf32>
    %989 = arith.addf %985, %988 : vector<8x128xf32>
    %c84_152 = arith.constant 84 : index
    %990 = memref.load %arg6[%c84_152] : memref<128xf32, #tpu.memory_space<smem>>
    %991 = vector.broadcast %990 : f32 to vector<8x128xf32>
    %992 = arith.mulf %495, %991 : vector<8x128xf32>
    %993 = arith.addf %989, %992 : vector<8x128xf32>
    %c92_153 = arith.constant 92 : index
    %994 = memref.load %arg6[%c92_153] : memref<128xf32, #tpu.memory_space<smem>>
    %995 = vector.broadcast %994 : f32 to vector<8x128xf32>
    %996 = arith.mulf %531, %995 : vector<8x128xf32>
    %997 = arith.addf %993, %996 : vector<8x128xf32>
    %c100_154 = arith.constant 100 : index
    %998 = memref.load %arg6[%c100_154] : memref<128xf32, #tpu.memory_space<smem>>
    %999 = vector.broadcast %998 : f32 to vector<8x128xf32>
    %1000 = arith.mulf %567, %999 : vector<8x128xf32>
    %1001 = arith.addf %997, %1000 : vector<8x128xf32>
    %c108_155 = arith.constant 108 : index
    %1002 = memref.load %arg6[%c108_155] : memref<128xf32, #tpu.memory_space<smem>>
    %1003 = vector.broadcast %1002 : f32 to vector<8x128xf32>
    %1004 = arith.mulf %603, %1003 : vector<8x128xf32>
    %1005 = arith.addf %1001, %1004 : vector<8x128xf32>
    %c116_156 = arith.constant 116 : index
    %1006 = memref.load %arg6[%c116_156] : memref<128xf32, #tpu.memory_space<smem>>
    %1007 = vector.broadcast %1006 : f32 to vector<8x128xf32>
    %1008 = arith.mulf %639, %1007 : vector<8x128xf32>
    %1009 = arith.addf %1005, %1008 : vector<8x128xf32>
    %c124_157 = arith.constant 124 : index
    %1010 = memref.load %arg6[%c124_157] : memref<128xf32, #tpu.memory_space<smem>>
    %1011 = vector.broadcast %1010 : f32 to vector<8x128xf32>
    %1012 = arith.mulf %675, %1011 : vector<8x128xf32>
    %1013 = arith.addf %1009, %1012 : vector<8x128xf32>
    %cst_158 = arith.constant 0.000000e+00 : f32
    %1014 = vector.broadcast %cst_158 : f32 to vector<8x128xf32>
    %1015 = arith.maximumf %1013, %1014 : vector<8x128xf32>
    %c5_159 = arith.constant 5 : index
    %1016 = memref.load %arg6[%c5_159] : memref<128xf32, #tpu.memory_space<smem>>
    %1017 = vector.broadcast %1016 : f32 to vector<8x128xf32>
    %1018 = arith.mulf %135, %1017 : vector<8x128xf32>
    %c5_160 = arith.constant 5 : index
    %1019 = memref.load %arg7[%c5_160] : memref<8xf32, #tpu.memory_space<smem>>
    %1020 = vector.broadcast %1019 : f32 to vector<8x128xf32>
    %1021 = arith.addf %1018, %1020 : vector<8x128xf32>
    %c13_161 = arith.constant 13 : index
    %1022 = memref.load %arg6[%c13_161] : memref<128xf32, #tpu.memory_space<smem>>
    %1023 = vector.broadcast %1022 : f32 to vector<8x128xf32>
    %1024 = arith.mulf %171, %1023 : vector<8x128xf32>
    %1025 = arith.addf %1021, %1024 : vector<8x128xf32>
    %c21_162 = arith.constant 21 : index
    %1026 = memref.load %arg6[%c21_162] : memref<128xf32, #tpu.memory_space<smem>>
    %1027 = vector.broadcast %1026 : f32 to vector<8x128xf32>
    %1028 = arith.mulf %207, %1027 : vector<8x128xf32>
    %1029 = arith.addf %1025, %1028 : vector<8x128xf32>
    %c29_163 = arith.constant 29 : index
    %1030 = memref.load %arg6[%c29_163] : memref<128xf32, #tpu.memory_space<smem>>
    %1031 = vector.broadcast %1030 : f32 to vector<8x128xf32>
    %1032 = arith.mulf %243, %1031 : vector<8x128xf32>
    %1033 = arith.addf %1029, %1032 : vector<8x128xf32>
    %c37_164 = arith.constant 37 : index
    %1034 = memref.load %arg6[%c37_164] : memref<128xf32, #tpu.memory_space<smem>>
    %1035 = vector.broadcast %1034 : f32 to vector<8x128xf32>
    %1036 = arith.mulf %279, %1035 : vector<8x128xf32>
    %1037 = arith.addf %1033, %1036 : vector<8x128xf32>
    %c45_165 = arith.constant 45 : index
    %1038 = memref.load %arg6[%c45_165] : memref<128xf32, #tpu.memory_space<smem>>
    %1039 = vector.broadcast %1038 : f32 to vector<8x128xf32>
    %1040 = arith.mulf %315, %1039 : vector<8x128xf32>
    %1041 = arith.addf %1037, %1040 : vector<8x128xf32>
    %c53_166 = arith.constant 53 : index
    %1042 = memref.load %arg6[%c53_166] : memref<128xf32, #tpu.memory_space<smem>>
    %1043 = vector.broadcast %1042 : f32 to vector<8x128xf32>
    %1044 = arith.mulf %351, %1043 : vector<8x128xf32>
    %1045 = arith.addf %1041, %1044 : vector<8x128xf32>
    %c61_167 = arith.constant 61 : index
    %1046 = memref.load %arg6[%c61_167] : memref<128xf32, #tpu.memory_space<smem>>
    %1047 = vector.broadcast %1046 : f32 to vector<8x128xf32>
    %1048 = arith.mulf %387, %1047 : vector<8x128xf32>
    %1049 = arith.addf %1045, %1048 : vector<8x128xf32>
    %c69_168 = arith.constant 69 : index
    %1050 = memref.load %arg6[%c69_168] : memref<128xf32, #tpu.memory_space<smem>>
    %1051 = vector.broadcast %1050 : f32 to vector<8x128xf32>
    %1052 = arith.mulf %423, %1051 : vector<8x128xf32>
    %1053 = arith.addf %1049, %1052 : vector<8x128xf32>
    %c77_169 = arith.constant 77 : index
    %1054 = memref.load %arg6[%c77_169] : memref<128xf32, #tpu.memory_space<smem>>
    %1055 = vector.broadcast %1054 : f32 to vector<8x128xf32>
    %1056 = arith.mulf %459, %1055 : vector<8x128xf32>
    %1057 = arith.addf %1053, %1056 : vector<8x128xf32>
    %c85_170 = arith.constant 85 : index
    %1058 = memref.load %arg6[%c85_170] : memref<128xf32, #tpu.memory_space<smem>>
    %1059 = vector.broadcast %1058 : f32 to vector<8x128xf32>
    %1060 = arith.mulf %495, %1059 : vector<8x128xf32>
    %1061 = arith.addf %1057, %1060 : vector<8x128xf32>
    %c93_171 = arith.constant 93 : index
    %1062 = memref.load %arg6[%c93_171] : memref<128xf32, #tpu.memory_space<smem>>
    %1063 = vector.broadcast %1062 : f32 to vector<8x128xf32>
    %1064 = arith.mulf %531, %1063 : vector<8x128xf32>
    %1065 = arith.addf %1061, %1064 : vector<8x128xf32>
    %c101_172 = arith.constant 101 : index
    %1066 = memref.load %arg6[%c101_172] : memref<128xf32, #tpu.memory_space<smem>>
    %1067 = vector.broadcast %1066 : f32 to vector<8x128xf32>
    %1068 = arith.mulf %567, %1067 : vector<8x128xf32>
    %1069 = arith.addf %1065, %1068 : vector<8x128xf32>
    %c109_173 = arith.constant 109 : index
    %1070 = memref.load %arg6[%c109_173] : memref<128xf32, #tpu.memory_space<smem>>
    %1071 = vector.broadcast %1070 : f32 to vector<8x128xf32>
    %1072 = arith.mulf %603, %1071 : vector<8x128xf32>
    %1073 = arith.addf %1069, %1072 : vector<8x128xf32>
    %c117_174 = arith.constant 117 : index
    %1074 = memref.load %arg6[%c117_174] : memref<128xf32, #tpu.memory_space<smem>>
    %1075 = vector.broadcast %1074 : f32 to vector<8x128xf32>
    %1076 = arith.mulf %639, %1075 : vector<8x128xf32>
    %1077 = arith.addf %1073, %1076 : vector<8x128xf32>
    %c125_175 = arith.constant 125 : index
    %1078 = memref.load %arg6[%c125_175] : memref<128xf32, #tpu.memory_space<smem>>
    %1079 = vector.broadcast %1078 : f32 to vector<8x128xf32>
    %1080 = arith.mulf %675, %1079 : vector<8x128xf32>
    %1081 = arith.addf %1077, %1080 : vector<8x128xf32>
    %cst_176 = arith.constant 0.000000e+00 : f32
    %1082 = vector.broadcast %cst_176 : f32 to vector<8x128xf32>
    %1083 = arith.maximumf %1081, %1082 : vector<8x128xf32>
    %c6_177 = arith.constant 6 : index
    %1084 = memref.load %arg6[%c6_177] : memref<128xf32, #tpu.memory_space<smem>>
    %1085 = vector.broadcast %1084 : f32 to vector<8x128xf32>
    %1086 = arith.mulf %135, %1085 : vector<8x128xf32>
    %c6_178 = arith.constant 6 : index
    %1087 = memref.load %arg7[%c6_178] : memref<8xf32, #tpu.memory_space<smem>>
    %1088 = vector.broadcast %1087 : f32 to vector<8x128xf32>
    %1089 = arith.addf %1086, %1088 : vector<8x128xf32>
    %c14_179 = arith.constant 14 : index
    %1090 = memref.load %arg6[%c14_179] : memref<128xf32, #tpu.memory_space<smem>>
    %1091 = vector.broadcast %1090 : f32 to vector<8x128xf32>
    %1092 = arith.mulf %171, %1091 : vector<8x128xf32>
    %1093 = arith.addf %1089, %1092 : vector<8x128xf32>
    %c22_180 = arith.constant 22 : index
    %1094 = memref.load %arg6[%c22_180] : memref<128xf32, #tpu.memory_space<smem>>
    %1095 = vector.broadcast %1094 : f32 to vector<8x128xf32>
    %1096 = arith.mulf %207, %1095 : vector<8x128xf32>
    %1097 = arith.addf %1093, %1096 : vector<8x128xf32>
    %c30_181 = arith.constant 30 : index
    %1098 = memref.load %arg6[%c30_181] : memref<128xf32, #tpu.memory_space<smem>>
    %1099 = vector.broadcast %1098 : f32 to vector<8x128xf32>
    %1100 = arith.mulf %243, %1099 : vector<8x128xf32>
    %1101 = arith.addf %1097, %1100 : vector<8x128xf32>
    %c38_182 = arith.constant 38 : index
    %1102 = memref.load %arg6[%c38_182] : memref<128xf32, #tpu.memory_space<smem>>
    %1103 = vector.broadcast %1102 : f32 to vector<8x128xf32>
    %1104 = arith.mulf %279, %1103 : vector<8x128xf32>
    %1105 = arith.addf %1101, %1104 : vector<8x128xf32>
    %c46_183 = arith.constant 46 : index
    %1106 = memref.load %arg6[%c46_183] : memref<128xf32, #tpu.memory_space<smem>>
    %1107 = vector.broadcast %1106 : f32 to vector<8x128xf32>
    %1108 = arith.mulf %315, %1107 : vector<8x128xf32>
    %1109 = arith.addf %1105, %1108 : vector<8x128xf32>
    %c54_184 = arith.constant 54 : index
    %1110 = memref.load %arg6[%c54_184] : memref<128xf32, #tpu.memory_space<smem>>
    %1111 = vector.broadcast %1110 : f32 to vector<8x128xf32>
    %1112 = arith.mulf %351, %1111 : vector<8x128xf32>
    %1113 = arith.addf %1109, %1112 : vector<8x128xf32>
    %c62_185 = arith.constant 62 : index
    %1114 = memref.load %arg6[%c62_185] : memref<128xf32, #tpu.memory_space<smem>>
    %1115 = vector.broadcast %1114 : f32 to vector<8x128xf32>
    %1116 = arith.mulf %387, %1115 : vector<8x128xf32>
    %1117 = arith.addf %1113, %1116 : vector<8x128xf32>
    %c70_186 = arith.constant 70 : index
    %1118 = memref.load %arg6[%c70_186] : memref<128xf32, #tpu.memory_space<smem>>
    %1119 = vector.broadcast %1118 : f32 to vector<8x128xf32>
    %1120 = arith.mulf %423, %1119 : vector<8x128xf32>
    %1121 = arith.addf %1117, %1120 : vector<8x128xf32>
    %c78_187 = arith.constant 78 : index
    %1122 = memref.load %arg6[%c78_187] : memref<128xf32, #tpu.memory_space<smem>>
    %1123 = vector.broadcast %1122 : f32 to vector<8x128xf32>
    %1124 = arith.mulf %459, %1123 : vector<8x128xf32>
    %1125 = arith.addf %1121, %1124 : vector<8x128xf32>
    %c86_188 = arith.constant 86 : index
    %1126 = memref.load %arg6[%c86_188] : memref<128xf32, #tpu.memory_space<smem>>
    %1127 = vector.broadcast %1126 : f32 to vector<8x128xf32>
    %1128 = arith.mulf %495, %1127 : vector<8x128xf32>
    %1129 = arith.addf %1125, %1128 : vector<8x128xf32>
    %c94_189 = arith.constant 94 : index
    %1130 = memref.load %arg6[%c94_189] : memref<128xf32, #tpu.memory_space<smem>>
    %1131 = vector.broadcast %1130 : f32 to vector<8x128xf32>
    %1132 = arith.mulf %531, %1131 : vector<8x128xf32>
    %1133 = arith.addf %1129, %1132 : vector<8x128xf32>
    %c102_190 = arith.constant 102 : index
    %1134 = memref.load %arg6[%c102_190] : memref<128xf32, #tpu.memory_space<smem>>
    %1135 = vector.broadcast %1134 : f32 to vector<8x128xf32>
    %1136 = arith.mulf %567, %1135 : vector<8x128xf32>
    %1137 = arith.addf %1133, %1136 : vector<8x128xf32>
    %c110_191 = arith.constant 110 : index
    %1138 = memref.load %arg6[%c110_191] : memref<128xf32, #tpu.memory_space<smem>>
    %1139 = vector.broadcast %1138 : f32 to vector<8x128xf32>
    %1140 = arith.mulf %603, %1139 : vector<8x128xf32>
    %1141 = arith.addf %1137, %1140 : vector<8x128xf32>
    %c118_192 = arith.constant 118 : index
    %1142 = memref.load %arg6[%c118_192] : memref<128xf32, #tpu.memory_space<smem>>
    %1143 = vector.broadcast %1142 : f32 to vector<8x128xf32>
    %1144 = arith.mulf %639, %1143 : vector<8x128xf32>
    %1145 = arith.addf %1141, %1144 : vector<8x128xf32>
    %c126_193 = arith.constant 126 : index
    %1146 = memref.load %arg6[%c126_193] : memref<128xf32, #tpu.memory_space<smem>>
    %1147 = vector.broadcast %1146 : f32 to vector<8x128xf32>
    %1148 = arith.mulf %675, %1147 : vector<8x128xf32>
    %1149 = arith.addf %1145, %1148 : vector<8x128xf32>
    %cst_194 = arith.constant 0.000000e+00 : f32
    %1150 = vector.broadcast %cst_194 : f32 to vector<8x128xf32>
    %1151 = arith.maximumf %1149, %1150 : vector<8x128xf32>
    %c7_195 = arith.constant 7 : index
    %1152 = memref.load %arg6[%c7_195] : memref<128xf32, #tpu.memory_space<smem>>
    %1153 = vector.broadcast %1152 : f32 to vector<8x128xf32>
    %1154 = arith.mulf %135, %1153 : vector<8x128xf32>
    %c7_196 = arith.constant 7 : index
    %1155 = memref.load %arg7[%c7_196] : memref<8xf32, #tpu.memory_space<smem>>
    %1156 = vector.broadcast %1155 : f32 to vector<8x128xf32>
    %1157 = arith.addf %1154, %1156 : vector<8x128xf32>
    %c15_197 = arith.constant 15 : index
    %1158 = memref.load %arg6[%c15_197] : memref<128xf32, #tpu.memory_space<smem>>
    %1159 = vector.broadcast %1158 : f32 to vector<8x128xf32>
    %1160 = arith.mulf %171, %1159 : vector<8x128xf32>
    %1161 = arith.addf %1157, %1160 : vector<8x128xf32>
    %c23_198 = arith.constant 23 : index
    %1162 = memref.load %arg6[%c23_198] : memref<128xf32, #tpu.memory_space<smem>>
    %1163 = vector.broadcast %1162 : f32 to vector<8x128xf32>
    %1164 = arith.mulf %207, %1163 : vector<8x128xf32>
    %1165 = arith.addf %1161, %1164 : vector<8x128xf32>
    %c31_199 = arith.constant 31 : index
    %1166 = memref.load %arg6[%c31_199] : memref<128xf32, #tpu.memory_space<smem>>
    %1167 = vector.broadcast %1166 : f32 to vector<8x128xf32>
    %1168 = arith.mulf %243, %1167 : vector<8x128xf32>
    %1169 = arith.addf %1165, %1168 : vector<8x128xf32>
    %c39_200 = arith.constant 39 : index
    %1170 = memref.load %arg6[%c39_200] : memref<128xf32, #tpu.memory_space<smem>>
    %1171 = vector.broadcast %1170 : f32 to vector<8x128xf32>
    %1172 = arith.mulf %279, %1171 : vector<8x128xf32>
    %1173 = arith.addf %1169, %1172 : vector<8x128xf32>
    %c47_201 = arith.constant 47 : index
    %1174 = memref.load %arg6[%c47_201] : memref<128xf32, #tpu.memory_space<smem>>
    %1175 = vector.broadcast %1174 : f32 to vector<8x128xf32>
    %1176 = arith.mulf %315, %1175 : vector<8x128xf32>
    %1177 = arith.addf %1173, %1176 : vector<8x128xf32>
    %c55_202 = arith.constant 55 : index
    %1178 = memref.load %arg6[%c55_202] : memref<128xf32, #tpu.memory_space<smem>>
    %1179 = vector.broadcast %1178 : f32 to vector<8x128xf32>
    %1180 = arith.mulf %351, %1179 : vector<8x128xf32>
    %1181 = arith.addf %1177, %1180 : vector<8x128xf32>
    %c63_203 = arith.constant 63 : index
    %1182 = memref.load %arg6[%c63_203] : memref<128xf32, #tpu.memory_space<smem>>
    %1183 = vector.broadcast %1182 : f32 to vector<8x128xf32>
    %1184 = arith.mulf %387, %1183 : vector<8x128xf32>
    %1185 = arith.addf %1181, %1184 : vector<8x128xf32>
    %c71_204 = arith.constant 71 : index
    %1186 = memref.load %arg6[%c71_204] : memref<128xf32, #tpu.memory_space<smem>>
    %1187 = vector.broadcast %1186 : f32 to vector<8x128xf32>
    %1188 = arith.mulf %423, %1187 : vector<8x128xf32>
    %1189 = arith.addf %1185, %1188 : vector<8x128xf32>
    %c79_205 = arith.constant 79 : index
    %1190 = memref.load %arg6[%c79_205] : memref<128xf32, #tpu.memory_space<smem>>
    %1191 = vector.broadcast %1190 : f32 to vector<8x128xf32>
    %1192 = arith.mulf %459, %1191 : vector<8x128xf32>
    %1193 = arith.addf %1189, %1192 : vector<8x128xf32>
    %c87_206 = arith.constant 87 : index
    %1194 = memref.load %arg6[%c87_206] : memref<128xf32, #tpu.memory_space<smem>>
    %1195 = vector.broadcast %1194 : f32 to vector<8x128xf32>
    %1196 = arith.mulf %495, %1195 : vector<8x128xf32>
    %1197 = arith.addf %1193, %1196 : vector<8x128xf32>
    %c95_207 = arith.constant 95 : index
    %1198 = memref.load %arg6[%c95_207] : memref<128xf32, #tpu.memory_space<smem>>
    %1199 = vector.broadcast %1198 : f32 to vector<8x128xf32>
    %1200 = arith.mulf %531, %1199 : vector<8x128xf32>
    %1201 = arith.addf %1197, %1200 : vector<8x128xf32>
    %c103_208 = arith.constant 103 : index
    %1202 = memref.load %arg6[%c103_208] : memref<128xf32, #tpu.memory_space<smem>>
    %1203 = vector.broadcast %1202 : f32 to vector<8x128xf32>
    %1204 = arith.mulf %567, %1203 : vector<8x128xf32>
    %1205 = arith.addf %1201, %1204 : vector<8x128xf32>
    %c111_209 = arith.constant 111 : index
    %1206 = memref.load %arg6[%c111_209] : memref<128xf32, #tpu.memory_space<smem>>
    %1207 = vector.broadcast %1206 : f32 to vector<8x128xf32>
    %1208 = arith.mulf %603, %1207 : vector<8x128xf32>
    %1209 = arith.addf %1205, %1208 : vector<8x128xf32>
    %c119_210 = arith.constant 119 : index
    %1210 = memref.load %arg6[%c119_210] : memref<128xf32, #tpu.memory_space<smem>>
    %1211 = vector.broadcast %1210 : f32 to vector<8x128xf32>
    %1212 = arith.mulf %639, %1211 : vector<8x128xf32>
    %1213 = arith.addf %1209, %1212 : vector<8x128xf32>
    %c127_211 = arith.constant 127 : index
    %1214 = memref.load %arg6[%c127_211] : memref<128xf32, #tpu.memory_space<smem>>
    %1215 = vector.broadcast %1214 : f32 to vector<8x128xf32>
    %1216 = arith.mulf %675, %1215 : vector<8x128xf32>
    %1217 = arith.addf %1213, %1216 : vector<8x128xf32>
    %cst_212 = arith.constant 0.000000e+00 : f32
    %1218 = vector.broadcast %cst_212 : f32 to vector<8x128xf32>
    %1219 = arith.maximumf %1217, %1218 : vector<8x128xf32>
    %c0_213 = arith.constant 0 : index
    %1220 = memref.load %arg8[%c0_213] : memref<32xf32, #tpu.memory_space<smem>>
    %1221 = vector.broadcast %1220 : f32 to vector<8x128xf32>
    %1222 = arith.mulf %743, %1221 : vector<8x128xf32>
    %c0_214 = arith.constant 0 : index
    %1223 = memref.load %arg9[%c0_214] : memref<4xf32, #tpu.memory_space<smem>>
    %1224 = vector.broadcast %1223 : f32 to vector<8x128xf32>
    %1225 = arith.addf %1222, %1224 : vector<8x128xf32>
    %c4_215 = arith.constant 4 : index
    %1226 = memref.load %arg8[%c4_215] : memref<32xf32, #tpu.memory_space<smem>>
    %1227 = vector.broadcast %1226 : f32 to vector<8x128xf32>
    %1228 = arith.mulf %811, %1227 : vector<8x128xf32>
    %1229 = arith.addf %1225, %1228 : vector<8x128xf32>
    %c8_216 = arith.constant 8 : index
    %1230 = memref.load %arg8[%c8_216] : memref<32xf32, #tpu.memory_space<smem>>
    %1231 = vector.broadcast %1230 : f32 to vector<8x128xf32>
    %1232 = arith.mulf %879, %1231 : vector<8x128xf32>
    %1233 = arith.addf %1229, %1232 : vector<8x128xf32>
    %c12_217 = arith.constant 12 : index
    %1234 = memref.load %arg8[%c12_217] : memref<32xf32, #tpu.memory_space<smem>>
    %1235 = vector.broadcast %1234 : f32 to vector<8x128xf32>
    %1236 = arith.mulf %947, %1235 : vector<8x128xf32>
    %1237 = arith.addf %1233, %1236 : vector<8x128xf32>
    %c16_218 = arith.constant 16 : index
    %1238 = memref.load %arg8[%c16_218] : memref<32xf32, #tpu.memory_space<smem>>
    %1239 = vector.broadcast %1238 : f32 to vector<8x128xf32>
    %1240 = arith.mulf %1015, %1239 : vector<8x128xf32>
    %1241 = arith.addf %1237, %1240 : vector<8x128xf32>
    %c20_219 = arith.constant 20 : index
    %1242 = memref.load %arg8[%c20_219] : memref<32xf32, #tpu.memory_space<smem>>
    %1243 = vector.broadcast %1242 : f32 to vector<8x128xf32>
    %1244 = arith.mulf %1083, %1243 : vector<8x128xf32>
    %1245 = arith.addf %1241, %1244 : vector<8x128xf32>
    %c24_220 = arith.constant 24 : index
    %1246 = memref.load %arg8[%c24_220] : memref<32xf32, #tpu.memory_space<smem>>
    %1247 = vector.broadcast %1246 : f32 to vector<8x128xf32>
    %1248 = arith.mulf %1151, %1247 : vector<8x128xf32>
    %1249 = arith.addf %1245, %1248 : vector<8x128xf32>
    %c28_221 = arith.constant 28 : index
    %1250 = memref.load %arg8[%c28_221] : memref<32xf32, #tpu.memory_space<smem>>
    %1251 = vector.broadcast %1250 : f32 to vector<8x128xf32>
    %1252 = arith.mulf %1219, %1251 : vector<8x128xf32>
    %1253 = arith.addf %1249, %1252 : vector<8x128xf32>
    %cst_222 = arith.constant 0.000000e+00 : f32
    %1254 = vector.broadcast %cst_222 : f32 to vector<8x128xf32>
    %1255 = arith.maximumf %1253, %1254 : vector<8x128xf32>
    %c1_223 = arith.constant 1 : index
    %1256 = memref.load %arg8[%c1_223] : memref<32xf32, #tpu.memory_space<smem>>
    %1257 = vector.broadcast %1256 : f32 to vector<8x128xf32>
    %1258 = arith.mulf %743, %1257 : vector<8x128xf32>
    %c1_224 = arith.constant 1 : index
    %1259 = memref.load %arg9[%c1_224] : memref<4xf32, #tpu.memory_space<smem>>
    %1260 = vector.broadcast %1259 : f32 to vector<8x128xf32>
    %1261 = arith.addf %1258, %1260 : vector<8x128xf32>
    %c5_225 = arith.constant 5 : index
    %1262 = memref.load %arg8[%c5_225] : memref<32xf32, #tpu.memory_space<smem>>
    %1263 = vector.broadcast %1262 : f32 to vector<8x128xf32>
    %1264 = arith.mulf %811, %1263 : vector<8x128xf32>
    %1265 = arith.addf %1261, %1264 : vector<8x128xf32>
    %c9_226 = arith.constant 9 : index
    %1266 = memref.load %arg8[%c9_226] : memref<32xf32, #tpu.memory_space<smem>>
    %1267 = vector.broadcast %1266 : f32 to vector<8x128xf32>
    %1268 = arith.mulf %879, %1267 : vector<8x128xf32>
    %1269 = arith.addf %1265, %1268 : vector<8x128xf32>
    %c13_227 = arith.constant 13 : index
    %1270 = memref.load %arg8[%c13_227] : memref<32xf32, #tpu.memory_space<smem>>
    %1271 = vector.broadcast %1270 : f32 to vector<8x128xf32>
    %1272 = arith.mulf %947, %1271 : vector<8x128xf32>
    %1273 = arith.addf %1269, %1272 : vector<8x128xf32>
    %c17_228 = arith.constant 17 : index
    %1274 = memref.load %arg8[%c17_228] : memref<32xf32, #tpu.memory_space<smem>>
    %1275 = vector.broadcast %1274 : f32 to vector<8x128xf32>
    %1276 = arith.mulf %1015, %1275 : vector<8x128xf32>
    %1277 = arith.addf %1273, %1276 : vector<8x128xf32>
    %c21_229 = arith.constant 21 : index
    %1278 = memref.load %arg8[%c21_229] : memref<32xf32, #tpu.memory_space<smem>>
    %1279 = vector.broadcast %1278 : f32 to vector<8x128xf32>
    %1280 = arith.mulf %1083, %1279 : vector<8x128xf32>
    %1281 = arith.addf %1277, %1280 : vector<8x128xf32>
    %c25_230 = arith.constant 25 : index
    %1282 = memref.load %arg8[%c25_230] : memref<32xf32, #tpu.memory_space<smem>>
    %1283 = vector.broadcast %1282 : f32 to vector<8x128xf32>
    %1284 = arith.mulf %1151, %1283 : vector<8x128xf32>
    %1285 = arith.addf %1281, %1284 : vector<8x128xf32>
    %c29_231 = arith.constant 29 : index
    %1286 = memref.load %arg8[%c29_231] : memref<32xf32, #tpu.memory_space<smem>>
    %1287 = vector.broadcast %1286 : f32 to vector<8x128xf32>
    %1288 = arith.mulf %1219, %1287 : vector<8x128xf32>
    %1289 = arith.addf %1285, %1288 : vector<8x128xf32>
    %cst_232 = arith.constant 0.000000e+00 : f32
    %1290 = vector.broadcast %cst_232 : f32 to vector<8x128xf32>
    %1291 = arith.maximumf %1289, %1290 : vector<8x128xf32>
    %c2_233 = arith.constant 2 : index
    %1292 = memref.load %arg8[%c2_233] : memref<32xf32, #tpu.memory_space<smem>>
    %1293 = vector.broadcast %1292 : f32 to vector<8x128xf32>
    %1294 = arith.mulf %743, %1293 : vector<8x128xf32>
    %c2_234 = arith.constant 2 : index
    %1295 = memref.load %arg9[%c2_234] : memref<4xf32, #tpu.memory_space<smem>>
    %1296 = vector.broadcast %1295 : f32 to vector<8x128xf32>
    %1297 = arith.addf %1294, %1296 : vector<8x128xf32>
    %c6_235 = arith.constant 6 : index
    %1298 = memref.load %arg8[%c6_235] : memref<32xf32, #tpu.memory_space<smem>>
    %1299 = vector.broadcast %1298 : f32 to vector<8x128xf32>
    %1300 = arith.mulf %811, %1299 : vector<8x128xf32>
    %1301 = arith.addf %1297, %1300 : vector<8x128xf32>
    %c10_236 = arith.constant 10 : index
    %1302 = memref.load %arg8[%c10_236] : memref<32xf32, #tpu.memory_space<smem>>
    %1303 = vector.broadcast %1302 : f32 to vector<8x128xf32>
    %1304 = arith.mulf %879, %1303 : vector<8x128xf32>
    %1305 = arith.addf %1301, %1304 : vector<8x128xf32>
    %c14_237 = arith.constant 14 : index
    %1306 = memref.load %arg8[%c14_237] : memref<32xf32, #tpu.memory_space<smem>>
    %1307 = vector.broadcast %1306 : f32 to vector<8x128xf32>
    %1308 = arith.mulf %947, %1307 : vector<8x128xf32>
    %1309 = arith.addf %1305, %1308 : vector<8x128xf32>
    %c18_238 = arith.constant 18 : index
    %1310 = memref.load %arg8[%c18_238] : memref<32xf32, #tpu.memory_space<smem>>
    %1311 = vector.broadcast %1310 : f32 to vector<8x128xf32>
    %1312 = arith.mulf %1015, %1311 : vector<8x128xf32>
    %1313 = arith.addf %1309, %1312 : vector<8x128xf32>
    %c22_239 = arith.constant 22 : index
    %1314 = memref.load %arg8[%c22_239] : memref<32xf32, #tpu.memory_space<smem>>
    %1315 = vector.broadcast %1314 : f32 to vector<8x128xf32>
    %1316 = arith.mulf %1083, %1315 : vector<8x128xf32>
    %1317 = arith.addf %1313, %1316 : vector<8x128xf32>
    %c26_240 = arith.constant 26 : index
    %1318 = memref.load %arg8[%c26_240] : memref<32xf32, #tpu.memory_space<smem>>
    %1319 = vector.broadcast %1318 : f32 to vector<8x128xf32>
    %1320 = arith.mulf %1151, %1319 : vector<8x128xf32>
    %1321 = arith.addf %1317, %1320 : vector<8x128xf32>
    %c30_241 = arith.constant 30 : index
    %1322 = memref.load %arg8[%c30_241] : memref<32xf32, #tpu.memory_space<smem>>
    %1323 = vector.broadcast %1322 : f32 to vector<8x128xf32>
    %1324 = arith.mulf %1219, %1323 : vector<8x128xf32>
    %1325 = arith.addf %1321, %1324 : vector<8x128xf32>
    %cst_242 = arith.constant 0.000000e+00 : f32
    %1326 = vector.broadcast %cst_242 : f32 to vector<8x128xf32>
    %1327 = arith.maximumf %1325, %1326 : vector<8x128xf32>
    %c3_243 = arith.constant 3 : index
    %1328 = memref.load %arg8[%c3_243] : memref<32xf32, #tpu.memory_space<smem>>
    %1329 = vector.broadcast %1328 : f32 to vector<8x128xf32>
    %1330 = arith.mulf %743, %1329 : vector<8x128xf32>
    %c3_244 = arith.constant 3 : index
    %1331 = memref.load %arg9[%c3_244] : memref<4xf32, #tpu.memory_space<smem>>
    %1332 = vector.broadcast %1331 : f32 to vector<8x128xf32>
    %1333 = arith.addf %1330, %1332 : vector<8x128xf32>
    %c7_245 = arith.constant 7 : index
    %1334 = memref.load %arg8[%c7_245] : memref<32xf32, #tpu.memory_space<smem>>
    %1335 = vector.broadcast %1334 : f32 to vector<8x128xf32>
    %1336 = arith.mulf %811, %1335 : vector<8x128xf32>
    %1337 = arith.addf %1333, %1336 : vector<8x128xf32>
    %c11_246 = arith.constant 11 : index
    %1338 = memref.load %arg8[%c11_246] : memref<32xf32, #tpu.memory_space<smem>>
    %1339 = vector.broadcast %1338 : f32 to vector<8x128xf32>
    %1340 = arith.mulf %879, %1339 : vector<8x128xf32>
    %1341 = arith.addf %1337, %1340 : vector<8x128xf32>
    %c15_247 = arith.constant 15 : index
    %1342 = memref.load %arg8[%c15_247] : memref<32xf32, #tpu.memory_space<smem>>
    %1343 = vector.broadcast %1342 : f32 to vector<8x128xf32>
    %1344 = arith.mulf %947, %1343 : vector<8x128xf32>
    %1345 = arith.addf %1341, %1344 : vector<8x128xf32>
    %c19_248 = arith.constant 19 : index
    %1346 = memref.load %arg8[%c19_248] : memref<32xf32, #tpu.memory_space<smem>>
    %1347 = vector.broadcast %1346 : f32 to vector<8x128xf32>
    %1348 = arith.mulf %1015, %1347 : vector<8x128xf32>
    %1349 = arith.addf %1345, %1348 : vector<8x128xf32>
    %c23_249 = arith.constant 23 : index
    %1350 = memref.load %arg8[%c23_249] : memref<32xf32, #tpu.memory_space<smem>>
    %1351 = vector.broadcast %1350 : f32 to vector<8x128xf32>
    %1352 = arith.mulf %1083, %1351 : vector<8x128xf32>
    %1353 = arith.addf %1349, %1352 : vector<8x128xf32>
    %c27_250 = arith.constant 27 : index
    %1354 = memref.load %arg8[%c27_250] : memref<32xf32, #tpu.memory_space<smem>>
    %1355 = vector.broadcast %1354 : f32 to vector<8x128xf32>
    %1356 = arith.mulf %1151, %1355 : vector<8x128xf32>
    %1357 = arith.addf %1353, %1356 : vector<8x128xf32>
    %c31_251 = arith.constant 31 : index
    %1358 = memref.load %arg8[%c31_251] : memref<32xf32, #tpu.memory_space<smem>>
    %1359 = vector.broadcast %1358 : f32 to vector<8x128xf32>
    %1360 = arith.mulf %1219, %1359 : vector<8x128xf32>
    %1361 = arith.addf %1357, %1360 : vector<8x128xf32>
    %cst_252 = arith.constant 0.000000e+00 : f32
    %1362 = vector.broadcast %cst_252 : f32 to vector<8x128xf32>
    %1363 = arith.maximumf %1361, %1362 : vector<8x128xf32>
    %c0_253 = arith.constant 0 : index
    %1364 = memref.load %arg10[%c0_253] : memref<8xf32, #tpu.memory_space<smem>>
    %1365 = vector.broadcast %1364 : f32 to vector<8x128xf32>
    %1366 = arith.mulf %1255, %1365 : vector<8x128xf32>
    %c0_254 = arith.constant 0 : index
    %1367 = memref.load %arg11[%c0_254] : memref<2xf32, #tpu.memory_space<smem>>
    %1368 = vector.broadcast %1367 : f32 to vector<8x128xf32>
    %1369 = arith.addf %1366, %1368 : vector<8x128xf32>
    %c2_255 = arith.constant 2 : index
    %1370 = memref.load %arg10[%c2_255] : memref<8xf32, #tpu.memory_space<smem>>
    %1371 = vector.broadcast %1370 : f32 to vector<8x128xf32>
    %1372 = arith.mulf %1291, %1371 : vector<8x128xf32>
    %1373 = arith.addf %1369, %1372 : vector<8x128xf32>
    %c4_256 = arith.constant 4 : index
    %1374 = memref.load %arg10[%c4_256] : memref<8xf32, #tpu.memory_space<smem>>
    %1375 = vector.broadcast %1374 : f32 to vector<8x128xf32>
    %1376 = arith.mulf %1327, %1375 : vector<8x128xf32>
    %1377 = arith.addf %1373, %1376 : vector<8x128xf32>
    %c6_257 = arith.constant 6 : index
    %1378 = memref.load %arg10[%c6_257] : memref<8xf32, #tpu.memory_space<smem>>
    %1379 = vector.broadcast %1378 : f32 to vector<8x128xf32>
    %1380 = arith.mulf %1363, %1379 : vector<8x128xf32>
    %1381 = arith.addf %1377, %1380 : vector<8x128xf32>
    %c1_258 = arith.constant 1 : index
    %1382 = memref.load %arg10[%c1_258] : memref<8xf32, #tpu.memory_space<smem>>
    %1383 = vector.broadcast %1382 : f32 to vector<8x128xf32>
    %1384 = arith.mulf %1255, %1383 : vector<8x128xf32>
    %c1_259 = arith.constant 1 : index
    %1385 = memref.load %arg11[%c1_259] : memref<2xf32, #tpu.memory_space<smem>>
    %1386 = vector.broadcast %1385 : f32 to vector<8x128xf32>
    %1387 = arith.addf %1384, %1386 : vector<8x128xf32>
    %c3_260 = arith.constant 3 : index
    %1388 = memref.load %arg10[%c3_260] : memref<8xf32, #tpu.memory_space<smem>>
    %1389 = vector.broadcast %1388 : f32 to vector<8x128xf32>
    %1390 = arith.mulf %1291, %1389 : vector<8x128xf32>
    %1391 = arith.addf %1387, %1390 : vector<8x128xf32>
    %c5_261 = arith.constant 5 : index
    %1392 = memref.load %arg10[%c5_261] : memref<8xf32, #tpu.memory_space<smem>>
    %1393 = vector.broadcast %1392 : f32 to vector<8x128xf32>
    %1394 = arith.mulf %1327, %1393 : vector<8x128xf32>
    %1395 = arith.addf %1391, %1394 : vector<8x128xf32>
    %c7_262 = arith.constant 7 : index
    %1396 = memref.load %arg10[%c7_262] : memref<8xf32, #tpu.memory_space<smem>>
    %1397 = vector.broadcast %1396 : f32 to vector<8x128xf32>
    %1398 = arith.mulf %1363, %1397 : vector<8x128xf32>
    %1399 = arith.addf %1395, %1398 : vector<8x128xf32>
    %1400 = arith.maximumf %1381, %1399 : vector<8x128xf32>
    %1401 = arith.subf %1381, %1400 : vector<8x128xf32>
    %1402 = math.exp %1401 : vector<8x128xf32>
    %1403 = arith.subf %1399, %1400 : vector<8x128xf32>
    %1404 = math.exp %1403 : vector<8x128xf32>
    %1405 = arith.addf %1402, %1404 : vector<8x128xf32>
    %1406 = math.log %1405 : vector<8x128xf32>
    %1407 = arith.addf %1400, %1406 : vector<8x128xf32>
    %1408 = arith.subf %1381, %1407 : vector<8x128xf32>
    %c0_263 = arith.constant 0 : index
    %c0_264 = arith.constant 0 : index
    %c0_265 = arith.constant 0 : index
    %1409 = vector.load %arg12[%c0_263, %c0_264, %c0_265] : memref<2x8x128xf32, #tpu.memory_space<vmem>>, vector<1x8x128xf32>
    %1410 = vector.shape_cast %1409 : vector<1x8x128xf32> to vector<8x128xf32>
    %1411 = vector.shape_cast %1408 : vector<8x128xf32> to vector<1x8x128xf32>
    tpu.vector_store %arg12[%c0_263, %c0_264, %c0_265], %1411 {strides = array<i32>} : memref<2x8x128xf32, #tpu.memory_space<vmem>>, vector<1x8x128xf32>,
    %1412 = arith.subf %1399, %1407 : vector<8x128xf32>
    %c1_266 = arith.constant 1 : index
    %c0_267 = arith.constant 0 : index
    %c0_268 = arith.constant 0 : index
    %1413 = vector.load %arg12[%c1_266, %c0_267, %c0_268] : memref<2x8x128xf32, #tpu.memory_space<vmem>>, vector<1x8x128xf32>
    %1414 = vector.shape_cast %1413 : vector<1x8x128xf32> to vector<8x128xf32>
    %1415 = vector.shape_cast %1412 : vector<8x128xf32> to vector<1x8x128xf32>
    tpu.vector_store %arg12[%c1_266, %c0_267, %c0_268], %1415 {strides = array<i32>} : memref<2x8x128xf32, #tpu.memory_space<vmem>>, vector<1x8x128xf32>,
    return
  }
  func.func @transform_0(%arg0: i32) -> (i32, i32, i32) {
    %c0_i32 = arith.constant 0 : i32
    %c0_i32_0 = arith.constant 0 : i32
    %c0_i32_1 = arith.constant 0 : i32
    return %c0_i32, %arg0, %c0_i32_0 : i32, i32, i32
  }
  func.func @transform_1(%arg0: i32) -> i32 {
    %c0_i32 = arith.constant 0 : i32
    %c0_i32_0 = arith.constant 0 : i32
    return %c0_i32 : i32
  }
  func.func @transform_2(%arg0: i32) -> i32 {
    %c0_i32 = arith.constant 0 : i32
    %c0_i32_0 = arith.constant 0 : i32
    return %c0_i32 : i32
  }
  func.func @transform_3(%arg0: i32) -> i32 {
    %c0_i32 = arith.constant 0 : i32
    %c0_i32_0 = arith.constant 0 : i32
    return %c0_i32 : i32
  }
  func.func @transform_4(%arg0: i32) -> i32 {
    %c0_i32 = arith.constant 0 : i32
    %c0_i32_0 = arith.constant 0 : i32
    return %c0_i32 : i32
  }
  func.func @transform_5(%arg0: i32) -> i32 {
    %c0_i32 = arith.constant 0 : i32
    %c0_i32_0 = arith.constant 0 : i32
    return %c0_i32 : i32
  }
  func.func @transform_6(%arg0: i32) -> i32 {
    %c0_i32 = arith.constant 0 : i32
    %c0_i32_0 = arith.constant 0 : i32
    return %c0_i32 : i32
  }
  func.func @transform_7(%arg0: i32) -> i32 {
    %c0_i32 = arith.constant 0 : i32
    %c0_i32_0 = arith.constant 0 : i32
    return %c0_i32 : i32
  }
  func.func @transform_8(%arg0: i32) -> i32 {
    %c0_i32 = arith.constant 0 : i32
    %c0_i32_0 = arith.constant 0 : i32
    return %c0_i32 : i32
  }
  func.func @transform_9(%arg0: i32) -> i32 {
    %c0_i32 = arith.constant 0 : i32
    %c0_i32_0 = arith.constant 0 : i32
    return %c0_i32 : i32
  }
  func.func @transform_10(%arg0: i32) -> i32 {
    %c0_i32 = arith.constant 0 : i32
    %c0_i32_0 = arith.constant 0 : i32
    return %c0_i32 : i32
  }
  func.func @transform_11(%arg0: i32) -> (i32, i32, i32) {
    %c0_i32 = arith.constant 0 : i32
    %c0_i32_0 = arith.constant 0 : i32
    %c0_i32_1 = arith.constant 0 : i32
    return %c0_i32, %arg0, %c0_i32_0 : i32, i32, i32
  }
}

</mosaic_0001>

<llo_original>
// kernel: halfmoon_forward.1
$region0: #{halfmoon_forward.1}
  #allocation0 [shape = 'u32[]', space=smem, size = 0x4, offset = 0x4, fixed_abs, tag = 'smem constant byte address 0x4 - core index']
  #allocation1 [shape = 'u32[72,128]{1,0:T(1,128)}', space=vmem, size = 0x9000, scoped, tag = 'internal scratch']
  %s0 = inlined_call_operand.vmem [shape: f32[2,8,128], index: 0, kind: input, shape index: {}]
  %s1 = inlined_call_operand.vmem [shape: f32[16], index: 1, kind: input, shape index: {}]
  %s2 = inlined_call_operand.vmem [shape: f32[8], index: 2, kind: input, shape index: {}]
  %s3 = inlined_call_operand.vmem [shape: f32[128], index: 3, kind: input, shape index: {}]
  %s4 = inlined_call_operand.vmem [shape: f32[16], index: 4, kind: input, shape index: {}]
  %s5 = inlined_call_operand.vmem [shape: f32[128], index: 5, kind: input, shape index: {}]
  %s6 = inlined_call_operand.vmem [shape: f32[8], index: 6, kind: input, shape index: {}]
  %s7 = inlined_call_operand.vmem [shape: f32[32], index: 7, kind: input, shape index: {}]
  %s8 = inlined_call_operand.vmem [shape: f32[4], index: 8, kind: input, shape index: {}]
  %s9 = inlined_call_operand.vmem [shape: f32[8], index: 9, kind: input, shape index: {}]
  %s10 = inlined_call_operand.vmem [shape: f32[2], index: 10, kind: input, shape index: {}]
  %s11 = inlined_call_operand.vmem [shape: f32[2,8,128], index: 11, kind: output, shape index: {}]
  %s12 = sld [smem:[#allocation0]]
  $region94: #{halfmoon_forward.1} parent=0
    _
  %s14 = ssub.s32 1, %s12
  %s15 = scalar_select 0, %s14, %s12
  $region1: #{halfmoon_forward.1} parent=0
    #allocation2 [shape = 'u8[512]{0}', space=smem, size = 0x200, scoped, tag = 'input window, operand 1, single buffered']
    #allocation3 [shape = 's32[1]{0}', space=sflag, size = 0x4, scoped, tag = 'scoped memory for halfmoon_forward.1']
    #allocation4 [shape = 'u8[512]{0}', space=smem, size = 0x200, scoped, tag = 'input window, operand 2, single buffered']
    #allocation5 [shape = 's32[1]{0}', space=sflag, size = 0x4, scoped, tag = 'scoped memory for halfmoon_forward.1']
    #allocation6 [shape = 'u8[512]{0}', space=smem, size = 0x200, scoped, tag = 'input window, operand 3, single buffered']
    #allocation7 [shape = 'u8[512]{0}', space=smem, size = 0x200, scoped, tag = 'input window, operand 4, single buffered']
    #allocation8 [shape = 's32[1]{0}', space=sflag, size = 0x4, scoped, tag = 'scoped memory for halfmoon_forward.1']
    #allocation9 [shape = 'u8[512]{0}', space=smem, size = 0x200, scoped, tag = 'input window, operand 5, single buffered']
    #allocation10 [shape = 'u8[512]{0}', space=smem, size = 0x200, scoped, tag = 'input window, operand 6, single buffered']
    #allocation11 [shape = 's32[1]{0}', space=sflag, size = 0x4, scoped, tag = 'scoped memory for halfmoon_forward.1']
    #allocation12 [shape = 'u8[512]{0}', space=smem, size = 0x200, scoped, tag = 'input window, operand 7, single buffered']
    #allocation13 [shape = 'u8[512]{0}', space=smem, size = 0x200, scoped, tag = 'input window, operand 8, single buffered']
    #allocation14 [shape = 's32[1]{0}', space=sflag, size = 0x4, scoped, tag = 'scoped memory for halfmoon_forward.1']
    #allocation15 [shape = 'u8[512]{0}', space=smem, size = 0x200, scoped, tag = 'input window, operand 9, single buffered']
    #allocation16 [shape = 'u8[512]{0}', space=smem, size = 0x200, scoped, tag = 'input window, operand 10, single buffered']
    #allocation17 [shape = 's32[1]{0}', space=sflag, size = 0x4, scoped, tag = 'scoped memory for halfmoon_forward.1']
    %16 = vsyncpa [#allocation3], 0
    %17 = vsyncpa [#allocation5], 0
    %18 = vsyncpa [#allocation8], 0
    %19 = vsyncpa [#allocation11], 0
    %20 = vsyncpa [#allocation14], 0
    %21 = vsyncpa [#allocation17], 0
    // Predicated region
    $region2: #{halfmoon_forward.1} parent=1 // pred_check
      _
    $region3: #{halfmoon_forward.1} parent=1 // pred_check_branch
      %23 = sbr.rel (0) target = $region5
    $region4: #{halfmoon_forward.1} parent=1 // pred_region
      _
    $region5: #{halfmoon_forward.1} parent=1 // pred_fallthru
      _
    // Predicated region
    $region6: #{halfmoon_forward.1} parent=1 // pred_check
      _
    $region7: #{halfmoon_forward.1} parent=1 // pred_check_branch
      %25 = sbr.rel (0) target = $region9
    $region8: #{halfmoon_forward.1} parent=1 // pred_region
      %27 = vsyncadd [#allocation3], 0
      %s29 = sshll.u32 %s1, 4
      %s30 = int_to_ptr.vmem [resolvable:$true] %s29
      %32 = dma.vmem_to_smem %s30, 16, [#allocation2], [#allocation3]
    $region9: #{halfmoon_forward.1} parent=1 // pred_fallthru
      _
    // Predicated region
    $region10: #{halfmoon_forward.1} parent=1 // pred_check
      _
    $region11: #{halfmoon_forward.1} parent=1 // pred_check_branch
      %34 = sbr.rel (0) target = $region13
    $region12: #{halfmoon_forward.1} parent=1 // pred_region
      %36 = vsyncadd [#allocation5], 0
      %s38 = sshll.u32 %s2, 4
      %s39 = int_to_ptr.vmem [resolvable:$true] %s38
      %41 = dma.vmem_to_smem %s39, 16, [#allocation4], [#allocation5]
    $region13: #{halfmoon_forward.1} parent=1 // pred_fallthru
      _
    // Predicated region
    $region14: #{halfmoon_forward.1} parent=1 // pred_check
      _
    $region15: #{halfmoon_forward.1} parent=1 // pred_check_branch
      %43 = sbr.rel (0) target = $region17
    $region16: #{halfmoon_forward.1} parent=1 // pred_region
      %45 = vsyncadd [#allocation5], 0
      %s47 = sshll.u32 %s3, 4
      %s48 = int_to_ptr.vmem [resolvable:$true] %s47
      %50 = dma.vmem_to_smem %s48, 16, [#allocation6], [#allocation5]
    $region17: #{halfmoon_forward.1} parent=1 // pred_fallthru
      _
    // Predicated region
    $region18: #{halfmoon_forward.1} parent=1 // pred_check
      _
    $region19: #{halfmoon_forward.1} parent=1 // pred_check_branch
      %52 = sbr.rel (0) target = $region21
    $region20: #{halfmoon_forward.1} parent=1 // pred_region
      %54 = vsyncadd [#allocation8], 0
      %s56 = sshll.u32 %s4, 4
      %s57 = int_to_ptr.vmem [resolvable:$true] %s56
      %59 = dma.vmem_to_smem %s57, 16, [#allocation7], [#allocation8]
    $region21: #{halfmoon_forward.1} parent=1 // pred_fallthru
      _
    // Predicated region
    $region22: #{halfmoon_forward.1} parent=1 // pred_check
      _
    $region23: #{halfmoon_forward.1} parent=1 // pred_check_branch
      %61 = sbr.rel (0) target = $region25
    $region24: #{halfmoon_forward.1} parent=1 // pred_region
      %63 = vsyncadd [#allocation8], 0
      %s65 = sshll.u32 %s5, 4
      %s66 = int_to_ptr.vmem [resolvable:$true] %s65
      %68 = dma.vmem_to_smem %s66, 16, [#allocation9], [#allocation8]
    $region25: #{halfmoon_forward.1} parent=1 // pred_fallthru
      _
    // Predicated region
    $region26: #{halfmoon_forward.1} parent=1 // pred_check
      _
    $region27: #{halfmoon_forward.1} parent=1 // pred_check_branch
      %70 = sbr.rel (0) target = $region29
    $region28: #{halfmoon_forward.1} parent=1 // pred_region
      %72 = vsyncadd [#allocation11], 0
      %s74 = sshll.u32 %s6, 4
      %s75 = int_to_ptr.vmem [resolvable:$true] %s74
      %77 = dma.vmem_to_smem %s75, 16, [#allocation10], [#allocation11]
    $region29: #{halfmoon_forward.1} parent=1 // pred_fallthru
      _
    // Predicated region
    $region30: #{halfmoon_forward.1} parent=1 // pred_check
      _
    $region31: #{halfmoon_forward.1} parent=1 // pred_check_branch
      %79 = sbr.rel (0) target = $region33
    $region32: #{halfmoon_forward.1} parent=1 // pred_region
      %81 = vsyncadd [#allocation11], 0
      %s83 = sshll.u32 %s7, 4
      %s84 = int_to_ptr.vmem [resolvable:$true] %s83
      %86 = dma.vmem_to_smem %s84, 16, [#allocation12], [#allocation11]
    $region33: #{halfmoon_forward.1} parent=1 // pred_fallthru
      _
    // Predicated region
    $region34: #{halfmoon_forward.1} parent=1 // pred_check
      _
    $region35: #{halfmoon_forward.1} parent=1 // pred_check_branch
      %88 = sbr.rel (0) target = $region37
    $region36: #{halfmoon_forward.1} parent=1 // pred_region
      %90 = vsyncadd [#allocation14], 0
      %s92 = sshll.u32 %s8, 4
      %s93 = int_to_ptr.vmem [resolvable:$true] %s92
      %95 = dma.vmem_to_smem %s93, 16, [#allocation13], [#allocation14]
    $region37: #{halfmoon_forward.1} parent=1 // pred_fallthru
      _
    // Predicated region
    $region38: #{halfmoon_forward.1} parent=1 // pred_check
      _
    $region39: #{halfmoon_forward.1} parent=1 // pred_check_branch
      %97 = sbr.rel (0) target = $region41
    $region40: #{halfmoon_forward.1} parent=1 // pred_region
      %99 = vsyncadd [#allocation14], 0
      %s101 = sshll.u32 %s9, 4
      %s102 = int_to_ptr.vmem [resolvable:$true] %s101
      %104 = dma.vmem_to_smem %s102, 16, [#allocation15], [#allocation14]
    $region41: #{halfmoon_forward.1} parent=1 // pred_fallthru
      _
    // Predicated region
    $region42: #{halfmoon_forward.1} parent=1 // pred_check
      _
    $region43: #{halfmoon_forward.1} parent=1 // pred_check_branch
      %106 = sbr.rel (0) target = $region45
    $region44: #{halfmoon_forward.1} parent=1 // pred_region
      %108 = vsyncadd [#allocation17], 0
      %s110 = sshll.u32 %s10, 4
      %s111 = int_to_ptr.vmem [resolvable:$true] %s110
      %113 = dma.vmem_to_smem %s111, 16, [#allocation16], [#allocation17]
    $region45: #{halfmoon_forward.1} parent=1 // pred_fallthru
      _
    // Predicated region
    $region46: #{halfmoon_forward.1} parent=1 // pred_check
      _
    $region47: #{halfmoon_forward.1} parent=1 // pred_check_branch
      %115 = sbr.rel (0) target = $region49
    $region48: #{halfmoon_forward.1} parent=1 // pred_region
      %117 = dma.done [#allocation3], 16
    $region49: #{halfmoon_forward.1} parent=1 // pred_fallthru
      _
    // Predicated region
    $region50: #{halfmoon_forward.1} parent=1 // pred_check
      _
    $region51: #{halfmoon_forward.1} parent=1 // pred_check_branch
      %119 = sbr.rel (0) target = $region53
    $region52: #{halfmoon_forward.1} parent=1 // pred_region
      %121 = dma.done [#allocation5], 16
    $region53: #{halfmoon_forward.1} parent=1 // pred_fallthru
      _
    // Predicated region
    $region54: #{halfmoon_forward.1} parent=1 // pred_check
      _
    $region55: #{halfmoon_forward.1} parent=1 // pred_check_branch
      %123 = sbr.rel (0) target = $region57
    $region56: #{halfmoon_forward.1} parent=1 // pred_region
      %125 = dma.done [#allocation5], 16
    $region57: #{halfmoon_forward.1} parent=1 // pred_fallthru
      _
    // Predicated region
    $region58: #{halfmoon_forward.1} parent=1 // pred_check
      _
    $region59: #{halfmoon_forward.1} parent=1 // pred_check_branch
      %127 = sbr.rel (0) target = $region61
    $region60: #{halfmoon_forward.1} parent=1 // pred_region
      %129 = dma.done [#allocation8], 16
    $region61: #{halfmoon_forward.1} parent=1 // pred_fallthru
      _
    // Predicated region
    $region62: #{halfmoon_forward.1} parent=1 // pred_check
      _
    $region63: #{halfmoon_forward.1} parent=1 // pred_check_branch
      %131 = sbr.rel (0) target = $region65
    $region64: #{halfmoon_forward.1} parent=1 // pred_region
      %133 = dma.done [#allocation8], 16
    $region65: #{halfmoon_forward.1} parent=1 // pred_fallthru
      _
    // Predicated region
    $region66: #{halfmoon_forward.1} parent=1 // pred_check
      _
    $region67: #{halfmoon_forward.1} parent=1 // pred_check_branch
      %135 = sbr.rel (0) target = $region69
    $region68: #{halfmoon_forward.1} parent=1 // pred_region
      %137 = dma.done [#allocation11], 16
    $region69: #{halfmoon_forward.1} parent=1 // pred_fallthru
      _
    // Predicated region
    $region70: #{halfmoon_forward.1} parent=1 // pred_check
      _
    $region71: #{halfmoon_forward.1} parent=1 // pred_check_branch
      %139 = sbr.rel (0) target = $region73
    $region72: #{halfmoon_forward.1} parent=1 // pred_region
      %141 = dma.done [#allocation11], 16
    $region73: #{halfmoon_forward.1} parent=1 // pred_fallthru
      _
    // Predicated region
    $region74: #{halfmoon_forward.1} parent=1 // pred_check
      _
    $region75: #{halfmoon_forward.1} parent=1 // pred_check_branch
      %143 = sbr.rel (0) target = $region77
    $region76: #{halfmoon_forward.1} parent=1 // pred_region
      %145 = dma.done [#allocation14], 16
    $region77: #{halfmoon_forward.1} parent=1 // pred_fallthru
      _
    // Predicated region
    $region78: #{halfmoon_forward.1} parent=1 // pred_check
      _
    $region79: #{halfmoon_forward.1} parent=1 // pred_check_branch
      %147 = sbr.rel (0) target = $region81
    $region80: #{halfmoon_forward.1} parent=1 // pred_region
      %149 = dma.done [#allocation14], 16
    $region81: #{halfmoon_forward.1} parent=1 // pred_fallthru
      _
    // Predicated region
    $region82: #{halfmoon_forward.1} parent=1 // pred_check
      _
    $region83: #{halfmoon_forward.1} parent=1 // pred_check_branch
      %151 = sbr.rel (0) target = $region85
    $region84: #{halfmoon_forward.1} parent=1 // pred_region
      %153 = dma.done [#allocation17], 16
    $region85: #{halfmoon_forward.1} parent=1 // pred_fallthru
      _
    %154 = sfence
    %v155 = vld [vmem:[%s0] sm:$0xff]
    %s156 = scalar_lea.vmem %s0, 8
    %v157 = vld [vmem:[%s156] sm:$0xff]
    %s158 = sld [smem:[#allocation2]]
    %v159 = vstv %s158
    %v160 = vmul.f32 %v155, %v159
    %s161 = sld [smem:[#allocation4]]
    %v162 = vstv %s161
    %v163 = vadd.f32 %v160, %v162
    %s164 = sld [smem:[#allocation2 + $0x8]]
    %v165 = vstv %s164
    %v166 = vmul.f32 %v157, %v165
    %v167 = vadd.f32 %v163, %v166
    %v168 = vmax.f32 %v167, 0.0
    %s169 = sld [smem:[#allocation2 + $0x1]]
    %v170 = vstv %s169
    %v171 = vmul.f32 %v155, %v170
    %s172 = sld [smem:[#allocation4 + $0x1]]
    %v173 = vstv %s172
    %v174 = vadd.f32 %v171, %v173
    %s175 = sld [smem:[#allocation2 + $0x9]]
    %v176 = vstv %s175
    %v177 = vmul.f32 %v157, %v176
    %v178 = vadd.f32 %v174, %v177
    %v179 = vmax.f32 %v178, 0.0
    %s180 = sld [smem:[#allocation2 + $0x2]]
    %v181 = vstv %s180
    %v182 = vmul.f32 %v155, %v181
    %s183 = sld [smem:[#allocation4 + $0x2]]
    %v184 = vstv %s183
    %v185 = vadd.f32 %v182, %v184
    %s186 = sld [smem:[#allocation2 + $0xa]]
    %v187 = vstv %s186
    %v188 = vmul.f32 %v157, %v187
    %v189 = vadd.f32 %v185, %v188
    %v190 = vmax.f32 %v189, 0.0
    %s191 = sld [smem:[#allocation2 + $0x3]]
    %v192 = vstv %s191
    %v193 = vmul.f32 %v155, %v192
    %s194 = sld [smem:[#allocation4 + $0x3]]
    %v195 = vstv %s194
    %v196 = vadd.f32 %v193, %v195
    %s197 = sld [smem:[#allocation2 + $0xb]]
    %v198 = vstv %s197
    %v199 = vmul.f32 %v157, %v198
    %v200 = vadd.f32 %v196, %v199
    %v201 = vmax.f32 %v200, 0.0
    %s202 = sld [smem:[#allocation2 + $0x4]]
    %v203 = vstv %s202
    %v204 = vmul.f32 %v155, %v203
    %s205 = sld [smem:[#allocation4 + $0x4]]
    %v206 = vstv %s205
    %v207 = vadd.f32 %v204, %v206
    %s208 = sld [smem:[#allocation2 + $0xc]]
    %v209 = vstv %s208
    %v210 = vmul.f32 %v157, %v209
    %v211 = vadd.f32 %v207, %v210
    %v212 = vmax.f32 %v211, 0.0
    %s213 = sld [smem:[#allocation2 + $0x5]]
    %v214 = vstv %s213
    %v215 = vmul.f32 %v155, %v214
    %s216 = sld [smem:[#allocation4 + $0x5]]
    %v217 = vstv %s216
    %v218 = vadd.f32 %v215, %v217
    %s219 = sld [smem:[#allocation2 + $0xd]]
    %v220 = vstv %s219
    %v221 = vmul.f32 %v157, %v220
    %v222 = vadd.f32 %v218, %v221
    %v223 = vmax.f32 %v222, 0.0
    %s224 = sld [smem:[#allocation2 + $0x6]]
    %v225 = vstv %s224
    %v226 = vmul.f32 %v155, %v225
    %s227 = sld [smem:[#allocation4 + $0x6]]
    %v228 = vstv %s227
    %v229 = vadd.f32 %v226, %v228
    %s230 = sld [smem:[#allocation2 + $0xe]]
    %v231 = vstv %s230
    %v232 = vmul.f32 %v157, %v231
    %v233 = vadd.f32 %v229, %v232
    %v234 = vmax.f32 %v233, 0.0
    %s235 = sld [smem:[#allocation2 + $0x7]]
    %v236 = vstv %s235
    %v237 = vmul.f32 %v155, %v236
    %s238 = sld [smem:[#allocation4 + $0x7]]
    %v239 = vstv %s238
    %v240 = vadd.f32 %v237, %v239
    %s241 = sld [smem:[#allocation2 + $0xf]]
    %v242 = vstv %s241
    %v243 = vmul.f32 %v157, %v242
    %v244 = vadd.f32 %v240, %v243
    %v245 = vmax.f32 %v244, 0.0
    %s246 = sld [smem:[#allocation6]]
    %v247 = vstv %s246
    %v248 = vmul.f32 %v168, %v247
    %s249 = sld [smem:[#allocation7]]
    %v250 = vstv %s249
    %v251 = vadd.f32 %v248, %v250
    %s252 = sld [smem:[#allocation6 + $0x10]]
    %v253 = vstv %s252
    %v254 = vmul.f32 %v179, %v253
    %v255 = vadd.f32 %v251, %v254
    %s256 = sld [smem:[#allocation6 + $0x20]]
    %v257 = vstv %s256
    %v258 = vmul.f32 %v190, %v257
    %v259 = vadd.f32 %v255, %v258
    %s260 = sld [smem:[#allocation6 + $0x30]]
    %v261 = vstv %s260
    %v262 = vmul.f32 %v201, %v261
    %v263 = vadd.f32 %v259, %v262
    %s264 = sld [smem:[#allocation6 + $0x40]]
    %v265 = vstv %s264
    %v266 = vmul.f32 %v212, %v265
    %v267 = vadd.f32 %v263, %v266
    %s268 = sld [smem:[#allocation6 + $0x50]]
    %v269 = vstv %s268
    %v270 = vmul.f32 %v223, %v269
    %v271 = vadd.f32 %v267, %v270
    %s272 = sld [smem:[#allocation6 + $0x60]]
    %v273 = vstv %s272
    %v274 = vmul.f32 %v234, %v273
    %v275 = vadd.f32 %v271, %v274
    %s276 = sld [smem:[#allocation6 + $0x70]]
    %v277 = vstv %s276
    %v278 = vmul.f32 %v245, %v277
    %v279 = vadd.f32 %v275, %v278
    %v280 = vmax.f32 %v279, 0.0
    %s281 = sld [smem:[#allocation6 + $0x1]]
    %v282 = vstv %s281
    %v283 = vmul.f32 %v168, %v282
    %s284 = sld [smem:[#allocation7 + $0x1]]
    %v285 = vstv %s284
    %v286 = vadd.f32 %v283, %v285
    %s287 = sld [smem:[#allocation6 + $0x11]]
    %v288 = vstv %s287
    %v289 = vmul.f32 %v179, %v288
    %v290 = vadd.f32 %v286, %v289
    %s291 = sld [smem:[#allocation6 + $0x21]]
    %v292 = vstv %s291
    %v293 = vmul.f32 %v190, %v292
    %v294 = vadd.f32 %v290, %v293
    %s295 = sld [smem:[#allocation6 + $0x31]]
    %v296 = vstv %s295
    %v297 = vmul.f32 %v201, %v296
    %v298 = vadd.f32 %v294, %v297
    %s299 = sld [smem:[#allocation6 + $0x41]]
    %v300 = vstv %s299
    %v301 = vmul.f32 %v212, %v300
    %v302 = vadd.f32 %v298, %v301
    %s303 = sld [smem:[#allocation6 + $0x51]]
    %v304 = vstv %s303
    %v305 = vmul.f32 %v223, %v304
    %v306 = vadd.f32 %v302, %v305
    %s307 = sld [smem:[#allocation6 + $0x61]]
    %v308 = vstv %s307
    %v309 = vmul.f32 %v234, %v308
    %v310 = vadd.f32 %v306, %v309
    %s311 = sld [smem:[#allocation6 + $0x71]]
    %v312 = vstv %s311
    %v313 = vmul.f32 %v245, %v312
    %v314 = vadd.f32 %v310, %v313
    %v315 = vmax.f32 %v314, 0.0
    %s316 = sld [smem:[#allocation6 + $0x2]]
    %v317 = vstv %s316
    %v318 = vmul.f32 %v168, %v317
    %s319 = sld [smem:[#allocation7 + $0x2]]
    %v320 = vstv %s319
    %v321 = vadd.f32 %v318, %v320
    %s322 = sld [smem:[#allocation6 + $0x12]]
    %v323 = vstv %s322
    %v324 = vmul.f32 %v179, %v323
    %v325 = vadd.f32 %v321, %v324
    %s326 = sld [smem:[#allocation6 + $0x22]]
    %v327 = vstv %s326
    %v328 = vmul.f32 %v190, %v327
    %v329 = vadd.f32 %v325, %v328
    %s330 = sld [smem:[#allocation6 + $0x32]]
    %v331 = vstv %s330
    %v332 = vmul.f32 %v201, %v331
    %v333 = vadd.f32 %v329, %v332
    %s334 = sld [smem:[#allocation6 + $0x42]]
    %v335 = vstv %s334
    %v336 = vmul.f32 %v212, %v335
    %v337 = vadd.f32 %v333, %v336
    %s338 = sld [smem:[#allocation6 + $0x52]]
    %v339 = vstv %s338
    %v340 = vmul.f32 %v223, %v339
    %v341 = vadd.f32 %v337, %v340
    %s342 = sld [smem:[#allocation6 + $0x62]]
    %v343 = vstv %s342
    %v344 = vmul.f32 %v234, %v343
    %v345 = vadd.f32 %v341, %v344
    %s346 = sld [smem:[#allocation6 + $0x72]]
    %v347 = vstv %s346
    %v348 = vmul.f32 %v245, %v347
    %v349 = vadd.f32 %v345, %v348
    %v350 = vmax.f32 %v349, 0.0
    %s351 = sld [smem:[#allocation6 + $0x3]]
    %v352 = vstv %s351
    %v353 = vmul.f32 %v168, %v352
    %s354 = sld [smem:[#allocation7 + $0x3]]
    %v355 = vstv %s354
    %v356 = vadd.f32 %v353, %v355
    %s357 = sld [smem:[#allocation6 + $0x13]]
    %v358 = vstv %s357
    %v359 = vmul.f32 %v179, %v358
    %v360 = vadd.f32 %v356, %v359
    %s361 = sld [smem:[#allocation6 + $0x23]]
    %v362 = vstv %s361
    %v363 = vmul.f32 %v190, %v362
    %v364 = vadd.f32 %v360, %v363
    %s365 = sld [smem:[#allocation6 + $0x33]]
    %v366 = vstv %s365
    %v367 = vmul.f32 %v201, %v366
    %v368 = vadd.f32 %v364, %v367
    %s369 = sld [smem:[#allocation6 + $0x43]]
    %v370 = vstv %s369
    %v371 = vmul.f32 %v212, %v370
    %v372 = vadd.f32 %v368, %v371
    %s373 = sld [smem:[#allocation6 + $0x53]]
    %v374 = vstv %s373
    %v375 = vmul.f32 %v223, %v374
    %v376 = vadd.f32 %v372, %v375
    %s377 = sld [smem:[#allocation6 + $0x63]]
    %v378 = vstv %s377
    %v379 = vmul.f32 %v234, %v378
    %v380 = vadd.f32 %v376, %v379
    %s381 = sld [smem:[#allocation6 + $0x73]]
    %v382 = vstv %s381
    %v383 = vmul.f32 %v245, %v382
    %v384 = vadd.f32 %v380, %v383
    %v385 = vmax.f32 %v384, 0.0
    %s386 = sld [smem:[#allocation6 + $0x4]]
    %v387 = vstv %s386
    %v388 = vmul.f32 %v168, %v387
    %s389 = sld [smem:[#allocation7 + $0x4]]
    %v390 = vstv %s389
    %v391 = vadd.f32 %v388, %v390
    %s392 = sld [smem:[#allocation6 + $0x14]]
    %v393 = vstv %s392
    %v394 = vmul.f32 %v179, %v393
    %v395 = vadd.f32 %v391, %v394
    %s396 = sld [smem:[#allocation6 + $0x24]]
    %v397 = vstv %s396
    %v398 = vmul.f32 %v190, %v397
    %v399 = vadd.f32 %v395, %v398
    %s400 = sld [smem:[#allocation6 + $0x34]]
    %v401 = vstv %s400
    %v402 = vmul.f32 %v201, %v401
    %v403 = vadd.f32 %v399, %v402
    %s404 = sld [smem:[#allocation6 + $0x44]]
    %v405 = vstv %s404
    %v406 = vmul.f32 %v212, %v405
    %v407 = vadd.f32 %v403, %v406
    %s408 = sld [smem:[#allocation6 + $0x54]]
    %v409 = vstv %s408
    %v410 = vmul.f32 %v223, %v409
    %v411 = vadd.f32 %v407, %v410
    %s412 = sld [smem:[#allocation6 + $0x64]]
    %v413 = vstv %s412
    %v414 = vmul.f32 %v234, %v413
    %v415 = vadd.f32 %v411, %v414
    %s416 = sld [smem:[#allocation6 + $0x74]]
    %v417 = vstv %s416
    %v418 = vmul.f32 %v245, %v417
    %v419 = vadd.f32 %v415, %v418
    %v420 = vmax.f32 %v419, 0.0
    %s421 = sld [smem:[#allocation6 + $0x5]]
    %v422 = vstv %s421
    %v423 = vmul.f32 %v168, %v422
    %s424 = sld [smem:[#allocation7 + $0x5]]
    %v425 = vstv %s424
    %v426 = vadd.f32 %v423, %v425
    %s427 = sld [smem:[#allocation6 + $0x15]]
    %v428 = vstv %s427
    %v429 = vmul.f32 %v179, %v428
    %v430 = vadd.f32 %v426, %v429
    %s431 = sld [smem:[#allocation6 + $0x25]]
    %v432 = vstv %s431
    %v433 = vmul.f32 %v190, %v432
    %v434 = vadd.f32 %v430, %v433
    %s435 = sld [smem:[#allocation6 + $0x35]]
    %v436 = vstv %s435
    %v437 = vmul.f32 %v201, %v436
    %v438 = vadd.f32 %v434, %v437
    %s439 = sld [smem:[#allocation6 + $0x45]]
    %v440 = vstv %s439
    %v441 = vmul.f32 %v212, %v440
    %v442 = vadd.f32 %v438, %v441
    %s443 = sld [smem:[#allocation6 + $0x55]]
    %v444 = vstv %s443
    %v445 = vmul.f32 %v223, %v444
    %v446 = vadd.f32 %v442, %v445
    %s447 = sld [smem:[#allocation6 + $0x65]]
    %v448 = vstv %s447
    %v449 = vmul.f32 %v234, %v448
    %v450 = vadd.f32 %v446, %v449
    %s451 = sld [smem:[#allocation6 + $0x75]]
    %v452 = vstv %s451
    %v453 = vmul.f32 %v245, %v452
    %v454 = vadd.f32 %v450, %v453
    %v455 = vmax.f32 %v454, 0.0
    %s456 = sld [smem:[#allocation6 + $0x6]]
    %v457 = vstv %s456
    %v458 = vmul.f32 %v168, %v457
    %s459 = sld [smem:[#allocation7 + $0x6]]
    %v460 = vstv %s459
    %v461 = vadd.f32 %v458, %v460
    %s462 = sld [smem:[#allocation6 + $0x16]]
    %v463 = vstv %s462
    %v464 = vmul.f32 %v179, %v463
    %v465 = vadd.f32 %v461, %v464
    %s466 = sld [smem:[#allocation6 + $0x26]]
    %v467 = vstv %s466
    %v468 = vmul.f32 %v190, %v467
    %v469 = vadd.f32 %v465, %v468
    %s470 = sld [smem:[#allocation6 + $0x36]]
    %v471 = vstv %s470
    %v472 = vmul.f32 %v201, %v471
    %v473 = vadd.f32 %v469, %v472
    %s474 = sld [smem:[#allocation6 + $0x46]]
    %v475 = vstv %s474
    %v476 = vmul.f32 %v212, %v475
    %v477 = vadd.f32 %v473, %v476
    %s478 = sld [smem:[#allocation6 + $0x56]]
    %v479 = vstv %s478
    %v480 = vmul.f32 %v223, %v479
    %v481 = vadd.f32 %v477, %v480
    %s482 = sld [smem:[#allocation6 + $0x66]]
    %v483 = vstv %s482
    %v484 = vmul.f32 %v234, %v483
    %v485 = vadd.f32 %v481, %v484
    %s486 = sld [smem:[#allocation6 + $0x76]]
    %v487 = vstv %s486
    %v488 = vmul.f32 %v245, %v487
    %v489 = vadd.f32 %v485, %v488
    %v490 = vmax.f32 %v489, 0.0
    %s491 = sld [smem:[#allocation6 + $0x7]]
    %v492 = vstv %s491
    %v493 = vmul.f32 %v168, %v492
    %s494 = sld [smem:[#allocation7 + $0x7]]
    %v495 = vstv %s494
    %v496 = vadd.f32 %v493, %v495
    %s497 = sld [smem:[#allocation6 + $0x17]]
    %v498 = vstv %s497
    %v499 = vmul.f32 %v179, %v498
    %v500 = vadd.f32 %v496, %v499
    %s501 = sld [smem:[#allocation6 + $0x27]]
    %v502 = vstv %s501
    %v503 = vmul.f32 %v190, %v502
    %v504 = vadd.f32 %v500, %v503
    %s505 = sld [smem:[#allocation6 + $0x37]]
    %v506 = vstv %s505
    %v507 = vmul.f32 %v201, %v506
    %v508 = vadd.f32 %v504, %v507
    %s509 = sld [smem:[#allocation6 + $0x47]]
    %v510 = vstv %s509
    %v511 = vmul.f32 %v212, %v510
    %v512 = vadd.f32 %v508, %v511
    %s513 = sld [smem:[#allocation6 + $0x57]]
    %v514 = vstv %s513
    %v515 = vmul.f32 %v223, %v514
    %v516 = vadd.f32 %v512, %v515
    %s517 = sld [smem:[#allocation6 + $0x67]]
    %v518 = vstv %s517
    %v519 = vmul.f32 %v234, %v518
    %v520 = vadd.f32 %v516, %v519
    %s521 = sld [smem:[#allocation6 + $0x77]]
    %v522 = vstv %s521
    %v523 = vmul.f32 %v245, %v522
    %v524 = vadd.f32 %v520, %v523
    %v525 = vmax.f32 %v524, 0.0
    %s526 = sld [smem:[#allocation6 + $0x8]]
    %v527 = vstv %s526
    %v528 = vmul.f32 %v168, %v527
    %s529 = sld [smem:[#allocation7 + $0x8]]
    %v530 = vstv %s529
    %v531 = vadd.f32 %v528, %v530
    %s532 = sld [smem:[#allocation6 + $0x18]]
    %v533 = vstv %s532
    %v534 = vmul.f32 %v179, %v533
    %v535 = vadd.f32 %v531, %v534
    %s536 = sld [smem:[#allocation6 + $0x28]]
    %v537 = vstv %s536
    %v538 = vmul.f32 %v190, %v537
    %v539 = vadd.f32 %v535, %v538
    %s540 = sld [smem:[#allocation6 + $0x38]]
    %v541 = vstv %s540
    %v542 = vmul.f32 %v201, %v541
    %v543 = vadd.f32 %v539, %v542
    %s544 = sld [smem:[#allocation6 + $0x48]]
    %v545 = vstv %s544
    %v546 = vmul.f32 %v212, %v545
    %v547 = vadd.f32 %v543, %v546
    %s548 = sld [smem:[#allocation6 + $0x58]]
    %v549 = vstv %s548
    %v550 = vmul.f32 %v223, %v549
    %v551 = vadd.f32 %v547, %v550
    %s552 = sld [smem:[#allocation6 + $0x68]]
    %v553 = vstv %s552
    %v554 = vmul.f32 %v234, %v553
    %v555 = vadd.f32 %v551, %v554
    %s556 = sld [smem:[#allocation6 + $0x78]]
    %v557 = vstv %s556
    %v558 = vmul.f32 %v245, %v557
    %v559 = vadd.f32 %v555, %v558
    %v560 = vmax.f32 %v559, 0.0
    %s561 = sld [smem:[#allocation6 + $0x9]]
    %v562 = vstv %s561
    %v563 = vmul.f32 %v168, %v562
    %s564 = sld [smem:[#allocation7 + $0x9]]
    %v565 = vstv %s564
    %v566 = vadd.f32 %v563, %v565
    %s567 = sld [smem:[#allocation6 + $0x19]]
    %v568 = vstv %s567
    %v569 = vmul.f32 %v179, %v568
    %v570 = vadd.f32 %v566, %v569
    %s571 = sld [smem:[#allocation6 + $0x29]]
    %v572 = vstv %s571
    %v573 = vmul.f32 %v190, %v572
    %v574 = vadd.f32 %v570, %v573
    %s575 = sld [smem:[#allocation6 + $0x39]]
    %v576 = vstv %s575
    %v577 = vmul.f32 %v201, %v576
    %v578 = vadd.f32 %v574, %v577
    %s579 = sld [smem:[#allocation6 + $0x49]]
    %v580 = vstv %s579
    %v581 = vmul.f32 %v212, %v580
    %v582 = vadd.f32 %v578, %v581
    %s583 = sld [smem:[#allocation6 + $0x59]]
    %v584 = vstv %s583
    %v585 = vmul.f32 %v223, %v584
    %v586 = vadd.f32 %v582, %v585
    %s587 = sld [smem:[#allocation6 + $0x69]]
    %v588 = vstv %s587
    %v589 = vmul.f32 %v234, %v588
    %v590 = vadd.f32 %v586, %v589
    %s591 = sld [smem:[#allocation6 + $0x79]]
    %v592 = vstv %s591
    %v593 = vmul.f32 %v245, %v592
    %v594 = vadd.f32 %v590, %v593
    %v595 = vmax.f32 %v594, 0.0
    %s596 = sld [smem:[#allocation6 + $0xa]]
    %v597 = vstv %s596
    %v598 = vmul.f32 %v168, %v597
    %s599 = sld [smem:[#allocation7 + $0xa]]
    %v600 = vstv %s599
    %v601 = vadd.f32 %v598, %v600
    %s602 = sld [smem:[#allocation6 + $0x1a]]
    %v603 = vstv %s602
    %v604 = vmul.f32 %v179, %v603
    %v605 = vadd.f32 %v601, %v604
    %s606 = sld [smem:[#allocation6 + $0x2a]]
    %v607 = vstv %s606
    %v608 = vmul.f32 %v190, %v607
    %v609 = vadd.f32 %v605, %v608
    %s610 = sld [smem:[#allocation6 + $0x3a]]
    %v611 = vstv %s610
    %v612 = vmul.f32 %v201, %v611
    %v613 = vadd.f32 %v609, %v612
    %s614 = sld [smem:[#allocation6 + $0x4a]]
    %v615 = vstv %s614
    %v616 = vmul.f32 %v212, %v615
    %v617 = vadd.f32 %v613, %v616
    %s618 = sld [smem:[#allocation6 + $0x5a]]
    %v619 = vstv %s618
    %v620 = vmul.f32 %v223, %v619
    %v621 = vadd.f32 %v617, %v620
    %s622 = sld [smem:[#allocation6 + $0x6a]]
    %v623 = vstv %s622
    %v624 = vmul.f32 %v234, %v623
    %v625 = vadd.f32 %v621, %v624
    %s626 = sld [smem:[#allocation6 + $0x7a]]
    %v627 = vstv %s626
    %v628 = vmul.f32 %v245, %v627
    %v629 = vadd.f32 %v625, %v628
    %v630 = vmax.f32 %v629, 0.0
    %s631 = sld [smem:[#allocation6 + $0xb]]
    %v632 = vstv %s631
    %v633 = vmul.f32 %v168, %v632
    %s634 = sld [smem:[#allocation7 + $0xb]]
    %v635 = vstv %s634
    %v636 = vadd.f32 %v633, %v635
    %s637 = sld [smem:[#allocation6 + $0x1b]]
    %v638 = vstv %s637
    %v639 = vmul.f32 %v179, %v638
    %v640 = vadd.f32 %v636, %v639
    %s641 = sld [smem:[#allocation6 + $0x2b]]
    %v642 = vstv %s641
    %v643 = vmul.f32 %v190, %v642
    %v644 = vadd.f32 %v640, %v643
    %s645 = sld [smem:[#allocation6 + $0x3b]]
    %v646 = vstv %s645
    %v647 = vmul.f32 %v201, %v646
    %v648 = vadd.f32 %v644, %v647
    %s649 = sld [smem:[#allocation6 + $0x4b]]
    %v650 = vstv %s649
    %v651 = vmul.f32 %v212, %v650
    %v652 = vadd.f32 %v648, %v651
    %s653 = sld [smem:[#allocation6 + $0x5b]]
    %v654 = vstv %s653
    %v655 = vmul.f32 %v223, %v654
    %v656 = vadd.f32 %v652, %v655
    %s657 = sld [smem:[#allocation6 + $0x6b]]
    %v658 = vstv %s657
    %v659 = vmul.f32 %v234, %v658
    %v660 = vadd.f32 %v656, %v659
    %s661 = sld [smem:[#allocation6 + $0x7b]]
    %v662 = vstv %s661
    %v663 = vmul.f32 %v245, %v662
    %v664 = vadd.f32 %v660, %v663
    %v665 = vmax.f32 %v664, 0.0
    %s666 = sld [smem:[#allocation6 + $0xc]]
    %v667 = vstv %s666
    %v668 = vmul.f32 %v168, %v667
    %s669 = sld [smem:[#allocation7 + $0xc]]
    %v670 = vstv %s669
    %v671 = vadd.f32 %v668, %v670
    %s672 = sld [smem:[#allocation6 + $0x1c]]
    %v673 = vstv %s672
    %v674 = vmul.f32 %v179, %v673
    %v675 = vadd.f32 %v671, %v674
    %s676 = sld [smem:[#allocation6 + $0x2c]]
    %v677 = vstv %s676
    %v678 = vmul.f32 %v190, %v677
    %v679 = vadd.f32 %v675, %v678
    %s680 = sld [smem:[#allocation6 + $0x3c]]
    %v681 = vstv %s680
    %v682 = vmul.f32 %v201, %v681
    %v683 = vadd.f32 %v679, %v682
    %s684 = sld [smem:[#allocation6 + $0x4c]]
    %v685 = vstv %s684
    %v686 = vmul.f32 %v212, %v685
    %v687 = vadd.f32 %v683, %v686
    %s688 = sld [smem:[#allocation6 + $0x5c]]
    %v689 = vstv %s688
    %v690 = vmul.f32 %v223, %v689
    %v691 = vadd.f32 %v687, %v690
    %s692 = sld [smem:[#allocation6 + $0x6c]]
    %v693 = vstv %s692
    %v694 = vmul.f32 %v234, %v693
    %v695 = vadd.f32 %v691, %v694
    %s696 = sld [smem:[#allocation6 + $0x7c]]
    %v697 = vstv %s696
    %v698 = vmul.f32 %v245, %v697
    %v699 = vadd.f32 %v695, %v698
    %v700 = vmax.f32 %v699, 0.0
    %s701 = sld [smem:[#allocation6 + $0xd]]
    %v702 = vstv %s701
    %v703 = vmul.f32 %v168, %v702
    %s704 = sld [smem:[#allocation7 + $0xd]]
    %v705 = vstv %s704
    %v706 = vadd.f32 %v703, %v705
    %s707 = sld [smem:[#allocation6 + $0x1d]]
    %v708 = vstv %s707
    %v709 = vmul.f32 %v179, %v708
    %v710 = vadd.f32 %v706, %v709
    %s711 = sld [smem:[#allocation6 + $0x2d]]
    %v712 = vstv %s711
    %v713 = vmul.f32 %v190, %v712
    %v714 = vadd.f32 %v710, %v713
    %s715 = sld [smem:[#allocation6 + $0x3d]]
    %v716 = vstv %s715
    %v717 = vmul.f32 %v201, %v716
    %v718 = vadd.f32 %v714, %v717
    %s719 = sld [smem:[#allocation6 + $0x4d]]
    %v720 = vstv %s719
    %v721 = vmul.f32 %v212, %v720
    %v722 = vadd.f32 %v718, %v721
    %s723 = sld [smem:[#allocation6 + $0x5d]]
    %v724 = vstv %s723
    %v725 = vmul.f32 %v223, %v724
    %v726 = vadd.f32 %v722, %v725
    %s727 = sld [smem:[#allocation6 + $0x6d]]
    %v728 = vstv %s727
    %v729 = vmul.f32 %v234, %v728
    %v730 = vadd.f32 %v726, %v729
    %s731 = sld [smem:[#allocation6 + $0x7d]]
    %v732 = vstv %s731
    %v733 = vmul.f32 %v245, %v732
    %v734 = vadd.f32 %v730, %v733
    %v735 = vmax.f32 %v734, 0.0
    %s736 = sld [smem:[#allocation6 + $0xe]]
    %v737 = vstv %s736
    %v738 = vmul.f32 %v168, %v737
    %s739 = sld [smem:[#allocation7 + $0xe]]
    %v740 = vstv %s739
    %v741 = vadd.f32 %v738, %v740
    %s742 = sld [smem:[#allocation6 + $0x1e]]
    %v743 = vstv %s742
    %v744 = vmul.f32 %v179, %v743
    %v745 = vadd.f32 %v741, %v744
    %s746 = sld [smem:[#allocation6 + $0x2e]]
    %v747 = vstv %s746
    %v748 = vmul.f32 %v190, %v747
    %v749 = vadd.f32 %v745, %v748
    %s750 = sld [smem:[#allocation6 + $0x3e]]
    %v751 = vstv %s750
    %v752 = vmul.f32 %v201, %v751
    %v753 = vadd.f32 %v749, %v752
    %s754 = sld [smem:[#allocation6 + $0x4e]]
    %v755 = vstv %s754
    %v756 = vmul.f32 %v212, %v755
    %v757 = vadd.f32 %v753, %v756
    %s758 = sld [smem:[#allocation6 + $0x5e]]
    %v759 = vstv %s758
    %v760 = vmul.f32 %v223, %v759
    %v761 = vadd.f32 %v757, %v760
    %s762 = sld [smem:[#allocation6 + $0x6e]]
    %v763 = vstv %s762
    %v764 = vmul.f32 %v234, %v763
    %v765 = vadd.f32 %v761, %v764
    %s766 = sld [smem:[#allocation6 + $0x7e]]
    %v767 = vstv %s766
    %v768 = vmul.f32 %v245, %v767
    %v769 = vadd.f32 %v765, %v768
    %v770 = vmax.f32 %v769, 0.0
    %s771 = sld [smem:[#allocation6 + $0xf]]
    %v772 = vstv %s771
    %v773 = vmul.f32 %v168, %v772
    %s774 = sld [smem:[#allocation7 + $0xf]]
    %v775 = vstv %s774
    %v776 = vadd.f32 %v773, %v775
    %s777 = sld [smem:[#allocation6 + $0x1f]]
    %v778 = vstv %s777
    %v779 = vmul.f32 %v179, %v778
    %v780 = vadd.f32 %v776, %v779
    %s781 = sld [smem:[#allocation6 + $0x2f]]
    %v782 = vstv %s781
    %v783 = vmul.f32 %v190, %v782
    %v784 = vadd.f32 %v780, %v783
    %s785 = sld [smem:[#allocation6 + $0x3f]]
    %v786 = vstv %s785
    %v787 = vmul.f32 %v201, %v786
    %v788 = vadd.f32 %v784, %v787
    %s789 = sld [smem:[#allocation6 + $0x4f]]
    %v790 = vstv %s789
    %v791 = vmul.f32 %v212, %v790
    %v792 = vadd.f32 %v788, %v791
    %s793 = sld [smem:[#allocation6 + $0x5f]]
    %v794 = vstv %s793
    %v795 = vmul.f32 %v223, %v794
    %v796 = vadd.f32 %v792, %v795
    %s797 = sld [smem:[#allocation6 + $0x6f]]
    %v798 = vstv %s797
    %v799 = vmul.f32 %v234, %v798
    %v800 = vadd.f32 %v796, %v799
    %s801 = sld [smem:[#allocation6 + $0x7f]]
    %v802 = vstv %s801
    %v803 = vmul.f32 %v245, %v802
    %v804 = vadd.f32 %v800, %v803
    %v805 = vmax.f32 %v804, 0.0
    %s806 = sld [smem:[#allocation9]]
    %v807 = vstv %s806
    %v808 = vmul.f32 %v280, %v807
    %s809 = sld [smem:[#allocation10]]
    %v810 = vstv %s809
    %v811 = vadd.f32 %v808, %v810
    %s812 = sld [smem:[#allocation9 + $0x8]]
    %v813 = vstv %s812
    %v814 = vmul.f32 %v315, %v813
    %v815 = vadd.f32 %v811, %v814
    %s816 = sld [smem:[#allocation9 + $0x10]]
    %v817 = vstv %s816
    %v818 = vmul.f32 %v350, %v817
    %v819 = vadd.f32 %v815, %v818
    %s820 = sld [smem:[#allocation9 + $0x18]]
    %v821 = vstv %s820
    %v822 = vmul.f32 %v385, %v821
    %v823 = vadd.f32 %v819, %v822
    %s824 = sld [smem:[#allocation9 + $0x20]]
    %v825 = vstv %s824
    %v826 = vmul.f32 %v420, %v825
    %v827 = vadd.f32 %v823, %v826
    %s828 = sld [smem:[#allocation9 + $0x28]]
    %v829 = vstv %s828
    %v830 = vmul.f32 %v455, %v829
    %v831 = vadd.f32 %v827, %v830
    %s832 = sld [smem:[#allocation9 + $0x30]]
    %v833 = vstv %s832
    %v834 = vmul.f32 %v490, %v833
    %v835 = vadd.f32 %v831, %v834
    %s836 = sld [smem:[#allocation9 + $0x38]]
    %v837 = vstv %s836
    %v838 = vmul.f32 %v525, %v837
    %v839 = vadd.f32 %v835, %v838
    %s840 = sld [smem:[#allocation9 + $0x40]]
    %v841 = vstv %s840
    %v842 = vmul.f32 %v560, %v841
    %v843 = vadd.f32 %v839, %v842
    %s844 = sld [smem:[#allocation9 + $0x48]]
    %v845 = vstv %s844
    %v846 = vmul.f32 %v595, %v845
    %v847 = vadd.f32 %v843, %v846
    %s848 = sld [smem:[#allocation9 + $0x50]]
    %v849 = vstv %s848
    %v850 = vmul.f32 %v630, %v849
    %v851 = vadd.f32 %v847, %v850
    %s852 = sld [smem:[#allocation9 + $0x58]]
    %v853 = vstv %s852
    %v854 = vmul.f32 %v665, %v853
    %v855 = vadd.f32 %v851, %v854
    %s856 = sld [smem:[#allocation9 + $0x60]]
    %v857 = vstv %s856
    %v858 = vmul.f32 %v700, %v857
    %v859 = vadd.f32 %v855, %v858
    %s860 = sld [smem:[#allocation9 + $0x68]]
    %v861 = vstv %s860
    %v862 = vmul.f32 %v735, %v861
    %v863 = vadd.f32 %v859, %v862
    %s864 = sld [smem:[#allocation9 + $0x70]]
    %v865 = vstv %s864
    %v866 = vmul.f32 %v770, %v865
    %v867 = vadd.f32 %v863, %v866
    %s868 = sld [smem:[#allocation9 + $0x78]]
    %v869 = vstv %s868
    %v870 = vmul.f32 %v805, %v869
    %v871 = vadd.f32 %v867, %v870
    %v872 = vmax.f32 %v871, 0.0
    %s873 = sld [smem:[#allocation9 + $0x1]]
    %v874 = vstv %s873
    %v875 = vmul.f32 %v280, %v874
    %s876 = sld [smem:[#allocation10 + $0x1]]
    %v877 = vstv %s876
    %v878 = vadd.f32 %v875, %v877
    %s879 = sld [smem:[#allocation9 + $0x9]]
    %v880 = vstv %s879
    %v881 = vmul.f32 %v315, %v880
    %v882 = vadd.f32 %v878, %v881
    %s883 = sld [smem:[#allocation9 + $0x11]]
    %v884 = vstv %s883
    %v885 = vmul.f32 %v350, %v884
    %v886 = vadd.f32 %v882, %v885
    %s887 = sld [smem:[#allocation9 + $0x19]]
    %v888 = vstv %s887
    %v889 = vmul.f32 %v385, %v888
    %v890 = vadd.f32 %v886, %v889
    %s891 = sld [smem:[#allocation9 + $0x21]]
    %v892 = vstv %s891
    %v893 = vmul.f32 %v420, %v892
    %v894 = vadd.f32 %v890, %v893
    %s895 = sld [smem:[#allocation9 + $0x29]]
    %v896 = vstv %s895
    %v897 = vmul.f32 %v455, %v896
    %v898 = vadd.f32 %v894, %v897
    %s899 = sld [smem:[#allocation9 + $0x31]]
    %v900 = vstv %s899
    %v901 = vmul.f32 %v490, %v900
    %v902 = vadd.f32 %v898, %v901
    %s903 = sld [smem:[#allocation9 + $0x39]]
    %v904 = vstv %s903
    %v905 = vmul.f32 %v525, %v904
    %v906 = vadd.f32 %v902, %v905
    %s907 = sld [smem:[#allocation9 + $0x41]]
    %v908 = vstv %s907
    %v909 = vmul.f32 %v560, %v908
    %v910 = vadd.f32 %v906, %v909
    %s911 = sld [smem:[#allocation9 + $0x49]]
    %v912 = vstv %s911
    %v913 = vmul.f32 %v595, %v912
    %v914 = vadd.f32 %v910, %v913
    %s915 = sld [smem:[#allocation9 + $0x51]]
    %v916 = vstv %s915
    %v917 = vmul.f32 %v630, %v916
    %v918 = vadd.f32 %v914, %v917
    %s919 = sld [smem:[#allocation9 + $0x59]]
    %v920 = vstv %s919
    %v921 = vmul.f32 %v665, %v920
    %v922 = vadd.f32 %v918, %v921
    %s923 = sld [smem:[#allocation9 + $0x61]]
    %v924 = vstv %s923
    %v925 = vmul.f32 %v700, %v924
    %v926 = vadd.f32 %v922, %v925
    %s927 = sld [smem:[#allocation9 + $0x69]]
    %v928 = vstv %s927
    %v929 = vmul.f32 %v735, %v928
    %v930 = vadd.f32 %v926, %v929
    %s931 = sld [smem:[#allocation9 + $0x71]]
    %v932 = vstv %s931
    %v933 = vmul.f32 %v770, %v932
    %v934 = vadd.f32 %v930, %v933
    %s935 = sld [smem:[#allocation9 + $0x79]]
    %v936 = vstv %s935
    %v937 = vmul.f32 %v805, %v936
    %v938 = vadd.f32 %v934, %v937
    %v939 = vmax.f32 %v938, 0.0
    %s940 = sld [smem:[#allocation9 + $0x2]]
    %v941 = vstv %s940
    %v942 = vmul.f32 %v280, %v941
    %s943 = sld [smem:[#allocation10 + $0x2]]
    %v944 = vstv %s943
    %v945 = vadd.f32 %v942, %v944
    %s946 = sld [smem:[#allocation9 + $0xa]]
    %v947 = vstv %s946
    %v948 = vmul.f32 %v315, %v947
    %v949 = vadd.f32 %v945, %v948
    %s950 = sld [smem:[#allocation9 + $0x12]]
    %v951 = vstv %s950
    %v952 = vmul.f32 %v350, %v951
    %v953 = vadd.f32 %v949, %v952
    %s954 = sld [smem:[#allocation9 + $0x1a]]
    %v955 = vstv %s954
    %v956 = vmul.f32 %v385, %v955
    %v957 = vadd.f32 %v953, %v956
    %s958 = sld [smem:[#allocation9 + $0x22]]
    %v959 = vstv %s958
    %v960 = vmul.f32 %v420, %v959
    %v961 = vadd.f32 %v957, %v960
    %s962 = sld [smem:[#allocation9 + $0x2a]]
    %v963 = vstv %s962
    %v964 = vmul.f32 %v455, %v963
    %v965 = vadd.f32 %v961, %v964
    %s966 = sld [smem:[#allocation9 + $0x32]]
    %v967 = vstv %s966
    %v968 = vmul.f32 %v490, %v967
    %v969 = vadd.f32 %v965, %v968
    %s970 = sld [smem:[#allocation9 + $0x3a]]
    %v971 = vstv %s970
    %v972 = vmul.f32 %v525, %v971
    %v973 = vadd.f32 %v969, %v972
    %s974 = sld [smem:[#allocation9 + $0x42]]
    %v975 = vstv %s974
    %v976 = vmul.f32 %v560, %v975
    %v977 = vadd.f32 %v973, %v976
    %s978 = sld [smem:[#allocation9 + $0x4a]]
    %v979 = vstv %s978
    %v980 = vmul.f32 %v595, %v979
    %v981 = vadd.f32 %v977, %v980
    %s982 = sld [smem:[#allocation9 + $0x52]]
    %v983 = vstv %s982
    %v984 = vmul.f32 %v630, %v983
    %v985 = vadd.f32 %v981, %v984
    %s986 = sld [smem:[#allocation9 + $0x5a]]
    %v987 = vstv %s986
    %v988 = vmul.f32 %v665, %v987
    %v989 = vadd.f32 %v985, %v988
    %s990 = sld [smem:[#allocation9 + $0x62]]
    %v991 = vstv %s990
    %v992 = vmul.f32 %v700, %v991
    %v993 = vadd.f32 %v989, %v992
    %s994 = sld [smem:[#allocation9 + $0x6a]]
    %v995 = vstv %s994
    %v996 = vmul.f32 %v735, %v995
    %v997 = vadd.f32 %v993, %v996
    %s998 = sld [smem:[#allocation9 + $0x72]]
    %v999 = vstv %s998
    %v1000 = vmul.f32 %v770, %v999
    %v1001 = vadd.f32 %v997, %v1000
    %s1002 = sld [smem:[#allocation9 + $0x7a]]
    %v1003 = vstv %s1002
    %v1004 = vmul.f32 %v805, %v1003
    %v1005 = vadd.f32 %v1001, %v1004
    %v1006 = vmax.f32 %v1005, 0.0
    %s1007 = sld [smem:[#allocation9 + $0x3]]
    %v1008 = vstv %s1007
    %v1009 = vmul.f32 %v280, %v1008
    %s1010 = sld [smem:[#allocation10 + $0x3]]
    %v1011 = vstv %s1010
    %v1012 = vadd.f32 %v1009, %v1011
    %s1013 = sld [smem:[#allocation9 + $0xb]]
    %v1014 = vstv %s1013
    %v1015 = vmul.f32 %v315, %v1014
    %v1016 = vadd.f32 %v1012, %v1015
    %s1017 = sld [smem:[#allocation9 + $0x13]]
    %v1018 = vstv %s1017
    %v1019 = vmul.f32 %v350, %v1018
    %v1020 = vadd.f32 %v1016, %v1019
    %s1021 = sld [smem:[#allocation9 + $0x1b]]
    %v1022 = vstv %s1021
    %v1023 = vmul.f32 %v385, %v1022
    %v1024 = vadd.f32 %v1020, %v1023
    %s1025 = sld [smem:[#allocation9 + $0x23]]
    %v1026 = vstv %s1025
    %v1027 = vmul.f32 %v420, %v1026
    %v1028 = vadd.f32 %v1024, %v1027
    %s1029 = sld [smem:[#allocation9 + $0x2b]]
    %v1030 = vstv %s1029
    %v1031 = vmul.f32 %v455, %v1030
    %v1032 = vadd.f32 %v1028, %v1031
    %s1033 = sld [smem:[#allocation9 + $0x33]]
    %v1034 = vstv %s1033
    %v1035 = vmul.f32 %v490, %v1034
    %v1036 = vadd.f32 %v1032, %v1035
    %s1037 = sld [smem:[#allocation9 + $0x3b]]
    %v1038 = vstv %s1037
    %v1039 = vmul.f32 %v525, %v1038
    %v1040 = vadd.f32 %v1036, %v1039
    %s1041 = sld [smem:[#allocation9 + $0x43]]
    %v1042 = vstv %s1041
    %v1043 = vmul.f32 %v560, %v1042
    %v1044 = vadd.f32 %v1040, %v1043
    %s1045 = sld [smem:[#allocation9 + $0x4b]]
    %v1046 = vstv %s1045
    %v1047 = vmul.f32 %v595, %v1046
    %v1048 = vadd.f32 %v1044, %v1047
    %s1049 = sld [smem:[#allocation9 + $0x53]]
    %v1050 = vstv %s1049
    %v1051 = vmul.f32 %v630, %v1050
    %v1052 = vadd.f32 %v1048, %v1051
    %s1053 = sld [smem:[#allocation9 + $0x5b]]
    %v1054 = vstv %s1053
    %v1055 = vmul.f32 %v665, %v1054
    %v1056 = vadd.f32 %v1052, %v1055
    %s1057 = sld [smem:[#allocation9 + $0x63]]
    %v1058 = vstv %s1057
    %v1059 = vmul.f32 %v700, %v1058
    %v1060 = vadd.f32 %v1056, %v1059
    %s1061 = sld [smem:[#allocation9 + $0x6b]]
    %v1062 = vstv %s1061
    %v1063 = vmul.f32 %v735, %v1062
    %v1064 = vadd.f32 %v1060, %v1063
    %s1065 = sld [smem:[#allocation9 + $0x73]]
    %v1066 = vstv %s1065
    %v1067 = vmul.f32 %v770, %v1066
    %v1068 = vadd.f32 %v1064, %v1067
    %s1069 = sld [smem:[#allocation9 + $0x7b]]
    %v1070 = vstv %s1069
    %v1071 = vmul.f32 %v805, %v1070
    %v1072 = vadd.f32 %v1068, %v1071
    %v1073 = vmax.f32 %v1072, 0.0
    %s1074 = sld [smem:[#allocation9 + $0x4]]
    %v1075 = vstv %s1074
    %v1076 = vmul.f32 %v280, %v1075
    %s1077 = sld [smem:[#allocation10 + $0x4]]
    %v1078 = vstv %s1077
    %v1079 = vadd.f32 %v1076, %v1078
    %s1080 = sld [smem:[#allocation9 + $0xc]]
    %v1081 = vstv %s1080
    %v1082 = vmul.f32 %v315, %v1081
    %v1083 = vadd.f32 %v1079, %v1082
    %s1084 = sld [smem:[#allocation9 + $0x14]]
    %v1085 = vstv %s1084
    %v1086 = vmul.f32 %v350, %v1085
    %v1087 = vadd.f32 %v1083, %v1086
    %s1088 = sld [smem:[#allocation9 + $0x1c]]
    %v1089 = vstv %s1088
    %v1090 = vmul.f32 %v385, %v1089
    %v1091 = vadd.f32 %v1087, %v1090
    %s1092 = sld [smem:[#allocation9 + $0x24]]
    %v1093 = vstv %s1092
    %v1094 = vmul.f32 %v420, %v1093
    %v1095 = vadd.f32 %v1091, %v1094
    %s1096 = sld [smem:[#allocation9 + $0x2c]]
    %v1097 = vstv %s1096
    %v1098 = vmul.f32 %v455, %v1097
    %v1099 = vadd.f32 %v1095, %v1098
    %s1100 = sld [smem:[#allocation9 + $0x34]]
    %v1101 = vstv %s1100
    %v1102 = vmul.f32 %v490, %v1101
    %v1103 = vadd.f32 %v1099, %v1102
    %s1104 = sld [smem:[#allocation9 + $0x3c]]
    %v1105 = vstv %s1104
    %v1106 = vmul.f32 %v525, %v1105
    %v1107 = vadd.f32 %v1103, %v1106
    %s1108 = sld [smem:[#allocation9 + $0x44]]
    %v1109 = vstv %s1108
    %v1110 = vmul.f32 %v560, %v1109
    %v1111 = vadd.f32 %v1107, %v1110
    %s1112 = sld [smem:[#allocation9 + $0x4c]]
    %v1113 = vstv %s1112
    %v1114 = vmul.f32 %v595, %v1113
    %v1115 = vadd.f32 %v1111, %v1114
    %s1116 = sld [smem:[#allocation9 + $0x54]]
    %v1117 = vstv %s1116
    %v1118 = vmul.f32 %v630, %v1117
    %v1119 = vadd.f32 %v1115, %v1118
    %s1120 = sld [smem:[#allocation9 + $0x5c]]
    %v1121 = vstv %s1120
    %v1122 = vmul.f32 %v665, %v1121
    %v1123 = vadd.f32 %v1119, %v1122
    %s1124 = sld [smem:[#allocation9 + $0x64]]
    %v1125 = vstv %s1124
    %v1126 = vmul.f32 %v700, %v1125
    %v1127 = vadd.f32 %v1123, %v1126
    %s1128 = sld [smem:[#allocation9 + $0x6c]]
    %v1129 = vstv %s1128
    %v1130 = vmul.f32 %v735, %v1129
    %v1131 = vadd.f32 %v1127, %v1130
    %s1132 = sld [smem:[#allocation9 + $0x74]]
    %v1133 = vstv %s1132
    %v1134 = vmul.f32 %v770, %v1133
    %v1135 = vadd.f32 %v1131, %v1134
    %s1136 = sld [smem:[#allocation9 + $0x7c]]
    %v1137 = vstv %s1136
    %v1138 = vmul.f32 %v805, %v1137
    %v1139 = vadd.f32 %v1135, %v1138
    %v1140 = vmax.f32 %v1139, 0.0
    %s1141 = sld [smem:[#allocation9 + $0x5]]
    %v1142 = vstv %s1141
    %v1143 = vmul.f32 %v280, %v1142
    %s1144 = sld [smem:[#allocation10 + $0x5]]
    %v1145 = vstv %s1144
    %v1146 = vadd.f32 %v1143, %v1145
    %s1147 = sld [smem:[#allocation9 + $0xd]]
    %v1148 = vstv %s1147
    %v1149 = vmul.f32 %v315, %v1148
    %v1150 = vadd.f32 %v1146, %v1149
    %s1151 = sld [smem:[#allocation9 + $0x15]]
    %v1152 = vstv %s1151
    %v1153 = vmul.f32 %v350, %v1152
    %v1154 = vadd.f32 %v1150, %v1153
    %s1155 = sld [smem:[#allocation9 + $0x1d]]
    %v1156 = vstv %s1155
    %v1157 = vmul.f32 %v385, %v1156
    %v1158 = vadd.f32 %v1154, %v1157
    %s1159 = sld [smem:[#allocation9 + $0x25]]
    %v1160 = vstv %s1159
    %v1161 = vmul.f32 %v420, %v1160
    %v1162 = vadd.f32 %v1158, %v1161
    %s1163 = sld [smem:[#allocation9 + $0x2d]]
    %v1164 = vstv %s1163
    %v1165 = vmul.f32 %v455, %v1164
    %v1166 = vadd.f32 %v1162, %v1165
    %s1167 = sld [smem:[#allocation9 + $0x35]]
    %v1168 = vstv %s1167
    %v1169 = vmul.f32 %v490, %v1168
    %v1170 = vadd.f32 %v1166, %v1169
    %s1171 = sld [smem:[#allocation9 + $0x3d]]
    %v1172 = vstv %s1171
    %v1173 = vmul.f32 %v525, %v1172
    %v1174 = vadd.f32 %v1170, %v1173
    %s1175 = sld [smem:[#allocation9 + $0x45]]
    %v1176 = vstv %s1175
    %v1177 = vmul.f32 %v560, %v1176
    %v1178 = vadd.f32 %v1174, %v1177
    %s1179 = sld [smem:[#allocation9 + $0x4d]]
    %v1180 = vstv %s1179
    %v1181 = vmul.f32 %v595, %v1180
    %v1182 = vadd.f32 %v1178, %v1181
    %s1183 = sld [smem:[#allocation9 + $0x55]]
    %v1184 = vstv %s1183
    %v1185 = vmul.f32 %v630, %v1184
    %v1186 = vadd.f32 %v1182, %v1185
    %s1187 = sld [smem:[#allocation9 + $0x5d]]
    %v1188 = vstv %s1187
    %v1189 = vmul.f32 %v665, %v1188
    %v1190 = vadd.f32 %v1186, %v1189
    %s1191 = sld [smem:[#allocation9 + $0x65]]
    %v1192 = vstv %s1191
    %v1193 = vmul.f32 %v700, %v1192
    %v1194 = vadd.f32 %v1190, %v1193
    %s1195 = sld [smem:[#allocation9 + $0x6d]]
    %v1196 = vstv %s1195
    %v1197 = vmul.f32 %v735, %v1196
    %v1198 = vadd.f32 %v1194, %v1197
    %s1199 = sld [smem:[#allocation9 + $0x75]]
    %v1200 = vstv %s1199
    %v1201 = vmul.f32 %v770, %v1200
    %v1202 = vadd.f32 %v1198, %v1201
    %s1203 = sld [smem:[#allocation9 + $0x7d]]
    %v1204 = vstv %s1203
    %v1205 = vmul.f32 %v805, %v1204
    %v1206 = vadd.f32 %v1202, %v1205
    %v1207 = vmax.f32 %v1206, 0.0
    %s1208 = sld [smem:[#allocation9 + $0x6]]
    %v1209 = vstv %s1208
    %v1210 = vmul.f32 %v280, %v1209
    %s1211 = sld [smem:[#allocation10 + $0x6]]
    %v1212 = vstv %s1211
    %v1213 = vadd.f32 %v1210, %v1212
    %s1214 = sld [smem:[#allocation9 + $0xe]]
    %v1215 = vstv %s1214
    %v1216 = vmul.f32 %v315, %v1215
    %v1217 = vadd.f32 %v1213, %v1216
    %s1218 = sld [smem:[#allocation9 + $0x16]]
    %v1219 = vstv %s1218
    %v1220 = vmul.f32 %v350, %v1219
    %v1221 = vadd.f32 %v1217, %v1220
    %s1222 = sld [smem:[#allocation9 + $0x1e]]
    %v1223 = vstv %s1222
    %v1224 = vmul.f32 %v385, %v1223
    %v1225 = vadd.f32 %v1221, %v1224
    %s1226 = sld [smem:[#allocation9 + $0x26]]
    %v1227 = vstv %s1226
    %v1228 = vmul.f32 %v420, %v1227
    %v1229 = vadd.f32 %v1225, %v1228
    %s1230 = sld [smem:[#allocation9 + $0x2e]]
    %v1231 = vstv %s1230
    %v1232 = vmul.f32 %v455, %v1231
    %v1233 = vadd.f32 %v1229, %v1232
    %s1234 = sld [smem:[#allocation9 + $0x36]]
    %v1235 = vstv %s1234
    %v1236 = vmul.f32 %v490, %v1235
    %v1237 = vadd.f32 %v1233, %v1236
    %s1238 = sld [smem:[#allocation9 + $0x3e]]
    %v1239 = vstv %s1238
    %v1240 = vmul.f32 %v525, %v1239
    %v1241 = vadd.f32 %v1237, %v1240
    %s1242 = sld [smem:[#allocation9 + $0x46]]
    %v1243 = vstv %s1242
    %v1244 = vmul.f32 %v560, %v1243
    %v1245 = vadd.f32 %v1241, %v1244
    %s1246 = sld [smem:[#allocation9 + $0x4e]]
    %v1247 = vstv %s1246
    %v1248 = vmul.f32 %v595, %v1247
    %v1249 = vadd.f32 %v1245, %v1248
    %s1250 = sld [smem:[#allocation9 + $0x56]]
    %v1251 = vstv %s1250
    %v1252 = vmul.f32 %v630, %v1251
    %v1253 = vadd.f32 %v1249, %v1252
    %s1254 = sld [smem:[#allocation9 + $0x5e]]
    %v1255 = vstv %s1254
    %v1256 = vmul.f32 %v665, %v1255
    %v1257 = vadd.f32 %v1253, %v1256
    %s1258 = sld [smem:[#allocation9 + $0x66]]
    %v1259 = vstv %s1258
    %v1260 = vmul.f32 %v700, %v1259
    %v1261 = vadd.f32 %v1257, %v1260
    %s1262 = sld [smem:[#allocation9 + $0x6e]]
    %v1263 = vstv %s1262
    %v1264 = vmul.f32 %v735, %v1263
    %v1265 = vadd.f32 %v1261, %v1264
    %s1266 = sld [smem:[#allocation9 + $0x76]]
    %v1267 = vstv %s1266
    %v1268 = vmul.f32 %v770, %v1267
    %v1269 = vadd.f32 %v1265, %v1268
    %s1270 = sld [smem:[#allocation9 + $0x7e]]
    %v1271 = vstv %s1270
    %v1272 = vmul.f32 %v805, %v1271
    %v1273 = vadd.f32 %v1269, %v1272
    %v1274 = vmax.f32 %v1273, 0.0
    %s1275 = sld [smem:[#allocation9 + $0x7]]
    %v1276 = vstv %s1275
    %v1277 = vmul.f32 %v280, %v1276
    %s1278 = sld [smem:[#allocation10 + $0x7]]
    %v1279 = vstv %s1278
    %v1280 = vadd.f32 %v1277, %v1279
    %s1281 = sld [smem:[#allocation9 + $0xf]]
    %v1282 = vstv %s1281
    %v1283 = vmul.f32 %v315, %v1282
    %v1284 = vadd.f32 %v1280, %v1283
    %s1285 = sld [smem:[#allocation9 + $0x17]]
    %v1286 = vstv %s1285
    %v1287 = vmul.f32 %v350, %v1286
    %v1288 = vadd.f32 %v1284, %v1287
    %s1289 = sld [smem:[#allocation9 + $0x1f]]
    %v1290 = vstv %s1289
    %v1291 = vmul.f32 %v385, %v1290
    %v1292 = vadd.f32 %v1288, %v1291
    %s1293 = sld [smem:[#allocation9 + $0x27]]
    %v1294 = vstv %s1293
    %v1295 = vmul.f32 %v420, %v1294
    %v1296 = vadd.f32 %v1292, %v1295
    %s1297 = sld [smem:[#allocation9 + $0x2f]]
    %v1298 = vstv %s1297
    %v1299 = vmul.f32 %v455, %v1298
    %v1300 = vadd.f32 %v1296, %v1299
    %s1301 = sld [smem:[#allocation9 + $0x37]]
    %v1302 = vstv %s1301
    %v1303 = vmul.f32 %v490, %v1302
    %v1304 = vadd.f32 %v1300, %v1303
    %s1305 = sld [smem:[#allocation9 + $0x3f]]
    %v1306 = vstv %s1305
    %v1307 = vmul.f32 %v525, %v1306
    %v1308 = vadd.f32 %v1304, %v1307
    %s1309 = sld [smem:[#allocation9 + $0x47]]
    %v1310 = vstv %s1309
    %v1311 = vmul.f32 %v560, %v1310
    %v1312 = vadd.f32 %v1308, %v1311
    %s1313 = sld [smem:[#allocation9 + $0x4f]]
    %v1314 = vstv %s1313
    %v1315 = vmul.f32 %v595, %v1314
    %v1316 = vadd.f32 %v1312, %v1315
    %s1317 = sld [smem:[#allocation9 + $0x57]]
    %v1318 = vstv %s1317
    %v1319 = vmul.f32 %v630, %v1318
    %v1320 = vadd.f32 %v1316, %v1319
    %s1321 = sld [smem:[#allocation9 + $0x5f]]
    %v1322 = vstv %s1321
    %v1323 = vmul.f32 %v665, %v1322
    %v1324 = vadd.f32 %v1320, %v1323
    %s1325 = sld [smem:[#allocation9 + $0x67]]
    %v1326 = vstv %s1325
    %v1327 = vmul.f32 %v700, %v1326
    %v1328 = vadd.f32 %v1324, %v1327
    %s1329 = sld [smem:[#allocation9 + $0x6f]]
    %v1330 = vstv %s1329
    %v1331 = vmul.f32 %v735, %v1330
    %v1332 = vadd.f32 %v1328, %v1331
    %s1333 = sld [smem:[#allocation9 + $0x77]]
    %v1334 = vstv %s1333
    %v1335 = vmul.f32 %v770, %v1334
    %v1336 = vadd.f32 %v1332, %v1335
    %s1337 = sld [smem:[#allocation9 + $0x7f]]
    %v1338 = vstv %s1337
    %v1339 = vmul.f32 %v805, %v1338
    %v1340 = vadd.f32 %v1336, %v1339
    %v1341 = vmax.f32 %v1340, 0.0
    %s1342 = sld [smem:[#allocation12]]
    %v1343 = vstv %s1342
    %v1344 = vmul.f32 %v872, %v1343
    %s1345 = sld [smem:[#allocation13]]
    %v1346 = vstv %s1345
    %v1347 = vadd.f32 %v1344, %v1346
    %s1348 = sld [smem:[#allocation12 + $0x4]]
    %v1349 = vstv %s1348
    %v1350 = vmul.f32 %v939, %v1349
    %v1351 = vadd.f32 %v1347, %v1350
    %s1352 = sld [smem:[#allocation12 + $0x8]]
    %v1353 = vstv %s1352
    %v1354 = vmul.f32 %v1006, %v1353
    %v1355 = vadd.f32 %v1351, %v1354
    %s1356 = sld [smem:[#allocation12 + $0xc]]
    %v1357 = vstv %s1356
    %v1358 = vmul.f32 %v1073, %v1357
    %v1359 = vadd.f32 %v1355, %v1358
    %s1360 = sld [smem:[#allocation12 + $0x10]]
    %v1361 = vstv %s1360
    %v1362 = vmul.f32 %v1140, %v1361
    %v1363 = vadd.f32 %v1359, %v1362
    %s1364 = sld [smem:[#allocation12 + $0x14]]
    %v1365 = vstv %s1364
    %v1366 = vmul.f32 %v1207, %v1365
    %v1367 = vadd.f32 %v1363, %v1366
    %s1368 = sld [smem:[#allocation12 + $0x18]]
    %v1369 = vstv %s1368
    %v1370 = vmul.f32 %v1274, %v1369
    %v1371 = vadd.f32 %v1367, %v1370
    %s1372 = sld [smem:[#allocation12 + $0x1c]]
    %v1373 = vstv %s1372
    %v1374 = vmul.f32 %v1341, %v1373
    %v1375 = vadd.f32 %v1371, %v1374
    %v1376 = vmax.f32 %v1375, 0.0
    %s1377 = sld [smem:[#allocation12 + $0x1]]
    %v1378 = vstv %s1377
    %v1379 = vmul.f32 %v872, %v1378
    %s1380 = sld [smem:[#allocation13 + $0x1]]
    %v1381 = vstv %s1380
    %v1382 = vadd.f32 %v1379, %v1381
    %s1383 = sld [smem:[#allocation12 + $0x5]]
    %v1384 = vstv %s1383
    %v1385 = vmul.f32 %v939, %v1384
    %v1386 = vadd.f32 %v1382, %v1385
    %s1387 = sld [smem:[#allocation12 + $0x9]]
    %v1388 = vstv %s1387
    %v1389 = vmul.f32 %v1006, %v1388
    %v1390 = vadd.f32 %v1386, %v1389
    %s1391 = sld [smem:[#allocation12 + $0xd]]
    %v1392 = vstv %s1391
    %v1393 = vmul.f32 %v1073, %v1392
    %v1394 = vadd.f32 %v1390, %v1393
    %s1395 = sld [smem:[#allocation12 + $0x11]]
    %v1396 = vstv %s1395
    %v1397 = vmul.f32 %v1140, %v1396
    %v1398 = vadd.f32 %v1394, %v1397
    %s1399 = sld [smem:[#allocation12 + $0x15]]
    %v1400 = vstv %s1399
    %v1401 = vmul.f32 %v1207, %v1400
    %v1402 = vadd.f32 %v1398, %v1401
    %s1403 = sld [smem:[#allocation12 + $0x19]]
    %v1404 = vstv %s1403
    %v1405 = vmul.f32 %v1274, %v1404
    %v1406 = vadd.f32 %v1402, %v1405
    %s1407 = sld [smem:[#allocation12 + $0x1d]]
    %v1408 = vstv %s1407
    %v1409 = vmul.f32 %v1341, %v1408
    %v1410 = vadd.f32 %v1406, %v1409
    %v1411 = vmax.f32 %v1410, 0.0
    %s1412 = sld [smem:[#allocation12 + $0x2]]
    %v1413 = vstv %s1412
    %v1414 = vmul.f32 %v872, %v1413
    %s1415 = sld [smem:[#allocation13 + $0x2]]
    %v1416 = vstv %s1415
    %v1417 = vadd.f32 %v1414, %v1416
    %s1418 = sld [smem:[#allocation12 + $0x6]]
    %v1419 = vstv %s1418
    %v1420 = vmul.f32 %v939, %v1419
    %v1421 = vadd.f32 %v1417, %v1420
    %s1422 = sld [smem:[#allocation12 + $0xa]]
    %v1423 = vstv %s1422
    %v1424 = vmul.f32 %v1006, %v1423
    %v1425 = vadd.f32 %v1421, %v1424
    %s1426 = sld [smem:[#allocation12 + $0xe]]
    %v1427 = vstv %s1426
    %v1428 = vmul.f32 %v1073, %v1427
    %v1429 = vadd.f32 %v1425, %v1428
    %s1430 = sld [smem:[#allocation12 + $0x12]]
    %v1431 = vstv %s1430
    %v1432 = vmul.f32 %v1140, %v1431
    %v1433 = vadd.f32 %v1429, %v1432
    %s1434 = sld [smem:[#allocation12 + $0x16]]
    %v1435 = vstv %s1434
    %v1436 = vmul.f32 %v1207, %v1435
    %v1437 = vadd.f32 %v1433, %v1436
    %s1438 = sld [smem:[#allocation12 + $0x1a]]
    %v1439 = vstv %s1438
    %v1440 = vmul.f32 %v1274, %v1439
    %v1441 = vadd.f32 %v1437, %v1440
    %s1442 = sld [smem:[#allocation12 + $0x1e]]
    %v1443 = vstv %s1442
    %v1444 = vmul.f32 %v1341, %v1443
    %v1445 = vadd.f32 %v1441, %v1444
    %v1446 = vmax.f32 %v1445, 0.0
    %s1447 = sld [smem:[#allocation12 + $0x3]]
    %v1448 = vstv %s1447
    %v1449 = vmul.f32 %v872, %v1448
    %s1450 = sld [smem:[#allocation13 + $0x3]]
    %v1451 = vstv %s1450
    %v1452 = vadd.f32 %v1449, %v1451
    %s1453 = sld [smem:[#allocation12 + $0x7]]
    %v1454 = vstv %s1453
    %v1455 = vmul.f32 %v939, %v1454
    %v1456 = vadd.f32 %v1452, %v1455
    %s1457 = sld [smem:[#allocation12 + $0xb]]
    %v1458 = vstv %s1457
    %v1459 = vmul.f32 %v1006, %v1458
    %v1460 = vadd.f32 %v1456, %v1459
    %s1461 = sld [smem:[#allocation12 + $0xf]]
    %v1462 = vstv %s1461
    %v1463 = vmul.f32 %v1073, %v1462
    %v1464 = vadd.f32 %v1460, %v1463
    %s1465 = sld [smem:[#allocation12 + $0x13]]
    %v1466 = vstv %s1465
    %v1467 = vmul.f32 %v1140, %v1466
    %v1468 = vadd.f32 %v1464, %v1467
    %s1469 = sld [smem:[#allocation12 + $0x17]]
    %v1470 = vstv %s1469
    %v1471 = vmul.f32 %v1207, %v1470
    %v1472 = vadd.f32 %v1468, %v1471
    %s1473 = sld [smem:[#allocation12 + $0x1b]]
    %v1474 = vstv %s1473
    %v1475 = vmul.f32 %v1274, %v1474
    %v1476 = vadd.f32 %v1472, %v1475
    %s1477 = sld [smem:[#allocation12 + $0x1f]]
    %v1478 = vstv %s1477
    %v1479 = vmul.f32 %v1341, %v1478
    %v1480 = vadd.f32 %v1476, %v1479
    %v1481 = vmax.f32 %v1480, 0.0
    %s1482 = sld [smem:[#allocation15]]
    %v1483 = vstv %s1482
    %v1484 = vmul.f32 %v1376, %v1483
    %s1485 = sld [smem:[#allocation16]]
    %v1486 = vstv %s1485
    %v1487 = vadd.f32 %v1484, %v1486
    %s1488 = sld [smem:[#allocation15 + $0x2]]
    %v1489 = vstv %s1488
    %v1490 = vmul.f32 %v1411, %v1489
    %v1491 = vadd.f32 %v1487, %v1490
    %s1492 = sld [smem:[#allocation15 + $0x4]]
    %v1493 = vstv %s1492
    %v1494 = vmul.f32 %v1446, %v1493
    %v1495 = vadd.f32 %v1491, %v1494
    %s1496 = sld [smem:[#allocation15 + $0x6]]
    %v1497 = vstv %s1496
    %v1498 = vmul.f32 %v1481, %v1497
    %v1499 = vadd.f32 %v1495, %v1498
    %s1500 = sld [smem:[#allocation15 + $0x1]]
    %v1501 = vstv %s1500
    %v1502 = vmul.f32 %v1376, %v1501
    %s1503 = sld [smem:[#allocation16 + $0x1]]
    %v1504 = vstv %s1503
    %v1505 = vadd.f32 %v1502, %v1504
    %s1506 = sld [smem:[#allocation15 + $0x3]]
    %v1507 = vstv %s1506
    %v1508 = vmul.f32 %v1411, %v1507
    %v1509 = vadd.f32 %v1505, %v1508
    %s1510 = sld [smem:[#allocation15 + $0x5]]
    %v1511 = vstv %s1510
    %v1512 = vmul.f32 %v1446, %v1511
    %v1513 = vadd.f32 %v1509, %v1512
    %s1514 = sld [smem:[#allocation15 + $0x7]]
    %v1515 = vstv %s1514
    %v1516 = vmul.f32 %v1481, %v1515
    %v1517 = vadd.f32 %v1513, %v1516
    %v1518 = vmax.f32 %v1499, %v1517
    %v1519 = vsub.f32 %v1499, %v1518
    %v1520 = vmul.f32 %v1519, 1.442695
    %v1521 = vpow.pop %v1520
    %v1522 = vsub.f32 %v1517, %v1518
    %v1523 = vmul.f32 %v1522, 1.442695
    %v1524 = vpow.pop %v1523
    %v1525 = vadd.f32 %v1521, %v1524
    %v1526 = vlog2.pop %v1525
    %v1527 = vmul.f32 %v1526, 0.6931472
    %v1528 = vadd.f32 %v1518, %v1527
    %v1529 = vsub.f32 %v1499, %v1528
    %1530 = vst [vmem:[%s11] sm:$0xff] %v1529
    %v1531 = vsub.f32 %v1517, %v1528
    %s1532 = scalar_lea.vmem %s11, 8
    %1533 = vst [vmem:[%s1532] sm:$0xff] %v1531
    // Predicated region
    $region86: #{halfmoon_forward.1} parent=1 // pred_check
      _
    $region87: #{halfmoon_forward.1} parent=1 // pred_check_branch
      %1535 = sbr.rel (0) target = $region89
    $region88: #{halfmoon_forward.1} parent=1 // pred_region
      _
    $region89: #{halfmoon_forward.1} parent=1 // pred_fallthru
      _
    // Predicated region
    $region90: #{halfmoon_forward.1} parent=1 // pred_check
      _
    $region91: #{halfmoon_forward.1} parent=1 // pred_check_branch
      %1537 = sbr.rel (0) target = $region93
    $region92: #{halfmoon_forward.1} parent=1 // pred_region
      _
    $region93: #{halfmoon_forward.1} parent=1 // pred_fallthru
      _
    %1538 = vsyncpa [#allocation3], 1
    %1539 = vsyncpa [#allocation5], 1
    %1540 = vsyncpa [#allocation8], 1
    %1541 = vsyncpa [#allocation11], 1
    %1542 = vsyncpa [#allocation14], 1
    %1543 = vsyncpa [#allocation17], 1

</llo_original>
